<compile_context>
chip_gen: v5e
topology: v5e:2x2
jax: 0.10.0
libtpu: 0.0.40
codegen_flags: <defaults>
</compile_context>

<pallas_src>
import math

import jax
import jax.numpy as jnp
import numpy as np
from jax import lax
from jax.experimental import pallas as pl
from jax.experimental.pallas import tpu as pltpu

VOCAB = 2690
EMBED_DIM = 100          # `embedding_dim` in the torch module
SEQ_LEN = 15             # `dim_i`
HIDDEN = 150
BATCH = 2
MAX_NORM = 15.0

# Lane-aligned (padded) sizes -- padding is zeros, so results stay exact.
D_PAD = 128              # 100  -> 128
HID_PAD = 256            # 150  -> 256
VOCAB_PAD = 2816         # 2690 -> 22 * 128
ROWS_PAD = 32            # B*S = 30 -> 32 sublanes

N_TILE = 1408            # classifier N tile (11 * 128); grid = (2,)

_SQRT2_INV = 0.7071067811865475


def _gelu(x):
    # Exact (erf-based) GELU, matching torch.nn.GELU() default.
    return 0.5 * x * (1.0 + lax.erf(x * _SQRT2_INV))


# ----------------------------------------------------------------------------
# Pallas kernel
# ----------------------------------------------------------------------------
def _net_kernel(x2_ref, xf_ref, wvk_ref, bvk_ref, wq1_ref, bq1_ref,
                wq2_ref, bq2_ref, wo_ref, bo_ref, w1_ref, b1_ref,
                w2_ref, b2_ref, out_ref, h_scr):
    f32 = jnp.float32
    B = xf_ref.shape[0]

    @pl.when(pl.program_id(0) == 0)
    def _front_end():
        x2 = x2_ref[...]                                            # (32, 128)

        # Fused value|key projection: one (32,128)x(128,256) matmul + one GELU.
        vk = _gelu(jnp.dot(x2, wvk_ref[...], preferred_element_type=f32)
                   + bvk_ref[...])                                  # (32, 256)
        value = vk[:, :D_PAD]
        key = vk[:, D_PAD:]

        # Query net: Linear(S*D, D) -> GELU -> Linear(D, D) -> GELU.
        q = _gelu(jnp.dot(xf_ref[...], wq1_ref[...], preferred_element_type=f32)
                  + bq1_ref[...])
        q = _gelu(jnp.dot(q, wq2_ref[...], preferred_element_type=f32)
                  + bq2_ref[...])                                   # (B, 128)

        # Batched single-query attention with lane-major scores (B, B*S).
        inv_scale = 1.0 / math.sqrt(float(EMBED_DIM))   # scaling_factor.sqrt()
        scores = jnp.einsum('bd,nd->bn', q, key,
                            preferred_element_type=f32) * inv_scale   # (B, 32)
        col = lax.broadcasted_iota(jnp.int32, scores.shape, 1)
        row = lax.broadcasted_iota(jnp.int32, scores.shape, 0)
        valid = (col >= row * SEQ_LEN) & (col < (row + 1) * SEQ_LEN)
        scores = jnp.where(valid, scores, jnp.float32(-1e30))  # exp -> exactly 0
        m = jnp.max(scores, axis=-1, keepdims=True)
        p = jnp.exp(scores - m)
        attn = p / jnp.sum(p, axis=-1, keepdims=True)   # exact recip, (B,1) only
        weighted = jnp.dot(attn, value, preferred_element_type=f32)   # (B, 128)

        # Attention output projection + classifier hidden layer.
        o = _gelu(jnp.dot(weighted, wo_ref[...], preferred_element_type=f32)
                  + bo_ref[...])
        h_scr[...] = _gelu(jnp.dot(o, w1_ref[...], preferred_element_type=f32)
                           + b1_ref[...])                           # (B, 256)

    # Classifier logits for this N tile (w2 is bf16 in HBM; accumulate in f32).
    h = h_scr[...].astype(jnp.bfloat16)
    out_ref[...] = (jnp.dot(h, w2_ref[...], preferred_element_type=f32)
                    + b2_ref[...])


# ----------------------------------------------------------------------------
# Wrapper
# ----------------------------------------------------------------------------
@jax.jit
def net_forward(pp, x_ids):
    """Forward pass of `Net` for int32 token ids x_ids of shape (B, S).

    `pp` are the padded parameters produced by `pad_params`.
    Returns (B, VOCAB) float32 logits.
    """
    B, S = x_ids.shape
    assert S == SEQ_LEN

    # --- embedding gather + max_norm renorm for the B*S used rows only -------
    rows = jnp.take(pp["emb"], x_ids.reshape(-1).astype(jnp.int32), axis=0)
    nrm = jnp.sqrt(jnp.sum(rows * rows, axis=-1, keepdims=True))
    rows = jnp.where(nrm > MAX_NORM, rows * (MAX_NORM / (nrm + 1e-7)), rows)
    rows = jnp.pad(rows, ((0, 0), (0, D_PAD - EMBED_DIM)))          # (B*S, 128)
    xf = rows.reshape(B, S * D_PAD)                                 # (B, 1920)
    x2 = jnp.pad(rows, ((0, ROWS_PAD - B * S), (0, 0)))             # (32, 128)

    args = (x2, xf, pp["wvk"], pp["bvk"], pp["wq1"], pp["bq1"], pp["wq2"],
            pp["bq2"], pp["wo"], pp["bo"], pp["w1"], pp["b1"], pp["w2"],
            pp["b2"])

    # Advisory cost estimate so XLA schedules around the custom call sensibly.
    flops = 2 * (ROWS_PAD * D_PAD * 2 * D_PAD        # fused value/key proj
                 + B * (S * D_PAD) * D_PAD           # query layer 1
                 + B * D_PAD * D_PAD * 2             # query layer 2 + out proj
                 + B * ROWS_PAD * D_PAD * 2          # scores + weighted sum
                 + B * D_PAD * HID_PAD               # classifier hidden
                 + B * HID_PAD * VOCAB_PAD)          # classifier logits
    transcendentals = (ROWS_PAD * 2 * D_PAD + B * (3 * D_PAD + HID_PAD)  # erf
                       + B * ROWS_PAD)                                   # exp
    bytes_accessed = int(sum(int(a.size) * a.dtype.itemsize for a in args)
                         + B * VOCAB_PAD * 4)

    const2 = lambda j: (0, 0)
    in_specs = [
        pl.BlockSpec((ROWS_PAD, D_PAD), const2),            # x2 rows
        pl.BlockSpec((B, S * D_PAD), const2),               # flattened query in
        pl.BlockSpec((D_PAD, 2 * D_PAD), const2),           # wvk (fused)
        pl.BlockSpec((1, 2 * D_PAD), const2),               # bvk
        pl.BlockSpec((S * D_PAD, D_PAD), const2),           # wq1
        pl.BlockSpec((1, D_PAD), const2),                   # bq1
        pl.BlockSpec((D_PAD, D_PAD), const2),               # wq2
        pl.BlockSpec((1, D_PAD), const2),                   # bq2
        pl.BlockSpec((D_PAD, D_PAD), const2),               # wo
        pl.BlockSpec((1, D_PAD), const2),                   # bo
        pl.BlockSpec((D_PAD, HID_PAD), const2),             # w1
        pl.BlockSpec((1, HID_PAD), const2),                 # b1
        pl.BlockSpec((HID_PAD, N_TILE), lambda j: (0, j)),  # w2 (bf16, tiled)
        pl.BlockSpec((1, N_TILE), lambda j: (0, j)),        # b2 (tiled)
    ]

    out_pad = pl.pallas_call(
        _net_kernel,
        grid=(VOCAB_PAD // N_TILE,),
        in_specs=in_specs,
        out_specs=pl.BlockSpec((B, N_TILE), lambda j: (0, j)),
        out_shape=jax.ShapeDtypeStruct((B, VOCAB_PAD), jnp.float32),
        scratch_shapes=[pltpu.VMEM((B, HID_PAD), jnp.float32)],
        compiler_params=pltpu.CompilerParams(
            dimension_semantics=("arbitrary",),
            vmem_limit_bytes=32 * 1024 * 1024),
        cost_estimate=pl.CostEstimate(flops=int(flops),
                                      transcendentals=int(transcendentals),
                                      bytes_accessed=bytes_accessed),
    )(*args)

    return out_pad[:, :VOCAB]


# ----------------------------------------------------------------------------
# Parameters (original torch shapes) + padding to lane-aligned shapes
# ----------------------------------------------------------------------------
def _init_linear(key, fan_in, fan_out):
    # PyTorch Linear default init: U(-1/sqrt(fan_in), 1/sqrt(fan_in)).
    k_w, k_b = jax.random.split(key)
    bound = 1.0 / np.sqrt(fan_in)
    # Stored transposed vs torch ((in, out)) so the kernel does x @ W + b.
    w = jax.random.uniform(k_w, (fan_in, fan_out), jnp.float32, -bound, bound)
    b = jax.random.uniform(k_b, (1, fan_out), jnp.float32, -bound, bound)
    return w, b


def make_params(key):
    keys = jax.random.split(key, 8)
    params = {}
    params["emb"] = jax.random.normal(keys[0], (VOCAB, EMBED_DIM), jnp.float32)
    params["wv"], params["bv"] = _init_linear(keys[1], EMBED_DIM, EMBED_DIM)
    params["wk"], params["bk"] = _init_linear(keys[2], EMBED_DIM, EMBED_DIM)
    params["wq1"], params["bq1"] = _init_linear(keys[3], EMBED_DIM * SEQ_LEN, EMBED_DIM)
    params["wq2"], params["bq2"] = _init_linear(keys[4], EMBED_DIM, EMBED_DIM)
    params["wo"], params["bo"] = _init_linear(keys[5], EMBED_DIM, EMBED_DIM)
    params["w1"], params["b1"] = _init_linear(keys[6], EMBED_DIM, HIDDEN)
    params["w2"], params["b2"] = _init_linear(keys[7], HIDDEN, VOCAB)
    return params


def _pad2(a, rows, cols):
    r, c = a.shape
    return jnp.pad(a, ((0, rows - r), (0, cols - c)))


def pad_params(params):
    """Zero-pad parameters to lane-aligned shapes (padding keeps results exact
    because padded input lanes are always exactly zero and padded weight
    rows/cols are zero)."""
    p = {}
    # Embedding table stays unpadded; the wrapper gathers only the used rows.
    p["emb"] = params["emb"]
    # Fused value|key projection weight / bias.
    wv = _pad2(params["wv"], D_PAD, D_PAD)
    wk = _pad2(params["wk"], D_PAD, D_PAD)
    p["wvk"] = jnp.concatenate([wv, wk], axis=1)                   # (128, 256)
    bv = _pad2(params["bv"], 1, D_PAD)
    bk = _pad2(params["bk"], 1, D_PAD)
    p["bvk"] = jnp.concatenate([bv, bk], axis=1)                   # (1, 256)
    for name in ("wq2", "wo"):
        p[name] = _pad2(params[name], D_PAD, D_PAD)
    for name in ("bq1", "bq2", "bo"):
        p[name] = _pad2(params[name], 1, D_PAD)
    # wq1 maps the flattened (S*D) input; pad each per-position (D, D) block so
    # it lines up with the wrapper's (B, S*D_PAD) flattened layout.
    wq1 = params["wq1"].reshape(SEQ_LEN, EMBED_DIM, EMBED_DIM)
    wq1 = jnp.pad(wq1, ((0, 0), (0, D_PAD - EMBED_DIM), (0, D_PAD - EMBED_DIM)))
    p["wq1"] = wq1.reshape(SEQ_LEN * D_PAD, D_PAD)
    p["w1"] = _pad2(params["w1"], D_PAD, HID_PAD)
    p["b1"] = _pad2(params["b1"], 1, HID_PAD)
    # w2 dominates HBM traffic -> store it in bf16 (matmul accumulates in f32).
    p["w2"] = _pad2(params["w2"], HID_PAD, VOCAB_PAD).astype(jnp.bfloat16)
    p["b2"] = _pad2(params["b2"], 1, VOCAB_PAD)
    return p


# ----------------------------------------------------------------------------
# Pure-JAX reference (same math, unpadded, f32) for a correctness cross-check.
# ----------------------------------------------------------------------------
def net_forward_reference(params, x_ids):
    emb = jnp.take(params["emb"], x_ids, axis=0)                   # (B, S, D)
    nrm = jnp.sqrt(jnp.sum(emb * emb, axis=-1, keepdims=True))
    emb = jnp.where(nrm > MAX_NORM, emb * (MAX_NORM / (nrm + 1e-7)), emb)
    B, S, D = emb.shape
    x2 = emb.reshape(B * S, D)
    value = _gelu(x2 @ params["wv"] + params["bv"]).reshape(B, S, D)
    key = _gelu(x2 @ params["wk"] + params["bk"]).reshape(B, S, D)
    q = _gelu(emb.reshape(B, S * D) @ params["wq1"] + params["bq1"])
    q = _gelu(q @ params["wq2"] + params["bq2"])                   # (B, D)
    scores = jnp.einsum('bd,bsd->bs', q, key) / jnp.sqrt(jnp.float32(D))
    attn = jax.nn.softmax(scores, axis=-1)
    weighted = jnp.einsum('bs,bsd->bd', attn, value)
    o = _gelu(weighted @ params["wo"] + params["bo"])
    h = _gelu(o @ params["w1"] + params["b1"])
    return h @ params["w2"] + params["b2"]


if __name__ == "__main__":
    key = jax.random.PRNGKey(0)
    k_params, k_x = jax.random.split(key)

    params = make_params(k_params)
    padded = pad_params(params)

    # Token ids (B, S).  B >= 2 so that weighted_value.squeeze() keeps the
    # batch dim, matching the PyTorch reference behaviour.
    x_ids = jax.random.randint(k_x, (BATCH, SEQ_LEN), 0, VOCAB, dtype=jnp.int32)

    out = net_forward(padded, x_ids)
    out = jax.block_until_ready(out)

    assert out.shape == (BATCH, VOCAB), out.shape
    assert out.dtype == jnp.float32
    assert bool(jnp.all(jnp.isfinite(out)))

    # Cross-check against a plain-JAX f32 reference of the same forward pass
    # (loose tolerance: w2 is stored/multiplied in bf16 inside the kernel).
    with jax.default_matmul_precision("float32"):
        ref = net_forward_reference(params, x_ids)
    assert bool(jnp.allclose(out, ref, rtol=5e-2, atol=5e-2)), \
        float(jnp.max(jnp.abs(out - ref)))

    print("KERNEL_OK")
</pallas_src>

<mosaic_0001>
module attributes {stable_mosaic.version = 11 : i64} {
  func.func @_net_kernel(%arg0: i32, %arg1: memref<32x128xf32, #tpu.memory_space<vmem>>, %arg2: memref<2x1920xf32, #tpu.memory_space<vmem>>, %arg3: memref<128x256xf32, #tpu.memory_space<vmem>>, %arg4: memref<1x256xf32, #tpu.memory_space<vmem>>, %arg5: memref<1920x128xf32, #tpu.memory_space<vmem>>, %arg6: memref<1x128xf32, #tpu.memory_space<vmem>>, %arg7: memref<128x128xf32, #tpu.memory_space<vmem>>, %arg8: memref<1x128xf32, #tpu.memory_space<vmem>>, %arg9: memref<128x128xf32, #tpu.memory_space<vmem>>, %arg10: memref<1x128xf32, #tpu.memory_space<vmem>>, %arg11: memref<128x256xf32, #tpu.memory_space<vmem>>, %arg12: memref<1x256xf32, #tpu.memory_space<vmem>>, %arg13: memref<256x1408xbf16, #tpu.memory_space<vmem>>, %arg14: memref<1x1408xf32, #tpu.memory_space<vmem>>, %arg15: memref<2x1408xf32, #tpu.memory_space<vmem>>, %arg16: memref<2x256xf32, #tpu.memory_space<vmem>>) attributes {dimension_semantics = [#tpu.dimension_semantics<arbitrary>], iteration_bounds = array<i64: 2>, scalar_prefetch = 0 : i64, scratch_operands = 1 : i64, tpu.core_type = #tpu.core_type<tc>, window_params = [{pipeline_mode = #tpu.pipeline_mode<synchronous>, transform_indices = @transform_0, window_bounds = array<i64: 32, 128>}, {pipeline_mode = #tpu.pipeline_mode<synchronous>, transform_indices = @transform_1, window_bounds = array<i64: 2, 1920>}, {pipeline_mode = #tpu.pipeline_mode<synchronous>, transform_indices = @transform_2, window_bounds = array<i64: 128, 256>}, {pipeline_mode = #tpu.pipeline_mode<synchronous>, transform_indices = @transform_3, window_bounds = array<i64: 1, 256>}, {pipeline_mode = #tpu.pipeline_mode<synchronous>, transform_indices = @transform_4, window_bounds = array<i64: 1920, 128>}, {pipeline_mode = #tpu.pipeline_mode<synchronous>, transform_indices = @transform_5, window_bounds = array<i64: 1, 128>}, {pipeline_mode = #tpu.pipeline_mode<synchronous>, transform_indices = @transform_6, window_bounds = array<i64: 128, 128>}, {pipeline_mode = #tpu.pipeline_mode<synchronous>, transform_indices = @transform_7, window_bounds = array<i64: 1, 128>}, {pipeline_mode = #tpu.pipeline_mode<synchronous>, transform_indices = @transform_8, window_bounds = array<i64: 128, 128>}, {pipeline_mode = #tpu.pipeline_mode<synchronous>, transform_indices = @transform_9, window_bounds = array<i64: 1, 128>}, {pipeline_mode = #tpu.pipeline_mode<synchronous>, transform_indices = @transform_10, window_bounds = array<i64: 128, 256>}, {pipeline_mode = #tpu.pipeline_mode<synchronous>, transform_indices = @transform_11, window_bounds = array<i64: 1, 256>}, {transform_indices = @transform_12, window_bounds = array<i64: 256, 1408>}, {transform_indices = @transform_13, window_bounds = array<i64: 1, 1408>}, {transform_indices = @transform_14, window_bounds = array<i64: 2, 1408>}]} {
    %c0_i32 = arith.constant 0 : i32
    %0 = arith.cmpi eq, %arg0, %c0_i32 : i32
    %1 = arith.extui %0 : i1 to i32
    %c0_i32_0 = arith.constant 0 : i32
    %2 = arith.cmpi ne, %1, %c0_i32_0 : i32
    scf.if %2 {
      %c0_8 = arith.constant 0 : index
      %c0_9 = arith.constant 0 : index
      %11 = vector.load %arg1[%c0_8, %c0_9] : memref<32x128xf32, #tpu.memory_space<vmem>>, vector<32x128xf32>
      %c0_10 = arith.constant 0 : index
      %c0_11 = arith.constant 0 : index
      %12 = vector.load %arg3[%c0_10, %c0_11] : memref<128x256xf32, #tpu.memory_space<vmem>>, vector<128x256xf32>
      %cst_12 = arith.constant dense<0.000000e+00> : vector<32x256xf32>
      %13 = tpu.matmul %11, %12, %cst_12 {dimension_numbers = #tpu.dot_dimension_numbers<[1], [0], [0], [1], [0, 0, 1, 1], [], []>} : vector<32x128xf32>, vector<128x256xf32>, vector<32x256xf32> -> vector<32x256xf32>
      %c0_13 = arith.constant 0 : index
      %c0_14 = arith.constant 0 : index
      %14 = vector.load %arg4[%c0_13, %c0_14] : memref<1x256xf32, #tpu.memory_space<vmem>>, vector<1x256xf32>
      %15 = vector.broadcast %14 : vector<1x256xf32> to vector<32x256xf32>
      %16 = arith.addf %13, %15 : vector<32x256xf32>
      %cst_15 = arith.constant 5.000000e-01 : f32
      %17 = vector.broadcast %cst_15 : f32 to vector<32x256xf32>
      %18 = arith.mulf %17, %16 : vector<32x256xf32>
      %cst_16 = arith.constant 0.707106769 : f32
      %19 = vector.broadcast %cst_16 : f32 to vector<32x256xf32>
      %20 = arith.mulf %16, %19 : vector<32x256xf32>
      %21 = math.erf %20 : vector<32x256xf32>
      %cst_17 = arith.constant 1.000000e+00 : f32
      %22 = vector.broadcast %cst_17 : f32 to vector<32x256xf32>
      %23 = arith.addf %22, %21 : vector<32x256xf32>
      %24 = arith.mulf %18, %23 : vector<32x256xf32>
      %25 = vector.extract_strided_slice %24 {offsets = [0, 0], sizes = [32, 128], strides = [1, 1]} : vector<32x256xf32> to vector<32x128xf32>
      %26 = vector.extract_strided_slice %24 {offsets = [0, 128], sizes = [32, 128], strides = [1, 1]} : vector<32x256xf32> to vector<32x128xf32>
      %c0_18 = arith.constant 0 : index
      %c0_19 = arith.constant 0 : index
      %27 = vector.load %arg2[%c0_18, %c0_19] : memref<2x1920xf32, #tpu.memory_space<vmem>>, vector<2x1920xf32>
      %c0_20 = arith.constant 0 : index
      %c0_21 = arith.constant 0 : index
      %28 = vector.load %arg5[%c0_20, %c0_21] : memref<1920x128xf32, #tpu.memory_space<vmem>>, vector<1920x128xf32>
      %cst_22 = arith.constant dense<0.000000e+00> : vector<2x128xf32>
      %29 = tpu.matmul %27, %28, %cst_22 {dimension_numbers = #tpu.dot_dimension_numbers<[1], [0], [0], [1], [0, 0, 1, 1], [], []>} : vector<2x1920xf32>, vector<1920x128xf32>, vector<2x128xf32> -> vector<2x128xf32>
      %c0_23 = arith.constant 0 : index
      %c0_24 = arith.constant 0 : index
      %30 = vector.load %arg6[%c0_23, %c0_24] : memref<1x128xf32, #tpu.memory_space<vmem>>, vector<1x128xf32>
      %31 = vector.broadcast %30 : vector<1x128xf32> to vector<2x128xf32>
      %32 = arith.addf %29, %31 : vector<2x128xf32>
      %cst_25 = arith.constant 5.000000e-01 : f32
      %33 = vector.broadcast %cst_25 : f32 to vector<2x128xf32>
      %34 = arith.mulf %33, %32 : vector<2x128xf32>
      %cst_26 = arith.constant 0.707106769 : f32
      %35 = vector.broadcast %cst_26 : f32 to vector<2x128xf32>
      %36 = arith.mulf %32, %35 : vector<2x128xf32>
      %37 = math.erf %36 : vector<2x128xf32>
      %cst_27 = arith.constant 1.000000e+00 : f32
      %38 = vector.broadcast %cst_27 : f32 to vector<2x128xf32>
      %39 = arith.addf %38, %37 : vector<2x128xf32>
      %40 = arith.mulf %34, %39 : vector<2x128xf32>
      %c0_28 = arith.constant 0 : index
      %c0_29 = arith.constant 0 : index
      %41 = vector.load %arg7[%c0_28, %c0_29] : memref<128x128xf32, #tpu.memory_space<vmem>>, vector<128x128xf32>
      %cst_30 = arith.constant dense<0.000000e+00> : vector<2x128xf32>
      %42 = tpu.matmul %40, %41, %cst_30 {dimension_numbers = #tpu.dot_dimension_numbers<[1], [0], [0], [1], [0, 0, 1, 1], [], []>} : vector<2x128xf32>, vector<128x128xf32>, vector<2x128xf32> -> vector<2x128xf32>
      %c0_31 = arith.constant 0 : index
      %c0_32 = arith.constant 0 : index
      %43 = vector.load %arg8[%c0_31, %c0_32] : memref<1x128xf32, #tpu.memory_space<vmem>>, vector<1x128xf32>
      %44 = vector.broadcast %43 : vector<1x128xf32> to vector<2x128xf32>
      %45 = arith.addf %42, %44 : vector<2x128xf32>
      %cst_33 = arith.constant 5.000000e-01 : f32
      %46 = vector.broadcast %cst_33 : f32 to vector<2x128xf32>
      %47 = arith.mulf %46, %45 : vector<2x128xf32>
      %cst_34 = arith.constant 0.707106769 : f32
      %48 = vector.broadcast %cst_34 : f32 to vector<2x128xf32>
      %49 = arith.mulf %45, %48 : vector<2x128xf32>
      %50 = math.erf %49 : vector<2x128xf32>
      %cst_35 = arith.constant 1.000000e+00 : f32
      %51 = vector.broadcast %cst_35 : f32 to vector<2x128xf32>
      %52 = arith.addf %51, %50 : vector<2x128xf32>
      %53 = arith.mulf %47, %52 : vector<2x128xf32>
      "tpu.trace_start"() <{level = 10 : i32, message = "bd,nd->bn"}> : () -> ()
      %cst_36 = arith.constant dense<0.000000e+00> : vector<2x32xf32>
      %54 = tpu.matmul %53, %26, %cst_36 {dimension_numbers = #tpu.dot_dimension_numbers<[1], [1], [0], [0], [0, 0, 1, 0], [], []>} : vector<2x128xf32>, vector<32x128xf32>, vector<2x32xf32> -> vector<2x32xf32>
      "tpu.trace_stop"() : () -> ()
      %cst_37 = arith.constant 1.000000e-01 : f32
      %55 = vector.broadcast %cst_37 : f32 to vector<2x32xf32>
      %56 = arith.mulf %54, %55 : vector<2x32xf32>
      %57 = tpu.iota {dimensions = array<i32: 1>} : vector<2x32xi32>
      %58 = tpu.iota {dimensions = array<i32: 0>} : vector<2x32xi32>
      %c15_i32 = arith.constant 15 : i32
      %59 = vector.broadcast %c15_i32 : i32 to vector<2x32xi32>
      %60 = arith.muli %58, %59 : vector<2x32xi32>
      %61 = arith.cmpi sge, %57, %60 : vector<2x32xi32>
      %c1_i32 = arith.constant 1 : i32
      %62 = vector.broadcast %c1_i32 : i32 to vector<2x32xi32>
      %63 = arith.addi %58, %62 : vector<2x32xi32>
      %c15_i32_38 = arith.constant 15 : i32
      %64 = vector.broadcast %c15_i32_38 : i32 to vector<2x32xi32>
      %65 = arith.muli %63, %64 : vector<2x32xi32>
      %66 = arith.cmpi slt, %57, %65 : vector<2x32xi32>
      %67 = arith.andi %61, %66 : vector<2x32xi1>
      %cst_39 = arith.constant -1.000000e+30 : f32
      %68 = vector.broadcast %cst_39 : f32 to vector<2x32xf32>
      %69 = arith.select %67, %56, %68 : vector<2x32xi1>, vector<2x32xf32>
      %cst_40 = arith.constant dense<0xFF800000> : vector<2xf32>
      %70 = vector.multi_reduction <maximumf>, %69, %cst_40 [1] : vector<2x32xf32> to vector<2xf32>
      %71 = vector.shape_cast %70 : vector<2xf32> to vector<2x1xf32>
      %72 = vector.broadcast %71 : vector<2x1xf32> to vector<2x32xf32>
      %73 = arith.subf %69, %72 : vector<2x32xf32>
      %74 = math.exp %73 : vector<2x32xf32>
      %cst_41 = arith.constant dense<0.000000e+00> : vector<2xf32>
      %75 = vector.multi_reduction <add>, %74, %cst_41 [1] : vector<2x32xf32> to vector<2xf32>
      %76 = vector.shape_cast %75 : vector<2xf32> to vector<2x1xf32>
      %77 = vector.broadcast %76 : vector<2x1xf32> to vector<2x32xf32>
      %78 = arith.divf %74, %77 : vector<2x32xf32>
      %cst_42 = arith.constant dense<0.000000e+00> : vector<2x128xf32>
      %79 = tpu.matmul %78, %25, %cst_42 {dimension_numbers = #tpu.dot_dimension_numbers<[1], [0], [0], [1], [0, 0, 1, 1], [], []>} : vector<2x32xf32>, vector<32x128xf32>, vector<2x128xf32> -> vector<2x128xf32>
      %c0_43 = arith.constant 0 : index
      %c0_44 = arith.constant 0 : index
      %80 = vector.load %arg9[%c0_43, %c0_44] : memref<128x128xf32, #tpu.memory_space<vmem>>, vector<128x128xf32>
      %cst_45 = arith.constant dense<0.000000e+00> : vector<2x128xf32>
      %81 = tpu.matmul %79, %80, %cst_45 {dimension_numbers = #tpu.dot_dimension_numbers<[1], [0], [0], [1], [0, 0, 1, 1], [], []>} : vector<2x128xf32>, vector<128x128xf32>, vector<2x128xf32> -> vector<2x128xf32>
      %c0_46 = arith.constant 0 : index
      %c0_47 = arith.constant 0 : index
      %82 = vector.load %arg10[%c0_46, %c0_47] : memref<1x128xf32, #tpu.memory_space<vmem>>, vector<1x128xf32>
      %83 = vector.broadcast %82 : vector<1x128xf32> to vector<2x128xf32>
      %84 = arith.addf %81, %83 : vector<2x128xf32>
      %cst_48 = arith.constant 5.000000e-01 : f32
      %85 = vector.broadcast %cst_48 : f32 to vector<2x128xf32>
      %86 = arith.mulf %85, %84 : vector<2x128xf32>
      %cst_49 = arith.constant 0.707106769 : f32
      %87 = vector.broadcast %cst_49 : f32 to vector<2x128xf32>
      %88 = arith.mulf %84, %87 : vector<2x128xf32>
      %89 = math.erf %88 : vector<2x128xf32>
      %cst_50 = arith.constant 1.000000e+00 : f32
      %90 = vector.broadcast %cst_50 : f32 to vector<2x128xf32>
      %91 = arith.addf %90, %89 : vector<2x128xf32>
      %92 = arith.mulf %86, %91 : vector<2x128xf32>
      %c0_51 = arith.constant 0 : index
      %c0_52 = arith.constant 0 : index
      %93 = vector.load %arg11[%c0_51, %c0_52] : memref<128x256xf32, #tpu.memory_space<vmem>>, vector<128x256xf32>
      %cst_53 = arith.constant dense<0.000000e+00> : vector<2x256xf32>
      %94 = tpu.matmul %92, %93, %cst_53 {dimension_numbers = #tpu.dot_dimension_numbers<[1], [0], [0], [1], [0, 0, 1, 1], [], []>} : vector<2x128xf32>, vector<128x256xf32>, vector<2x256xf32> -> vector<2x256xf32>
      %c0_54 = arith.constant 0 : index
      %c0_55 = arith.constant 0 : index
      %95 = vector.load %arg12[%c0_54, %c0_55] : memref<1x256xf32, #tpu.memory_space<vmem>>, vector<1x256xf32>
      %96 = vector.broadcast %95 : vector<1x256xf32> to vector<2x256xf32>
      %97 = arith.addf %94, %96 : vector<2x256xf32>
      %cst_56 = arith.constant 5.000000e-01 : f32
      %98 = vector.broadcast %cst_56 : f32 to vector<2x256xf32>
      %99 = arith.mulf %98, %97 : vector<2x256xf32>
      %cst_57 = arith.constant 0.707106769 : f32
      %100 = vector.broadcast %cst_57 : f32 to vector<2x256xf32>
      %101 = arith.mulf %97, %100 : vector<2x256xf32>
      %102 = math.erf %101 : vector<2x256xf32>
      %cst_58 = arith.constant 1.000000e+00 : f32
      %103 = vector.broadcast %cst_58 : f32 to vector<2x256xf32>
      %104 = arith.addf %103, %102 : vector<2x256xf32>
      %105 = arith.mulf %99, %104 : vector<2x256xf32>
      %c0_59 = arith.constant 0 : index
      %c0_60 = arith.constant 0 : index
      %106 = vector.load %arg16[%c0_59, %c0_60] : memref<2x256xf32, #tpu.memory_space<vmem>>, vector<2x256xf32>
      tpu.vector_store %arg16[%c0_59, %c0_60], %105 {strides = array<i32>} : memref<2x256xf32, #tpu.memory_space<vmem>>, vector<2x256xf32>,
    } else {
    }
    %c0 = arith.constant 0 : index
    %c0_1 = arith.constant 0 : index
    %3 = vector.load %arg16[%c0, %c0_1] : memref<2x256xf32, #tpu.memory_space<vmem>>, vector<2x256xf32>
    %4 = arith.truncf %3 : vector<2x256xf32> to vector<2x256xbf16>
    %c0_2 = arith.constant 0 : index
    %c0_3 = arith.constant 0 : index
    %5 = vector.load %arg13[%c0_2, %c0_3] : memref<256x1408xbf16, #tpu.memory_space<vmem>>, vector<256x1408xbf16>
    %cst = arith.constant dense<0.000000e+00> : vector<2x1408xf32>
    %6 = tpu.matmul %4, %5, %cst {dimension_numbers = #tpu.dot_dimension_numbers<[1], [0], [0], [1], [0, 0, 1, 1], [], []>} : vector<2x256xbf16>, vector<256x1408xbf16>, vector<2x1408xf32> -> vector<2x1408xf32>
    %c0_4 = arith.constant 0 : index
    %c0_5 = arith.constant 0 : index
    %7 = vector.load %arg14[%c0_4, %c0_5] : memref<1x1408xf32, #tpu.memory_space<vmem>>, vector<1x1408xf32>
    %8 = vector.broadcast %7 : vector<1x1408xf32> to vector<2x1408xf32>
    %9 = arith.addf %6, %8 : vector<2x1408xf32>
    %c0_6 = arith.constant 0 : index
    %c0_7 = arith.constant 0 : index
    %10 = vector.load %arg15[%c0_6, %c0_7] : memref<2x1408xf32, #tpu.memory_space<vmem>>, vector<2x1408xf32>
    tpu.vector_store %arg15[%c0_6, %c0_7], %9 {strides = array<i32>} : memref<2x1408xf32, #tpu.memory_space<vmem>>, vector<2x1408xf32>,
    return
  }
  func.func @transform_0(%arg0: i32) -> (i32, i32) {
    %c0_i32 = arith.constant 0 : i32
    %c0_i32_0 = arith.constant 0 : i32
    %c0_i32_1 = arith.constant 0 : i32
    return %c0_i32, %c0_i32_0 : i32, i32
  }
  func.func @transform_1(%arg0: i32) -> (i32, i32) {
    %c0_i32 = arith.constant 0 : i32
    %c0_i32_0 = arith.constant 0 : i32
    %c0_i32_1 = arith.constant 0 : i32
    return %c0_i32, %c0_i32_0 : i32, i32
  }
  func.func @transform_2(%arg0: i32) -> (i32, i32) {
    %c0_i32 = arith.constant 0 : i32
    %c0_i32_0 = arith.constant 0 : i32
    %c0_i32_1 = arith.constant 0 : i32
    return %c0_i32, %c0_i32_0 : i32, i32
  }
  func.func @transform_3(%arg0: i32) -> (i32, i32) {
    %c0_i32 = arith.constant 0 : i32
    %c0_i32_0 = arith.constant 0 : i32
    %c0_i32_1 = arith.constant 0 : i32
    return %c0_i32, %c0_i32_0 : i32, i32
  }
  func.func @transform_4(%arg0: i32) -> (i32, i32) {
    %c0_i32 = arith.constant 0 : i32
    %c0_i32_0 = arith.constant 0 : i32
    %c0_i32_1 = arith.constant 0 : i32
    return %c0_i32, %c0_i32_0 : i32, i32
  }
  func.func @transform_5(%arg0: i32) -> (i32, i32) {
    %c0_i32 = arith.constant 0 : i32
    %c0_i32_0 = arith.constant 0 : i32
    %c0_i32_1 = arith.constant 0 : i32
    return %c0_i32, %c0_i32_0 : i32, i32
  }
  func.func @transform_6(%arg0: i32) -> (i32, i32) {
    %c0_i32 = arith.constant 0 : i32
    %c0_i32_0 = arith.constant 0 : i32
    %c0_i32_1 = arith.constant 0 : i32
    return %c0_i32, %c0_i32_0 : i32, i32
  }
  func.func @transform_7(%arg0: i32) -> (i32, i32) {
    %c0_i32 = arith.constant 0 : i32
    %c0_i32_0 = arith.constant 0 : i32
    %c0_i32_1 = arith.constant 0 : i32
    return %c0_i32, %c0_i32_0 : i32, i32
  }
  func.func @transform_8(%arg0: i32) -> (i32, i32) {
    %c0_i32 = arith.constant 0 : i32
    %c0_i32_0 = arith.constant 0 : i32
    %c0_i32_1 = arith.constant 0 : i32
    return %c0_i32, %c0_i32_0 : i32, i32
  }
  func.func @transform_9(%arg0: i32) -> (i32, i32) {
    %c0_i32 = arith.constant 0 : i32
    %c0_i32_0 = arith.constant 0 : i32
    %c0_i32_1 = arith.constant 0 : i32
    return %c0_i32, %c0_i32_0 : i32, i32
  }
  func.func @transform_10(%arg0: i32) -> (i32, i32) {
    %c0_i32 = arith.constant 0 : i32
    %c0_i32_0 = arith.constant 0 : i32
    %c0_i32_1 = arith.constant 0 : i32
    return %c0_i32, %c0_i32_0 : i32, i32
  }
  func.func @transform_11(%arg0: i32) -> (i32, i32) {
    %c0_i32 = arith.constant 0 : i32
    %c0_i32_0 = arith.constant 0 : i32
    %c0_i32_1 = arith.constant 0 : i32
    return %c0_i32, %c0_i32_0 : i32, i32
  }
  func.func @transform_12(%arg0: i32) -> (i32, i32) {
    %c0_i32 = arith.constant 0 : i32
    %c0_i32_0 = arith.constant 0 : i32
    return %c0_i32, %arg0 : i32, i32
  }
  func.func @transform_13(%arg0: i32) -> (i32, i32) {
    %c0_i32 = arith.constant 0 : i32
    %c0_i32_0 = arith.constant 0 : i32
    return %c0_i32, %arg0 : i32, i32
  }
  func.func @transform_14(%arg0: i32) -> (i32, i32) {
    %c0_i32 = arith.constant 0 : i32
    %c0_i32_0 = arith.constant 0 : i32
    return %c0_i32, %arg0 : i32, i32
  }
}

</mosaic_0001>

<llo_original>
// kernel: net_forward.1
$region0: #{net_forward.1}
  #allocation0 [shape = 'u32[]', space=smem, size = 0x4, offset = 0x4, fixed_abs, tag = 'smem constant byte address 0x4 - core index']
  #allocation1 [shape = 'u32[72,128]{1,0:T(1,128)}', space=vmem, size = 0x9000, scoped, tag = 'internal scratch']
  #allocation2 [shape = 'f32[2,256]{1,0:T(2,128)}', space=vmem, size = 0x800, scoped, tag = 'scratch operand']
  %s0 = inlined_call_operand.vmem [shape: f32[32,128], index: 0, kind: input, shape index: {}]
  %s1 = inlined_call_operand.vmem [shape: f32[2,1920], index: 1, kind: input, shape index: {}]
  %s2 = inlined_call_operand.vmem [shape: f32[128,256], index: 2, kind: input, shape index: {}]
  %s3 = inlined_call_operand.vmem [shape: f32[1,256], index: 3, kind: input, shape index: {}]
  %s4 = inlined_call_operand.vmem [shape: f32[1920,128], index: 4, kind: input, shape index: {}]
  %s5 = inlined_call_operand.vmem [shape: f32[1,128], index: 5, kind: input, shape index: {}]
  %s6 = inlined_call_operand.vmem [shape: f32[128,128], index: 6, kind: input, shape index: {}]
  %s7 = inlined_call_operand.vmem [shape: f32[1,128], index: 7, kind: input, shape index: {}]
  %s8 = inlined_call_operand.vmem [shape: f32[128,128], index: 8, kind: input, shape index: {}]
  %s9 = inlined_call_operand.vmem [shape: f32[1,128], index: 9, kind: input, shape index: {}]
  %s10 = inlined_call_operand.vmem [shape: f32[128,256], index: 10, kind: input, shape index: {}]
  %s11 = inlined_call_operand.vmem [shape: f32[1,256], index: 11, kind: input, shape index: {}]
  %s12 = inlined_call_operand.vmem [shape: bf16[256,2816], index: 12, kind: input, shape index: {}]
  %s13 = inlined_call_operand.vmem [shape: f32[1,2816], index: 13, kind: input, shape index: {}]
  %s14 = inlined_call_operand.hbm [shape: f32[2,2816], index: 14, kind: output, shape index: {}]
  %s15 = sld [smem:[#allocation0]]
  $region119: #{net_forward.1} parent=0
    _
  %s17 = ssub.s32 1, %s15
  %s18 = scalar_select 0, %s17, %s15
  $region1: #{net_forward.1} parent=0
    #allocation3 [shape = 'u8[1441792]{0}', space=vmem, size = 0x160000, scoped, tag = 'input window, operand 12']
    #allocation4 [shape = 'u8[22528]{0}', space=vmem, size = 0x5800, scoped, tag = 'output window, operand 0']
    #allocation5 [shape = 's32[2]{0}', space=sflag, size = 0x8, scoped, tag = 'scoped memory for net_forward.1']
    %19 = vsyncpa [#allocation5], 0
    %s20 = scalar_lea.sflag [#allocation5], 1
    %21 = vsyncpa %s20, 0
    loop: start=0, step=1, limit=4
    $region2: #{net_forward.1} parent=1 // loop_pre_header
      _
    $region3: #{net_forward.1} parent=1 // loop_header
      %s23 = sphi 0, %s27
      %p24 = scmp.ge.s32.totalorder %s23, 4
      %s31 = sphi 0, %s31
      %s33 = sphi 0, %s31
      %s34 = sphi 0, %s33
      %s48 = sphi 0, %s34
      %s52 = sphi 0, %s52
      %s54 = sphi 0, %s52
      %s55 = sphi 0, %s54
      %s69 = sphi 0, %s55
      %s73 = sphi 0, %s73
      %s75 = sphi 0, %s73
      %s76 = sphi 0, %s75
      %s90 = sphi 0, %s76
      %s94 = sphi 0, %s94
      %s96 = sphi 0, %s94
      %s97 = sphi 0, %s96
      %s111 = sphi 0, %s97
      %s115 = sphi 0, %s115
      %s117 = sphi 0, %s115
      %s118 = sphi 0, %s117
      %s132 = sphi 0, %s118
      %s136 = sphi 0, %s136
      %s138 = sphi 0, %s136
      %s139 = sphi 0, %s138
      %s153 = sphi 0, %s139
      %s157 = sphi 0, %s157
      %s159 = sphi 0, %s157
      %s160 = sphi 0, %s159
      %s174 = sphi 0, %s160
      %s178 = sphi 0, %s178
      %s180 = sphi 0, %s178
      %s181 = sphi 0, %s180
      %s195 = sphi 0, %s181
      %s199 = sphi 0, %s199
      %s201 = sphi 0, %s199
      %s202 = sphi 0, %s201
      %s216 = sphi 0, %s202
      %s220 = sphi 0, %s220
      %s222 = sphi 0, %s220
      %s223 = sphi 0, %s222
      %s237 = sphi 0, %s223
      %s241 = sphi 0, %s241
      %s243 = sphi 0, %s241
      %s244 = sphi 0, %s243
      %s258 = sphi 0, %s244
      %s262 = sphi 0, %s262
      %s264 = sphi 0, %s262
      %s265 = sphi 0, %s264
      %s279 = sphi 0, %s265
      %s285 = sphi 0, %s287
      %s288 = sphi 0, %s285
      %s289 = sphi 0, %s288
      %s305 = sphi 0, %s289
      %s311 = sphi 0, %s313
      %s314 = sphi 0, %s311
      %s315 = sphi 0, %s314
      %s331 = sphi 0, %s315
      %s337 = sphi 0, %s339
      %s340 = sphi 0, %s337
      %s341 = sphi 0, %s340
      %s357 = sphi 0, %s341
    $region4: #{net_forward.1} parent=1 // loop_header_branch
      %26 = sbr.rel (%p24) target = $region8
    $region5: #{net_forward.1} parent=1 // loop_body
      %s28 = ssub.s32 %s23, 1
      %s29 = ssub.s32 %s23, 2
      %s30 = sadd.s32 %s23, 1
      %s32 = sadd.s32 %s31, 1
      %p35 = scmp.eq.s32.totalorder %s23, 1
      %p36 = scmp.ne.s32.totalorder %s31, %s33
      %p37 = scmp.eq.s32.totalorder %s23, 0
      %p38 = por %p36, %p37
      %p39 = scmp.ne.s32.totalorder %s31, %s33
      %p40 = scmp.eq.s32.totalorder %s28, 1
      %p41 = por %p39, %p40
      %p42 = scmp.ne.s32.totalorder %s33, %s34
      %p43 = scmp.eq.s32.totalorder %s28, 0
      %p44 = por %p42, %p43
      %p45 = scmp.ne.s32.totalorder %s33, %s34
      %p46 = scmp.eq.s32.totalorder %s29, 1
      %p47 = por %p45, %p46
      %p49 = scmp.ne.s32.totalorder %s34, %s48
      %p50 = scmp.eq.s32.totalorder %s29, 0
      %p51 = por %p49, %p50
      %s53 = sadd.s32 %s52, 1
      %p56 = scmp.eq.s32.totalorder %s23, 1
      %p57 = scmp.ne.s32.totalorder %s52, %s54
      %p58 = scmp.eq.s32.totalorder %s23, 0
      %p59 = por %p57, %p58
      %p60 = scmp.ne.s32.totalorder %s52, %s54
      %p61 = scmp.eq.s32.totalorder %s28, 1
      %p62 = por %p60, %p61
      %p63 = scmp.ne.s32.totalorder %s54, %s55
      %p64 = scmp.eq.s32.totalorder %s28, 0
      %p65 = por %p63, %p64
      %p66 = scmp.ne.s32.totalorder %s54, %s55
      %p67 = scmp.eq.s32.totalorder %s29, 1
      %p68 = por %p66, %p67
      %p70 = scmp.ne.s32.totalorder %s55, %s69
      %p71 = scmp.eq.s32.totalorder %s29, 0
      %p72 = por %p70, %p71
      %s74 = sadd.s32 %s73, 1
      %p77 = scmp.eq.s32.totalorder %s23, 1
      %p78 = scmp.ne.s32.totalorder %s73, %s75
      %p79 = scmp.eq.s32.totalorder %s23, 0
      %p80 = por %p78, %p79
      %p81 = scmp.ne.s32.totalorder %s73, %s75
      %p82 = scmp.eq.s32.totalorder %s28, 1
      %p83 = por %p81, %p82
      %p84 = scmp.ne.s32.totalorder %s75, %s76
      %p85 = scmp.eq.s32.totalorder %s28, 0
      %p86 = por %p84, %p85
      %p87 = scmp.ne.s32.totalorder %s75, %s76
      %p88 = scmp.eq.s32.totalorder %s29, 1
      %p89 = por %p87, %p88
      %p91 = scmp.ne.s32.totalorder %s76, %s90
      %p92 = scmp.eq.s32.totalorder %s29, 0
      %p93 = por %p91, %p92
      %s95 = sadd.s32 %s94, 1
      %p98 = scmp.eq.s32.totalorder %s23, 1
      %p99 = scmp.ne.s32.totalorder %s94, %s96
      %p100 = scmp.eq.s32.totalorder %s23, 0
      %p101 = por %p99, %p100
      %p102 = scmp.ne.s32.totalorder %s94, %s96
      %p103 = scmp.eq.s32.totalorder %s28, 1
      %p104 = por %p102, %p103
      %p105 = scmp.ne.s32.totalorder %s96, %s97
      %p106 = scmp.eq.s32.totalorder %s28, 0
      %p107 = por %p105, %p106
      %p108 = scmp.ne.s32.totalorder %s96, %s97
      %p109 = scmp.eq.s32.totalorder %s29, 1
      %p110 = por %p108, %p109
      %p112 = scmp.ne.s32.totalorder %s97, %s111
      %p113 = scmp.eq.s32.totalorder %s29, 0
      %p114 = por %p112, %p113
      %s116 = sadd.s32 %s115, 1
      %p119 = scmp.eq.s32.totalorder %s23, 1
      %p120 = scmp.ne.s32.totalorder %s115, %s117
      %p121 = scmp.eq.s32.totalorder %s23, 0
      %p122 = por %p120, %p121
      %p123 = scmp.ne.s32.totalorder %s115, %s117
      %p124 = scmp.eq.s32.totalorder %s28, 1
      %p125 = por %p123, %p124
      %p126 = scmp.ne.s32.totalorder %s117, %s118
      %p127 = scmp.eq.s32.totalorder %s28, 0
      %p128 = por %p126, %p127
      %p129 = scmp.ne.s32.totalorder %s117, %s118
      %p130 = scmp.eq.s32.totalorder %s29, 1
      %p131 = por %p129, %p130
      %p133 = scmp.ne.s32.totalorder %s118, %s132
      %p134 = scmp.eq.s32.totalorder %s29, 0
      %p135 = por %p133, %p134
      %s137 = sadd.s32 %s136, 1
      %p140 = scmp.eq.s32.totalorder %s23, 1
      %p141 = scmp.ne.s32.totalorder %s136, %s138
      %p142 = scmp.eq.s32.totalorder %s23, 0
      %p143 = por %p141, %p142
      %p144 = scmp.ne.s32.totalorder %s136, %s138
      %p145 = scmp.eq.s32.totalorder %s28, 1
      %p146 = por %p144, %p145
      %p147 = scmp.ne.s32.totalorder %s138, %s139
      %p148 = scmp.eq.s32.totalorder %s28, 0
      %p149 = por %p147, %p148
      %p150 = scmp.ne.s32.totalorder %s138, %s139
      %p151 = scmp.eq.s32.totalorder %s29, 1
      %p152 = por %p150, %p151
      %p154 = scmp.ne.s32.totalorder %s139, %s153
      %p155 = scmp.eq.s32.totalorder %s29, 0
      %p156 = por %p154, %p155
      %s158 = sadd.s32 %s157, 1
      %p161 = scmp.eq.s32.totalorder %s23, 1
      %p162 = scmp.ne.s32.totalorder %s157, %s159
      %p163 = scmp.eq.s32.totalorder %s23, 0
      %p164 = por %p162, %p163
      %p165 = scmp.ne.s32.totalorder %s157, %s159
      %p166 = scmp.eq.s32.totalorder %s28, 1
      %p167 = por %p165, %p166
      %p168 = scmp.ne.s32.totalorder %s159, %s160
      %p169 = scmp.eq.s32.totalorder %s28, 0
      %p170 = por %p168, %p169
      %p171 = scmp.ne.s32.totalorder %s159, %s160
      %p172 = scmp.eq.s32.totalorder %s29, 1
      %p173 = por %p171, %p172
      %p175 = scmp.ne.s32.totalorder %s160, %s174
      %p176 = scmp.eq.s32.totalorder %s29, 0
      %p177 = por %p175, %p176
      %s179 = sadd.s32 %s178, 1
      %p182 = scmp.eq.s32.totalorder %s23, 1
      %p183 = scmp.ne.s32.totalorder %s178, %s180
      %p184 = scmp.eq.s32.totalorder %s23, 0
      %p185 = por %p183, %p184
      %p186 = scmp.ne.s32.totalorder %s178, %s180
      %p187 = scmp.eq.s32.totalorder %s28, 1
      %p188 = por %p186, %p187
      %p189 = scmp.ne.s32.totalorder %s180, %s181
      %p190 = scmp.eq.s32.totalorder %s28, 0
      %p191 = por %p189, %p190
      %p192 = scmp.ne.s32.totalorder %s180, %s181
      %p193 = scmp.eq.s32.totalorder %s29, 1
      %p194 = por %p192, %p193
      %p196 = scmp.ne.s32.totalorder %s181, %s195
      %p197 = scmp.eq.s32.totalorder %s29, 0
      %p198 = por %p196, %p197
      %s200 = sadd.s32 %s199, 1
      %p203 = scmp.eq.s32.totalorder %s23, 1
      %p204 = scmp.ne.s32.totalorder %s199, %s201
      %p205 = scmp.eq.s32.totalorder %s23, 0
      %p206 = por %p204, %p205
      %p207 = scmp.ne.s32.totalorder %s199, %s201
      %p208 = scmp.eq.s32.totalorder %s28, 1
      %p209 = por %p207, %p208
      %p210 = scmp.ne.s32.totalorder %s201, %s202
      %p211 = scmp.eq.s32.totalorder %s28, 0
      %p212 = por %p210, %p211
      %p213 = scmp.ne.s32.totalorder %s201, %s202
      %p214 = scmp.eq.s32.totalorder %s29, 1
      %p215 = por %p213, %p214
      %p217 = scmp.ne.s32.totalorder %s202, %s216
      %p218 = scmp.eq.s32.totalorder %s29, 0
      %p219 = por %p217, %p218
      %s221 = sadd.s32 %s220, 1
      %p224 = scmp.eq.s32.totalorder %s23, 1
      %p225 = scmp.ne.s32.totalorder %s220, %s222
      %p226 = scmp.eq.s32.totalorder %s23, 0
      %p227 = por %p225, %p226
      %p228 = scmp.ne.s32.totalorder %s220, %s222
      %p229 = scmp.eq.s32.totalorder %s28, 1
      %p230 = por %p228, %p229
      %p231 = scmp.ne.s32.totalorder %s222, %s223
      %p232 = scmp.eq.s32.totalorder %s28, 0
      %p233 = por %p231, %p232
      %p234 = scmp.ne.s32.totalorder %s222, %s223
      %p235 = scmp.eq.s32.totalorder %s29, 1
      %p236 = por %p234, %p235
      %p238 = scmp.ne.s32.totalorder %s223, %s237
      %p239 = scmp.eq.s32.totalorder %s29, 0
      %p240 = por %p238, %p239
      %s242 = sadd.s32 %s241, 1
      %p245 = scmp.eq.s32.totalorder %s23, 1
      %p246 = scmp.ne.s32.totalorder %s241, %s243
      %p247 = scmp.eq.s32.totalorder %s23, 0
      %p248 = por %p246, %p247
      %p249 = scmp.ne.s32.totalorder %s241, %s243
      %p250 = scmp.eq.s32.totalorder %s28, 1
      %p251 = por %p249, %p250
      %p252 = scmp.ne.s32.totalorder %s243, %s244
      %p253 = scmp.eq.s32.totalorder %s28, 0
      %p254 = por %p252, %p253
      %p255 = scmp.ne.s32.totalorder %s243, %s244
      %p256 = scmp.eq.s32.totalorder %s29, 1
      %p257 = por %p255, %p256
      %p259 = scmp.ne.s32.totalorder %s244, %s258
      %p260 = scmp.eq.s32.totalorder %s29, 0
      %p261 = por %p259, %p260
      %s263 = sadd.s32 %s262, 1
      %p266 = scmp.eq.s32.totalorder %s23, 1
      %p267 = scmp.ne.s32.totalorder %s262, %s264
      %p268 = scmp.eq.s32.totalorder %s23, 0
      %p269 = por %p267, %p268
      %p270 = scmp.ne.s32.totalorder %s262, %s264
      %p271 = scmp.eq.s32.totalorder %s28, 1
      %p272 = por %p270, %p271
      %p273 = scmp.ne.s32.totalorder %s264, %s265
      %p274 = scmp.eq.s32.totalorder %s28, 0
      %p275 = por %p273, %p274
      %p276 = scmp.ne.s32.totalorder %s264, %s265
      %p277 = scmp.eq.s32.totalorder %s29, 1
      %p278 = por %p276, %p277
      %p280 = scmp.ne.s32.totalorder %s265, %s279
      %p281 = scmp.eq.s32.totalorder %s29, 0
      %p282 = por %p280, %p281
      %s283 = ssub.s32 %s23, %s30
      %p284 = scmp.eq.s32.totalorder %s283, 0
      %s286 = sadd.s32 %s285, 1
      %s287 = scalar_select %p284, %s285, %s286
      %p290 = pneg %p284
      %p291 = scmp.eq.s32.totalorder %s23, 1
      %p292 = por %p290, %p291
      %p293 = scmp.ne.s32.totalorder %s285, %s288
      %p294 = scmp.eq.s32.totalorder %s23, 0
      %p295 = por %p293, %p294
      %p296 = scmp.ne.s32.totalorder %s285, %s288
      %p297 = scmp.eq.s32.totalorder %s28, 1
      %p298 = por %p296, %p297
      %p299 = scmp.ne.s32.totalorder %s288, %s289
      %p300 = scmp.eq.s32.totalorder %s28, 0
      %p301 = por %p299, %p300
      %p302 = scmp.ne.s32.totalorder %s288, %s289
      %p303 = scmp.eq.s32.totalorder %s29, 1
      %p304 = por %p302, %p303
      %p306 = scmp.ne.s32.totalorder %s289, %s305
      %p307 = scmp.eq.s32.totalorder %s29, 0
      %p308 = por %p306, %p307
      %s309 = ssub.s32 %s23, %s30
      %p310 = scmp.eq.s32.totalorder %s309, 0
      %s312 = sadd.s32 %s311, 1
      %s313 = scalar_select %p310, %s311, %s312
      %p316 = pneg %p310
      %p317 = scmp.eq.s32.totalorder %s23, 1
      %p318 = por %p316, %p317
      %p319 = scmp.ne.s32.totalorder %s311, %s314
      %p320 = scmp.eq.s32.totalorder %s23, 0
      %p321 = por %p319, %p320
      %p322 = scmp.ne.s32.totalorder %s311, %s314
      %p323 = scmp.eq.s32.totalorder %s28, 1
      %p324 = por %p322, %p323
      %p325 = scmp.ne.s32.totalorder %s314, %s315
      %p326 = scmp.eq.s32.totalorder %s28, 0
      %p327 = por %p325, %p326
      %p328 = scmp.ne.s32.totalorder %s314, %s315
      %p329 = scmp.eq.s32.totalorder %s29, 1
      %p330 = por %p328, %p329
      %p332 = scmp.ne.s32.totalorder %s315, %s331
      %p333 = scmp.eq.s32.totalorder %s29, 0
      %p334 = por %p332, %p333
      %s335 = ssub.s32 %s23, %s30
      %p336 = scmp.eq.s32.totalorder %s335, 0
      %s338 = sadd.s32 %s337, 1
      %s339 = scalar_select %p336, %s337, %s338
      %p342 = pneg %p336
      %p343 = scmp.eq.s32.totalorder %s23, 1
      %p344 = por %p342, %p343
      %p345 = scmp.ne.s32.totalorder %s337, %s340
      %p346 = scmp.eq.s32.totalorder %s23, 0
      %p347 = por %p345, %p346
      %p348 = scmp.ne.s32.totalorder %s337, %s340
      %p349 = scmp.eq.s32.totalorder %s28, 1
      %p350 = por %p348, %p349
      %p351 = scmp.ne.s32.totalorder %s340, %s341
      %p352 = scmp.eq.s32.totalorder %s28, 0
      %p353 = por %p351, %p352
      %p354 = scmp.ne.s32.totalorder %s340, %s341
      %p355 = scmp.eq.s32.totalorder %s29, 1
      %p356 = por %p354, %p355
      %p358 = scmp.ne.s32.totalorder %s341, %s357
      %p359 = scmp.eq.s32.totalorder %s29, 0
      %p360 = por %p358, %p359
      %p361 = scmp.le.s32.totalorder 1, %s23
      %p362 = scmp.lt.s32.totalorder %s23, 3
      %p363 = pnand %p361, %p362
      %p364 = pneg %p363
      // Predicated region
      $region9: #{net_forward.1} parent=5 // pred_check
        _
      $region10: #{net_forward.1} parent=5 // pred_check_branch
        %366 = sbr.rel (%p363) target = $region12
      $region11: #{net_forward.1} parent=5 // pred_region
        %s367 = ssub.s32 %s23, 1
        // Predicated region
        $region13: #{net_forward.1} parent=11 // pred_check
          %p368 = pneg %p44
        $region14: #{net_forward.1} parent=11 // pred_check_branch
          %370 = sbr.rel (%p368) target = $region16
        $region15: #{net_forward.1} parent=11 // pred_region
          _
        $region16: #{net_forward.1} parent=11 // pred_fallthru
          _
        // Predicated region
        $region17: #{net_forward.1} parent=11 // pred_check
          %p371 = pneg %p65
        $region18: #{net_forward.1} parent=11 // pred_check_branch
          %373 = sbr.rel (%p371) target = $region20
        $region19: #{net_forward.1} parent=11 // pred_region
          _
        $region20: #{net_forward.1} parent=11 // pred_fallthru
          _
        // Predicated region
        $region21: #{net_forward.1} parent=11 // pred_check
          %p374 = pneg %p86
        $region22: #{net_forward.1} parent=11 // pred_check_branch
          %376 = sbr.rel (%p374) target = $region24
        $region23: #{net_forward.1} parent=11 // pred_region
          _
        $region24: #{net_forward.1} parent=11 // pred_fallthru
          _
        // Predicated region
        $region25: #{net_forward.1} parent=11 // pred_check
          %p377 = pneg %p107
        $region26: #{net_forward.1} parent=11 // pred_check_branch
          %379 = sbr.rel (%p377) target = $region28
        $region27: #{net_forward.1} parent=11 // pred_region
          _
        $region28: #{net_forward.1} parent=11 // pred_fallthru
          _
        // Predicated region
        $region29: #{net_forward.1} parent=11 // pred_check
          %p380 = pneg %p128
        $region30: #{net_forward.1} parent=11 // pred_check_branch
          %382 = sbr.rel (%p380) target = $region32
        $region31: #{net_forward.1} parent=11 // pred_region
          _
        $region32: #{net_forward.1} parent=11 // pred_fallthru
          _
        // Predicated region
        $region33: #{net_forward.1} parent=11 // pred_check
          %p383 = pneg %p149
        $region34: #{net_forward.1} parent=11 // pred_check_branch
          %385 = sbr.rel (%p383) target = $region36
        $region35: #{net_forward.1} parent=11 // pred_region
          _
        $region36: #{net_forward.1} parent=11 // pred_fallthru
          _
        // Predicated region
        $region37: #{net_forward.1} parent=11 // pred_check
          %p386 = pneg %p170
        $region38: #{net_forward.1} parent=11 // pred_check_branch
          %388 = sbr.rel (%p386) target = $region40
        $region39: #{net_forward.1} parent=11 // pred_region
          _
        $region40: #{net_forward.1} parent=11 // pred_fallthru
          _
        // Predicated region
        $region41: #{net_forward.1} parent=11 // pred_check
          %p389 = pneg %p191
        $region42: #{net_forward.1} parent=11 // pred_check_branch
          %391 = sbr.rel (%p389) target = $region44
        $region43: #{net_forward.1} parent=11 // pred_region
          _
        $region44: #{net_forward.1} parent=11 // pred_fallthru
          _
        // Predicated region
        $region45: #{net_forward.1} parent=11 // pred_check
          %p392 = pneg %p212
        $region46: #{net_forward.1} parent=11 // pred_check_branch
          %394 = sbr.rel (%p392) target = $region48
        $region47: #{net_forward.1} parent=11 // pred_region
          _
        $region48: #{net_forward.1} parent=11 // pred_fallthru
          _
        // Predicated region
        $region49: #{net_forward.1} parent=11 // pred_check
          %p395 = pneg %p233
        $region50: #{net_forward.1} parent=11 // pred_check_branch
          %397 = sbr.rel (%p395) target = $region52
        $region51: #{net_forward.1} parent=11 // pred_region
          _
        $region52: #{net_forward.1} parent=11 // pred_fallthru
          _
        // Predicated region
        $region53: #{net_forward.1} parent=11 // pred_check
          %p398 = pneg %p254
        $region54: #{net_forward.1} parent=11 // pred_check_branch
          %400 = sbr.rel (%p398) target = $region56
        $region55: #{net_forward.1} parent=11 // pred_region
          _
        $region56: #{net_forward.1} parent=11 // pred_fallthru
          _
        // Predicated region
        $region57: #{net_forward.1} parent=11 // pred_check
          %p401 = pneg %p275
        $region58: #{net_forward.1} parent=11 // pred_check_branch
          %403 = sbr.rel (%p401) target = $region60
        $region59: #{net_forward.1} parent=11 // pred_region
          _
        $region60: #{net_forward.1} parent=11 // pred_fallthru
          _
      $region12: #{net_forward.1} parent=5 // pred_fallthru
        _
      %p404 = scmp.lt.s32.totalorder %s23, 2
      // Predicated region
      $region61: #{net_forward.1} parent=5 // pred_check
        %p405 = pneg %p404
      $region62: #{net_forward.1} parent=5 // pred_check_branch
        %407 = sbr.rel (%p405) target = $region64
      $region63: #{net_forward.1} parent=5 // pred_region
        // Predicated region
        $region65: #{net_forward.1} parent=63 // pred_check
          %p408 = pneg %p295
        $region66: #{net_forward.1} parent=63 // pred_check_branch
          %410 = sbr.rel (%p408) target = $region68
        $region67: #{net_forward.1} parent=63 // pred_region
          %s411 = sand.u32 %s285, 1
          %s412 = sand.u32 %s285, 1
          %s413 = smul.addr %s412, 1408
          %s414 = scalar_lea.vmem [#allocation3], %s413
          %s415 = smul.u32 11, %s23
          %s416 = smul.addr %s415, 4
          %s417 = scalar_lea.vmem %s12, %s416
          // Predicated region
          $region69: #{net_forward.1} parent=67 // pred_check
            _
          $region70: #{net_forward.1} parent=67 // pred_check_branch
            %419 = sbr.rel (0) target = $region72
          $region71: #{net_forward.1} parent=67 // pred_region
            // Predicated region
            $region73: #{net_forward.1} parent=71 // pred_check
              _
            $region74: #{net_forward.1} parent=71 // pred_check_branch
              %421 = sbr.rel (0) target = $region76
            $region75: #{net_forward.1} parent=71 // pred_region
              %s422 = scalar_lea.vmem %s417, 40
              %s423 = scalar_lea.vmem %s414, 40 [#allocation3]
              loop: start=0, step=1, limit=1
              $region77: #{net_forward.1} parent=75 // loop_pre_header
                _
              $region78: #{net_forward.1} parent=75 // loop_header
                %s425 = sphi 0, %s429
                %p426 = scmp.ge.s32.totalorder %s425, 1
                %s430 = sphi %s417, %s417
                %s431 = sphi %s414, %s414
              $region79: #{net_forward.1} parent=75 // loop_header_branch
                %428 = sbr.rel (%p426) target = $region83
              $region80: #{net_forward.1} parent=75 // loop_body
                %v432 = vld [vmem:[%s430] sm:$0xff]
                %433 = vst [vmem:[%s431] sm:$0xff] %v432
                %v434 = vld [vmem:[%s430 + $0x8] sm:$0xff]
                %435 = vst [vmem:[%s431 + $0x8] sm:$0xff] %v434
                %v436 = vld [vmem:[%s430 + $0x10] sm:$0xff]
                %437 = vst [vmem:[%s431 + $0x10] sm:$0xff] %v436
                %v438 = vld [vmem:[%s430 + $0x18] sm:$0xff]
                %439 = vst [vmem:[%s431 + $0x18] sm:$0xff] %v438
                %v440 = vld [vmem:[%s430 + $0x20] sm:$0xff]
                %441 = vst [vmem:[%s431 + $0x20] sm:$0xff] %v440
                %v442 = vld [vmem:[%s430 + $0x58] sm:$0xff]
                %443 = vst [vmem:[%s431 + $0x2c] sm:$0xff] %v442
                %v444 = vld [vmem:[%s430 + $0x60] sm:$0xff]
                %445 = vst [vmem:[%s431 + $0x34] sm:$0xff] %v444
                %v446 = vld [vmem:[%s430 + $0x68] sm:$0xff]
                %447 = vst [vmem:[%s431 + $0x3c] sm:$0xff] %v446
                %v448 = vld [vmem:[%s430 + $0x70] sm:$0xff]
                %449 = vst [vmem:[%s431 + $0x44] sm:$0xff] %v448
                %v450 = vld [vmem:[%s430 + $0x78] sm:$0xff]
                %451 = vst [vmem:[%s431 + $0x4c] sm:$0xff] %v450
                %v452 = vld [vmem:[%s430 + $0xb0] sm:$0xff]
                %453 = vst [vmem:[%s431 + $0x58] sm:$0xff] %v452
                %v454 = vld [vmem:[%s430 + $0xb8] sm:$0xff]
                %455 = vst [vmem:[%s431 + $0x60] sm:$0xff] %v454
                %v456 = vld [vmem:[%s430 + $0xc0] sm:$0xff]
                %457 = vst [vmem:[%s431 + $0x68] sm:$0xff] %v456
                %v458 = vld [vmem:[%s430 + $0xc8] sm:$0xff]
                %459 = vst [vmem:[%s431 + $0x70] sm:$0xff] %v458
                %v460 = vld [vmem:[%s430 + $0xd0] sm:$0xff]
                %461 = vst [vmem:[%s431 + $0x78] sm:$0xff] %v460
                %v462 = vld [vmem:[%s430 + $0x108] sm:$0xff]
                %463 = vst [vmem:[%s431 + $0x84] sm:$0xff] %v462
                %v464 = vld [vmem:[%s430 + $0x110] sm:$0xff]
                %465 = vst [vmem:[%s431 + $0x8c] sm:$0xff] %v464
                %v466 = vld [vmem:[%s430 + $0x118] sm:$0xff]
                %467 = vst [vmem:[%s431 + $0x94] sm:$0xff] %v466
                %v468 = vld [vmem:[%s430 + $0x120] sm:$0xff]
                %469 = vst [vmem:[%s431 + $0x9c] sm:$0xff] %v468
                %v470 = vld [vmem:[%s430 + $0x128] sm:$0xff]
                %471 = vst [vmem:[%s431 + $0xa4] sm:$0xff] %v470
                %v472 = vld [vmem:[%s430 + $0x160] sm:$0xff]
                %473 = vst [vmem:[%s431 + $0xb0] sm:$0xff] %v472
                %v474 = vld [vmem:[%s430 + $0x168] sm:$0xff]
                %475 = vst [vmem:[%s431 + $0xb8] sm:$0xff] %v474
                %v476 = vld [vmem:[%s430 + $0x170] sm:$0xff]
                %477 = vst [vmem:[%s431 + $0xc0] sm:$0xff] %v476
                %v478 = vld [vmem:[%s430 + $0x178] sm:$0xff]
                %479 = vst [vmem:[%s431 + $0xc8] sm:$0xff] %v478
                %v480 = vld [vmem:[%s430 + $0x180] sm:$0xff]
                %481 = vst [vmem:[%s431 + $0xd0] sm:$0xff] %v480
                %v482 = vld [vmem:[%s430 + $0x1b8] sm:$0xff]
                %483 = vst [vmem:[%s431 + $0xdc] sm:$0xff] %v482
                %v484 = vld [vmem:[%s430 + $0x1c0] sm:$0xff]
                %485 = vst [vmem:[%s431 + $0xe4] sm:$0xff] %v484
                %v486 = vld [vmem:[%s430 + $0x1c8] sm:$0xff]
                %487 = vst [vmem:[%s431 + $0xec] sm:$0xff] %v486
                %v488 = vld [vmem:[%s430 + $0x1d0] sm:$0xff]
                %489 = vst [vmem:[%s431 + $0xf4] sm:$0xff] %v488
                %v490 = vld [vmem:[%s430 + $0x1d8] sm:$0xff]
                %491 = vst [vmem:[%s431 + $0xfc] sm:$0xff] %v490
                %v492 = vld [vmem:[%s430 + $0x210] sm:$0xff]
                %493 = vst [vmem:[%s431 + $0x108] sm:$0xff] %v492
                %v494 = vld [vmem:[%s430 + $0x218] sm:$0xff]
                %495 = vst [vmem:[%s431 + $0x110] sm:$0xff] %v494
                %v496 = vld [vmem:[%s430 + $0x220] sm:$0xff]
                %497 = vst [vmem:[%s431 + $0x118] sm:$0xff] %v496
                %v498 = vld [vmem:[%s430 + $0x228] sm:$0xff]
                %499 = vst [vmem:[%s431 + $0x120] sm:$0xff] %v498
                %v500 = vld [vmem:[%s430 + $0x230] sm:$0xff]
                %501 = vst [vmem:[%s431 + $0x128] sm:$0xff] %v500
                %v502 = vld [vmem:[%s430 + $0x268] sm:$0xff]
                %503 = vst [vmem:[%s431 + $0x134] sm:$0xff] %v502
                %v504 = vld [vmem:[%s430 + $0x270] sm:$0xff]
                %505 = vst [vmem:[%s431 + $0x13c] sm:$0xff] %v504
                %v506 = vld [vmem:[%s430 + $0x278] sm:$0xff]
                %507 = vst [vmem:[%s431 + $0x144] sm:$0xff] %v506
                %v508 = vld [vmem:[%s430 + $0x280] sm:$0xff]
                %509 = vst [vmem:[%s431 + $0x14c] sm:$0xff] %v508
                %v510 = vld [vmem:[%s430 + $0x288] sm:$0xff]
                %511 = vst [vmem:[%s431 + $0x154] sm:$0xff] %v510
                %v512 = vld [vmem:[%s430 + $0x2c0] sm:$0xff]
                %513 = vst [vmem:[%s431 + $0x160] sm:$0xff] %v512
                %v514 = vld [vmem:[%s430 + $0x2c8] sm:$0xff]
                %515 = vst [vmem:[%s431 + $0x168] sm:$0xff] %v514
                %v516 = vld [vmem:[%s430 + $0x2d0] sm:$0xff]
                %517 = vst [vmem:[%s431 + $0x170] sm:$0xff] %v516
                %v518 = vld [vmem:[%s430 + $0x2d8] sm:$0xff]
                %519 = vst [vmem:[%s431 + $0x178] sm:$0xff] %v518
                %v520 = vld [vmem:[%s430 + $0x2e0] sm:$0xff]
                %521 = vst [vmem:[%s431 + $0x180] sm:$0xff] %v520
                %v522 = vld [vmem:[%s430 + $0x318] sm:$0xff]
                %523 = vst [vmem:[%s431 + $0x18c] sm:$0xff] %v522
                %v524 = vld [vmem:[%s430 + $0x320] sm:$0xff]
                %525 = vst [vmem:[%s431 + $0x194] sm:$0xff] %v524
                %v526 = vld [vmem:[%s430 + $0x328] sm:$0xff]
                %527 = vst [vmem:[%s431 + $0x19c] sm:$0xff] %v526
                %v528 = vld [vmem:[%s430 + $0x330] sm:$0xff]
                %529 = vst [vmem:[%s431 + $0x1a4] sm:$0xff] %v528
                %v530 = vld [vmem:[%s430 + $0x338] sm:$0xff]
                %531 = vst [vmem:[%s431 + $0x1ac] sm:$0xff] %v530
                %v532 = vld [vmem:[%s430 + $0x370] sm:$0xff]
                %533 = vst [vmem:[%s431 + $0x1b8] sm:$0xff] %v532
                %v534 = vld [vmem:[%s430 + $0x378] sm:$0xff]
                %535 = vst [vmem:[%s431 + $0x1c0] sm:$0xff] %v534
                %v536 = vld [vmem:[%s430 + $0x380] sm:$0xff]
                %537 = vst [vmem:[%s431 + $0x1c8] sm:$0xff] %v536
                %v538 = vld [vmem:[%s430 + $0x388] sm:$0xff]
                %539 = vst [vmem:[%s431 + $0x1d0] sm:$0xff] %v538
                %v540 = vld [vmem:[%s430 + $0x390] sm:$0xff]
                %541 = vst [vmem:[%s431 + $0x1d8] sm:$0xff] %v540
                %v542 = vld [vmem:[%s430 + $0x3c8] sm:$0xff]
                %543 = vst [vmem:[%s431 + $0x1e4] sm:$0xff] %v542
                %v544 = vld [vmem:[%s430 + $0x3d0] sm:$0xff]
                %545 = vst [vmem:[%s431 + $0x1ec] sm:$0xff] %v544
                %v546 = vld [vmem:[%s430 + $0x3d8] sm:$0xff]
                %547 = vst [vmem:[%s431 + $0x1f4] sm:$0xff] %v546
                %v548 = vld [vmem:[%s430 + $0x3e0] sm:$0xff]
                %549 = vst [vmem:[%s431 + $0x1fc] sm:$0xff] %v548
                %v550 = vld [vmem:[%s430 + $0x3e8] sm:$0xff]
                %551 = vst [vmem:[%s431 + $0x204] sm:$0xff] %v550
                %v552 = vld [vmem:[%s430 + $0x420] sm:$0xff]
                %553 = vst [vmem:[%s431 + $0x210] sm:$0xff] %v552
                %v554 = vld [vmem:[%s430 + $0x428] sm:$0xff]
                %555 = vst [vmem:[%s431 + $0x218] sm:$0xff] %v554
                %v556 = vld [vmem:[%s430 + $0x430] sm:$0xff]
                %557 = vst [vmem:[%s431 + $0x220] sm:$0xff] %v556
                %v558 = vld [vmem:[%s430 + $0x438] sm:$0xff]
                %559 = vst [vmem:[%s431 + $0x228] sm:$0xff] %v558
                %v560 = vld [vmem:[%s430 + $0x440] sm:$0xff]
                %561 = vst [vmem:[%s431 + $0x230] sm:$0xff] %v560
                %v562 = vld [vmem:[%s430 + $0x478] sm:$0xff]
                %563 = vst [vmem:[%s431 + $0x23c] sm:$0xff] %v562
                %v564 = vld [vmem:[%s430 + $0x480] sm:$0xff]
                %565 = vst [vmem:[%s431 + $0x244] sm:$0xff] %v564
                %v566 = vld [vmem:[%s430 + $0x488] sm:$0xff]
                %567 = vst [vmem:[%s431 + $0x24c] sm:$0xff] %v566
                %v568 = vld [vmem:[%s430 + $0x490] sm:$0xff]
                %569 = vst [vmem:[%s431 + $0x254] sm:$0xff] %v568
                %v570 = vld [vmem:[%s430 + $0x498] sm:$0xff]
                %571 = vst [vmem:[%s431 + $0x25c] sm:$0xff] %v570
                %v572 = vld [vmem:[%s430 + $0x4d0] sm:$0xff]
                %573 = vst [vmem:[%s431 + $0x268] sm:$0xff] %v572
                %v574 = vld [vmem:[%s430 + $0x4d8] sm:$0xff]
                %575 = vst [vmem:[%s431 + $0x270] sm:$0xff] %v574
                %v576 = vld [vmem:[%s430 + $0x4e0] sm:$0xff]
                %577 = vst [vmem:[%s431 + $0x278] sm:$0xff] %v576
                %v578 = vld [vmem:[%s430 + $0x4e8] sm:$0xff]
                %579 = vst [vmem:[%s431 + $0x280] sm:$0xff] %v578
                %v580 = vld [vmem:[%s430 + $0x4f0] sm:$0xff]
                %581 = vst [vmem:[%s431 + $0x288] sm:$0xff] %v580
                %v582 = vld [vmem:[%s430 + $0x528] sm:$0xff]
                %583 = vst [vmem:[%s431 + $0x294] sm:$0xff] %v582
                %v584 = vld [vmem:[%s430 + $0x530] sm:$0xff]
                %585 = vst [vmem:[%s431 + $0x29c] sm:$0xff] %v584
                %v586 = vld [vmem:[%s430 + $0x538] sm:$0xff]
                %587 = vst [vmem:[%s431 + $0x2a4] sm:$0xff] %v586
                %v588 = vld [vmem:[%s430 + $0x540] sm:$0xff]
                %589 = vst [vmem:[%s431 + $0x2ac] sm:$0xff] %v588
                %v590 = vld [vmem:[%s430 + $0x548] sm:$0xff]
                %591 = vst [vmem:[%s431 + $0x2b4] sm:$0xff] %v590
                %v592 = vld [vmem:[%s430 + $0x580] sm:$0xff]
                %593 = vst [vmem:[%s431 + $0x2c0] sm:$0xff] %v592
                %v594 = vld [vmem:[%s430 + $0x588] sm:$0xff]
                %595 = vst [vmem:[%s431 + $0x2c8] sm:$0xff] %v594
                %v596 = vld [vmem:[%s430 + $0x590] sm:$0xff]
                %597 = vst [vmem:[%s431 + $0x2d0] sm:$0xff] %v596
                %v598 = vld [vmem:[%s430 + $0x598] sm:$0xff]
                %599 = vst [vmem:[%s431 + $0x2d8] sm:$0xff] %v598
                %v600 = vld [vmem:[%s430 + $0x5a0] sm:$0xff]
                %601 = vst [vmem:[%s431 + $0x2e0] sm:$0xff] %v600
                %v602 = vld [vmem:[%s430 + $0x5d8] sm:$0xff]
                %603 = vst [vmem:[%s431 + $0x2ec] sm:$0xff] %v602
                %v604 = vld [vmem:[%s430 + $0x5e0] sm:$0xff]
                %605 = vst [vmem:[%s431 + $0x2f4] sm:$0xff] %v604
                %v606 = vld [vmem:[%s430 + $0x5e8] sm:$0xff]
                %607 = vst [vmem:[%s431 + $0x2fc] sm:$0xff] %v606
                %v608 = vld [vmem:[%s430 + $0x5f0] sm:$0xff]
                %609 = vst [vmem:[%s431 + $0x304] sm:$0xff] %v608
                %v610 = vld [vmem:[%s430 + $0x5f8] sm:$0xff]
                %611 = vst [vmem:[%s431 + $0x30c] sm:$0xff] %v610
                %v612 = vld [vmem:[%s430 + $0x630] sm:$0xff]
                %613 = vst [vmem:[%s431 + $0x318] sm:$0xff] %v612
                %v614 = vld [vmem:[%s430 + $0x638] sm:$0xff]
                %615 = vst [vmem:[%s431 + $0x320] sm:$0xff] %v614
                %v616 = vld [vmem:[%s430 + $0x640] sm:$0xff]
                %617 = vst [vmem:[%s431 + $0x328] sm:$0xff] %v616
                %v618 = vld [vmem:[%s430 + $0x648] sm:$0xff]
                %619 = vst [vmem:[%s431 + $0x330] sm:$0xff] %v618
                %v620 = vld [vmem:[%s430 + $0x650] sm:$0xff]
                %621 = vst [vmem:[%s431 + $0x338] sm:$0xff] %v620
                %v622 = vld [vmem:[%s430 + $0x688] sm:$0xff]
                %623 = vst [vmem:[%s431 + $0x344] sm:$0xff] %v622
                %v624 = vld [vmem:[%s430 + $0x690] sm:$0xff]
                %625 = vst [vmem:[%s431 + $0x34c] sm:$0xff] %v624
                %v626 = vld [vmem:[%s430 + $0x698] sm:$0xff]
                %627 = vst [vmem:[%s431 + $0x354] sm:$0xff] %v626
                %v628 = vld [vmem:[%s430 + $0x6a0] sm:$0xff]
                %629 = vst [vmem:[%s431 + $0x35c] sm:$0xff] %v628
                %v630 = vld [vmem:[%s430 + $0x6a8] sm:$0xff]
                %631 = vst [vmem:[%s431 + $0x364] sm:$0xff] %v630
                %v632 = vld [vmem:[%s430 + $0x6e0] sm:$0xff]
                %633 = vst [vmem:[%s431 + $0x370] sm:$0xff] %v632
                %v634 = vld [vmem:[%s430 + $0x6e8] sm:$0xff]
                %635 = vst [vmem:[%s431 + $0x378] sm:$0xff] %v634
                %v636 = vld [vmem:[%s430 + $0x6f0] sm:$0xff]
                %637 = vst [vmem:[%s431 + $0x380] sm:$0xff] %v636
                %v638 = vld [vmem:[%s430 + $0x6f8] sm:$0xff]
                %639 = vst [vmem:[%s431 + $0x388] sm:$0xff] %v638
                %v640 = vld [vmem:[%s430 + $0x700] sm:$0xff]
                %641 = vst [vmem:[%s431 + $0x390] sm:$0xff] %v640
                %v642 = vld [vmem:[%s430 + $0x738] sm:$0xff]
                %643 = vst [vmem:[%s431 + $0x39c] sm:$0xff] %v642
                %v644 = vld [vmem:[%s430 + $0x740] sm:$0xff]
                %645 = vst [vmem:[%s431 + $0x3a4] sm:$0xff] %v644
                %v646 = vld [vmem:[%s430 + $0x748] sm:$0xff]
                %647 = vst [vmem:[%s431 + $0x3ac] sm:$0xff] %v646
                %v648 = vld [vmem:[%s430 + $0x750] sm:$0xff]
                %649 = vst [vmem:[%s431 + $0x3b4] sm:$0xff] %v648
                %v650 = vld [vmem:[%s430 + $0x758] sm:$0xff]
                %651 = vst [vmem:[%s431 + $0x3bc] sm:$0xff] %v650
                %v652 = vld [vmem:[%s430 + $0x790] sm:$0xff]
                %653 = vst [vmem:[%s431 + $0x3c8] sm:$0xff] %v652
                %v654 = vld [vmem:[%s430 + $0x798] sm:$0xff]
                %655 = vst [vmem:[%s431 + $0x3d0] sm:$0xff] %v654
                %v656 = vld [vmem:[%s430 + $0x7a0] sm:$0xff]
                %657 = vst [vmem:[%s431 + $0x3d8] sm:$0xff] %v656
                %v658 = vld [vmem:[%s430 + $0x7a8] sm:$0xff]
                %659 = vst [vmem:[%s431 + $0x3e0] sm:$0xff] %v658
                %v660 = vld [vmem:[%s430 + $0x7b0] sm:$0xff]
                %661 = vst [vmem:[%s431 + $0x3e8] sm:$0xff] %v660
                %v662 = vld [vmem:[%s430 + $0x7e8] sm:$0xff]
                %663 = vst [vmem:[%s431 + $0x3f4] sm:$0xff] %v662
                %v664 = vld [vmem:[%s430 + $0x7f0] sm:$0xff]
                %665 = vst [vmem:[%s431 + $0x3fc] sm:$0xff] %v664
                %v666 = vld [vmem:[%s430 + $0x7f8] sm:$0xff]
                %667 = vst [vmem:[%s431 + $0x404] sm:$0xff] %v666
                %v668 = vld [vmem:[%s430 + $0x800] sm:$0xff]
                %669 = vst [vmem:[%s431 + $0x40c] sm:$0xff] %v668
                %v670 = vld [vmem:[%s430 + $0x808] sm:$0xff]
                %671 = vst [vmem:[%s431 + $0x414] sm:$0xff] %v670
                %v672 = vld [vmem:[%s430 + $0x840] sm:$0xff]
                %673 = vst [vmem:[%s431 + $0x420] sm:$0xff] %v672
                %v674 = vld [vmem:[%s430 + $0x848] sm:$0xff]
                %675 = vst [vmem:[%s431 + $0x428] sm:$0xff] %v674
                %v676 = vld [vmem:[%s430 + $0x850] sm:$0xff]
                %677 = vst [vmem:[%s431 + $0x430] sm:$0xff] %v676
                %v678 = vld [vmem:[%s430 + $0x858] sm:$0xff]
                %679 = vst [vmem:[%s431 + $0x438] sm:$0xff] %v678
                %v680 = vld [vmem:[%s430 + $0x860] sm:$0xff]
                %681 = vst [vmem:[%s431 + $0x440] sm:$0xff] %v680
                %v682 = vld [vmem:[%s430 + $0x898] sm:$0xff]
                %683 = vst [vmem:[%s431 + $0x44c] sm:$0xff] %v682
                %v684 = vld [vmem:[%s430 + $0x8a0] sm:$0xff]
                %685 = vst [vmem:[%s431 + $0x454] sm:$0xff] %v684
                %v686 = vld [vmem:[%s430 + $0x8a8] sm:$0xff]
                %687 = vst [vmem:[%s431 + $0x45c] sm:$0xff] %v686
                %v688 = vld [vmem:[%s430 + $0x8b0] sm:$0xff]
                %689 = vst [vmem:[%s431 + $0x464] sm:$0xff] %v688
                %v690 = vld [vmem:[%s430 + $0x8b8] sm:$0xff]
                %691 = vst [vmem:[%s431 + $0x46c] sm:$0xff] %v690
                %v692 = vld [vmem:[%s430 + $0x8f0] sm:$0xff]
                %693 = vst [vmem:[%s431 + $0x478] sm:$0xff] %v692
                %v694 = vld [vmem:[%s430 + $0x8f8] sm:$0xff]
                %695 = vst [vmem:[%s431 + $0x480] sm:$0xff] %v694
                %v696 = vld [vmem:[%s430 + $0x900] sm:$0xff]
                %697 = vst [vmem:[%s431 + $0x488] sm:$0xff] %v696
                %v698 = vld [vmem:[%s430 + $0x908] sm:$0xff]
                %699 = vst [vmem:[%s431 + $0x490] sm:$0xff] %v698
                %v700 = vld [vmem:[%s430 + $0x910] sm:$0xff]
                %701 = vst [vmem:[%s431 + $0x498] sm:$0xff] %v700
                %v702 = vld [vmem:[%s430 + $0x948] sm:$0xff]
                %703 = vst [vmem:[%s431 + $0x4a4] sm:$0xff] %v702
                %v704 = vld [vmem:[%s430 + $0x950] sm:$0xff]
                %705 = vst [vmem:[%s431 + $0x4ac] sm:$0xff] %v704
                %v706 = vld [vmem:[%s430 + $0x958] sm:$0xff]
                %707 = vst [vmem:[%s431 + $0x4b4] sm:$0xff] %v706
                %v708 = vld [vmem:[%s430 + $0x960] sm:$0xff]
                %709 = vst [vmem:[%s431 + $0x4bc] sm:$0xff] %v708
                %v710 = vld [vmem:[%s430 + $0x968] sm:$0xff]
                %711 = vst [vmem:[%s431 + $0x4c4] sm:$0xff] %v710
                %v712 = vld [vmem:[%s430 + $0x9a0] sm:$0xff]
                %713 = vst [vmem:[%s431 + $0x4d0] sm:$0xff] %v712
                %v714 = vld [vmem:[%s430 + $0x9a8] sm:$0xff]
                %715 = vst [vmem:[%s431 + $0x4d8] sm:$0xff] %v714
                %v716 = vld [vmem:[%s430 + $0x9b0] sm:$0xff]
                %717 = vst [vmem:[%s431 + $0x4e0] sm:$0xff] %v716
                %v718 = vld [vmem:[%s430 + $0x9b8] sm:$0xff]
                %719 = vst [vmem:[%s431 + $0x4e8] sm:$0xff] %v718
                %v720 = vld [vmem:[%s430 + $0x9c0] sm:$0xff]
                %721 = vst [vmem:[%s431 + $0x4f0] sm:$0xff] %v720
                %v722 = vld [vmem:[%s430 + $0x9f8] sm:$0xff]
                %723 = vst [vmem:[%s431 + $0x4fc] sm:$0xff] %v722
                %v724 = vld [vmem:[%s430 + $0xa00] sm:$0xff]
                %725 = vst [vmem:[%s431 + $0x504] sm:$0xff] %v724
                %v726 = vld [vmem:[%s430 + $0xa08] sm:$0xff]
                %727 = vst [vmem:[%s431 + $0x50c] sm:$0xff] %v726
                %v728 = vld [vmem:[%s430 + $0xa10] sm:$0xff]
                %729 = vst [vmem:[%s431 + $0x514] sm:$0xff] %v728
                %v730 = vld [vmem:[%s430 + $0xa18] sm:$0xff]
                %731 = vst [vmem:[%s431 + $0x51c] sm:$0xff] %v730
                %v732 = vld [vmem:[%s430 + $0xa50] sm:$0xff]
                %733 = vst [vmem:[%s431 + $0x528] sm:$0xff] %v732
                %v734 = vld [vmem:[%s430 + $0xa58] sm:$0xff]
                %735 = vst [vmem:[%s431 + $0x530] sm:$0xff] %v734
                %v736 = vld [vmem:[%s430 + $0xa60] sm:$0xff]
                %737 = vst [vmem:[%s431 + $0x538] sm:$0xff] %v736
                %v738 = vld [vmem:[%s430 + $0xa68] sm:$0xff]
                %739 = vst [vmem:[%s431 + $0x540] sm:$0xff] %v738
                %v740 = vld [vmem:[%s430 + $0xa70] sm:$0xff]
                %741 = vst [vmem:[%s431 + $0x548] sm:$0xff] %v740
                %v742 = vld [vmem:[%s430 + $0xaa8] sm:$0xff]
                %743 = vst [vmem:[%s431 + $0x554] sm:$0xff] %v742
                %v744 = vld [vmem:[%s430 + $0xab0] sm:$0xff]
                %745 = vst [vmem:[%s431 + $0x55c] sm:$0xff] %v744
                %v746 = vld [vmem:[%s430 + $0xab8] sm:$0xff]
                %747 = vst [vmem:[%s431 + $0x564] sm:$0xff] %v746
                %v748 = vld [vmem:[%s430 + $0xac0] sm:$0xff]
                %749 = vst [vmem:[%s431 + $0x56c] sm:$0xff] %v748
                %v750 = vld [vmem:[%s430 + $0xac8] sm:$0xff]
                %751 = vst [vmem:[%s431 + $0x574] sm:$0xff] %v750
              $region81: #{net_forward.1} parent=75 // loop_footer
                %s429 = sadd.s32 1, %s425
              $region82: #{net_forward.1} parent=75 // loop_footer_branch
                %424 = sbr.rel target = $region78
              $region83: #{net_forward.1} parent=75 // loop_exit
                _
              %s753 = ssub.s32 16, 1
              loop: start=0, step=1, limit=1
              $region84: #{net_forward.1} parent=75 // loop_pre_header
                _
              $region85: #{net_forward.1} parent=75 // loop_header
                %s755 = sphi 0, %s759
                %p756 = scmp.ge.s32.totalorder %s755, 1
                %s760 = sphi %s422, %s422
                %s761 = sphi %s423, %s423
              $region86: #{net_forward.1} parent=75 // loop_header_branch
                %758 = sbr.rel (%p756) target = $region90
              $region87: #{net_forward.1} parent=75 // loop_body
                %v762 = vld [vmem:[%s760] sm:%s753]
                %763 = vst [vmem:[%s761] sm:%s753] %v762
                %v764 = vld [vmem:[%s760 + $0x58] sm:%s753]
                %765 = vst [vmem:[%s761 + $0x2c] sm:%s753] %v764
                %v766 = vld [vmem:[%s760 + $0xb0] sm:%s753]
                %767 = vst [vmem:[%s761 + $0x58] sm:%s753] %v766
                %v768 = vld [vmem:[%s760 + $0x108] sm:%s753]
                %769 = vst [vmem:[%s761 + $0x84] sm:%s753] %v768
                %v770 = vld [vmem:[%s760 + $0x160] sm:%s753]
                %771 = vst [vmem:[%s761 + $0xb0] sm:%s753] %v770
                %v772 = vld [vmem:[%s760 + $0x1b8] sm:%s753]
                %773 = vst [vmem:[%s761 + $0xdc] sm:%s753] %v772
                %v774 = vld [vmem:[%s760 + $0x210] sm:%s753]
                %775 = vst [vmem:[%s761 + $0x108] sm:%s753] %v774
                %v776 = vld [vmem:[%s760 + $0x268] sm:%s753]
                %777 = vst [vmem:[%s761 + $0x134] sm:%s753] %v776
                %v778 = vld [vmem:[%s760 + $0x2c0] sm:%s753]
                %779 = vst [vmem:[%s761 + $0x160] sm:%s753] %v778
                %v780 = vld [vmem:[%s760 + $0x318] sm:%s753]
                %781 = vst [vmem:[%s761 + $0x18c] sm:%s753] %v780
                %v782 = vld [vmem:[%s760 + $0x370] sm:%s753]
                %783 = vst [vmem:[%s761 + $0x1b8] sm:%s753] %v782
                %v784 = vld [vmem:[%s760 + $0x3c8] sm:%s753]
                %785 = vst [vmem:[%s761 + $0x1e4] sm:%s753] %v784
                %v786 = vld [vmem:[%s760 + $0x420] sm:%s753]
                %787 = vst [vmem:[%s761 + $0x210] sm:%s753] %v786
                %v788 = vld [vmem:[%s760 + $0x478] sm:%s753]
                %789 = vst [vmem:[%s761 + $0x23c] sm:%s753] %v788
                %v790 = vld [vmem:[%s760 + $0x4d0] sm:%s753]
                %791 = vst [vmem:[%s761 + $0x268] sm:%s753] %v790
                %v792 = vld [vmem:[%s760 + $0x528] sm:%s753]
                %793 = vst [vmem:[%s761 + $0x294] sm:%s753] %v792
                %v794 = vld [vmem:[%s760 + $0x580] sm:%s753]
                %795 = vst [vmem:[%s761 + $0x2c0] sm:%s753] %v794
                %v796 = vld [vmem:[%s760 + $0x5d8] sm:%s753]
                %797 = vst [vmem:[%s761 + $0x2ec] sm:%s753] %v796
                %v798 = vld [vmem:[%s760 + $0x630] sm:%s753]
                %799 = vst [vmem:[%s761 + $0x318] sm:%s753] %v798
                %v800 = vld [vmem:[%s760 + $0x688] sm:%s753]
                %801 = vst [vmem:[%s761 + $0x344] sm:%s753] %v800
                %v802 = vld [vmem:[%s760 + $0x6e0] sm:%s753]
                %803 = vst [vmem:[%s761 + $0x370] sm:%s753] %v802
                %v804 = vld [vmem:[%s760 + $0x738] sm:%s753]
                %805 = vst [vmem:[%s761 + $0x39c] sm:%s753] %v804
                %v806 = vld [vmem:[%s760 + $0x790] sm:%s753]
                %807 = vst [vmem:[%s761 + $0x3c8] sm:%s753] %v806
                %v808 = vld [vmem:[%s760 + $0x7e8] sm:%s753]
                %809 = vst [vmem:[%s761 + $0x3f4] sm:%s753] %v808
                %v810 = vld [vmem:[%s760 + $0x840] sm:%s753]
                %811 = vst [vmem:[%s761 + $0x420] sm:%s753] %v810
                %v812 = vld [vmem:[%s760 + $0x898] sm:%s753]
                %813 = vst [vmem:[%s761 + $0x44c] sm:%s753] %v812
                %v814 = vld [vmem:[%s760 + $0x8f0] sm:%s753]
                %815 = vst [vmem:[%s761 + $0x478] sm:%s753] %v814
                %v816 = vld [vmem:[%s760 + $0x948] sm:%s753]
                %817 = vst [vmem:[%s761 + $0x4a4] sm:%s753] %v816
                %v818 = vld [vmem:[%s760 + $0x9a0] sm:%s753]
                %819 = vst [vmem:[%s761 + $0x4d0] sm:%s753] %v818
                %v820 = vld [vmem:[%s760 + $0x9f8] sm:%s753]
                %821 = vst [vmem:[%s761 + $0x4fc] sm:%s753] %v820
                %v822 = vld [vmem:[%s760 + $0xa50] sm:%s753]
                %823 = vst [vmem:[%s761 + $0x528] sm:%s753] %v822
                %v824 = vld [vmem:[%s760 + $0xaa8] sm:%s753]
                %825 = vst [vmem:[%s761 + $0x554] sm:%s753] %v824
              $region88: #{net_forward.1} parent=75 // loop_footer
                %s759 = sadd.s32 1, %s755
              $region89: #{net_forward.1} parent=75 // loop_footer_branch
                %754 = sbr.rel target = $region85
              $region90: #{net_forward.1} parent=75 // loop_exit
                _
            $region76: #{net_forward.1} parent=71 // pred_fallthru
              _
          $region72: #{net_forward.1} parent=67 // pred_fallthru
            _
          %826 = vnop
        $region68: #{net_forward.1} parent=63 // pred_fallthru
          _
        // Predicated region
        $region91: #{net_forward.1} parent=63 // pred_check
          %p827 = pneg %p321
        $region92: #{net_forward.1} parent=63 // pred_check_branch
          %829 = sbr.rel (%p827) target = $region94
        $region93: #{net_forward.1} parent=63 // pred_region
          %s830 = smul.u32 11, %s23
          %p831 = scmp.lt.s32.totalorder %s830, 21
          %s832 = scalar_select %p831, %s830, 21
          %s833 = scalar_lea.vmem %s13, %s832
          %s834 = smul.u32 11, %s23
        $region94: #{net_forward.1} parent=63 // pred_fallthru
          _
      $region64: #{net_forward.1} parent=5 // pred_fallthru
        _
      %p835 = scmp.le.s32.totalorder 1, %s23
      %p836 = scmp.lt.s32.totalorder %s23, 3
      %p837 = pnand %p835, %p836
      %p838 = pneg %p837
      // Predicated region
      $region95: #{net_forward.1} parent=5 // pred_check
        _
      $region96: #{net_forward.1} parent=5 // pred_check_branch
        %840 = sbr.rel (%p837) target = $region98
      $region97: #{net_forward.1} parent=5 // pred_region
        %s841 = ssub.s32 %s23, 1
        %s842 = sand.u32 %s288, 1
        %s843 = sand.u32 %s288, 1
        %s844 = smul.addr %s843, 1408
        %s845 = scalar_lea.vmem [#allocation3], %s844
        // Predicated region
        $region99: #{net_forward.1} parent=97 // pred_check
          %p846 = pneg %p301
        $region100: #{net_forward.1} parent=97 // pred_check_branch
          %848 = sbr.rel (%p846) target = $region102
        $region101: #{net_forward.1} parent=97 // pred_region
          _
        $region102: #{net_forward.1} parent=97 // pred_fallthru
          _
        %p849 = pneg %p44
        %p850 = pneg %p41
        %p851 = pneg %p65
        %p852 = pneg %p62
        %p853 = pneg %p86
        %p854 = pneg %p83
        %p855 = pneg %p107
        %p856 = pneg %p104
        %p857 = pneg %p128
        %p858 = pneg %p125
        %p859 = pneg %p149
        %p860 = pneg %p146
        %p861 = pneg %p170
        %p862 = pneg %p167
        %p863 = pneg %p191
        %p864 = pneg %p188
        %p865 = pneg %p212
        %p866 = pneg %p209
        %p867 = pneg %p233
        %p868 = pneg %p230
        %p869 = pneg %p254
        %p870 = pneg %p251
        %p871 = pneg %p275
        %p872 = pneg %p272
        %s873 = sand.u32 %s288, 1
        %s874 = sand.u32 %s288, 1
        %s875 = smul.addr %s874, 1408
        %s876 = scalar_lea.vmem [#allocation3], %s875
        %p877 = pneg %p301
        %p878 = pneg %p298
        %s879 = smul.u32 11, %s28
        %p880 = scmp.lt.s32.totalorder %s879, 21
        %s881 = scalar_select %p880, %s879, 21
        %s882 = scalar_lea.vmem %s13, %s881
        %p883 = pneg %p327
        %p884 = pneg %p324
        %p885 = pneg %p353
        %p886 = pneg %p350
        %s887 = sand.u32 %s340, 1
        %s888 = scalar_lea.sflag [#allocation5], %s887
        %s889 = sand.u32 %s340, 1
        %s890 = smul.addr %s889, 22
        %s891 = scalar_lea.vmem [#allocation4], %s890
        %s892 = smul.u32 11, %s28
        %s893 = smul.u32 11, %s28
        %p894 = scmp.lt.s32.totalorder %s893, 21
        %s895 = scalar_select %p894, %s893, 21
        %s896 = scalar_lea.vmem %s13, %s895
        %s897 = smul.u32 11, %s28
        %s898 = smul.u32 11, %s28
        %p899 = scmp.eq.s32.totalorder %s28, 0
        // Predicated region
        $region103: #{net_forward.1} parent=97 // pred_check
          %p900 = pneg %p899
        $region104: #{net_forward.1} parent=97 // pred_check_branch
          %902 = sbr.rel (%p900) target = $region106
        $region105: #{net_forward.1} parent=97 // pred_region
          %v903 = vld [vmem:[%s0] sm:$0xff]
          %v904 = vld [vmem:[%s0 + $0x8] sm:$0xff]
          %v905 = vld [vmem:[%s0 + $0x10] sm:$0xff]
          %v906 = vld [vmem:[%s0 + $0x18] sm:$0xff]
          %v907 = vld [vmem:[%s2] sm:$0xff]
          %v908 = vld [vmem:[%s2 + $0x8] sm:$0xff]
          %v909 = vld [vmem:[%s2 + $0x10] sm:$0xff]
          %v910 = vld [vmem:[%s2 + $0x18] sm:$0xff]
          %v911 = vld [vmem:[%s2 + $0x20] sm:$0xff]
          %v912 = vld [vmem:[%s2 + $0x28] sm:$0xff]
          %v913 = vld [vmem:[%s2 + $0x30] sm:$0xff]
          %v914 = vld [vmem:[%s2 + $0x38] sm:$0xff]
          %v915 = vld [vmem:[%s2 + $0x40] sm:$0xff]
          %v916 = vld [vmem:[%s2 + $0x48] sm:$0xff]
          %v917 = vld [vmem:[%s2 + $0x50] sm:$0xff]
          %v918 = vld [vmem:[%s2 + $0x58] sm:$0xff]
          %v919 = vld [vmem:[%s2 + $0x60] sm:$0xff]
          %v920 = vld [vmem:[%s2 + $0x68] sm:$0xff]
          %v921 = vld [vmem:[%s2 + $0x70] sm:$0xff]
          %v922 = vld [vmem:[%s2 + $0x78] sm:$0xff]
          %v923 = vld [vmem:[%s2 + $0x80] sm:$0xff]
          %v924 = vld [vmem:[%s2 + $0x88] sm:$0xff]
          %v925 = vld [vmem:[%s2 + $0x90] sm:$0xff]
          %v926 = vld [vmem:[%s2 + $0x98] sm:$0xff]
          %v927 = vld [vmem:[%s2 + $0xa0] sm:$0xff]
          %v928 = vld [vmem:[%s2 + $0xa8] sm:$0xff]
          %v929 = vld [vmem:[%s2 + $0xb0] sm:$0xff]
          %v930 = vld [vmem:[%s2 + $0xb8] sm:$0xff]
          %v931 = vld [vmem:[%s2 + $0xc0] sm:$0xff]
          %v932 = vld [vmem:[%s2 + $0xc8] sm:$0xff]
          %v933 = vld [vmem:[%s2 + $0xd0] sm:$0xff]
          %v934 = vld [vmem:[%s2 + $0xd8] sm:$0xff]
          %v935 = vld [vmem:[%s2 + $0xe0] sm:$0xff]
          %v936 = vld [vmem:[%s2 + $0xe8] sm:$0xff]
          %v937 = vld [vmem:[%s2 + $0xf0] sm:$0xff]
          %v938 = vld [vmem:[%s2 + $0xf8] sm:$0xff]
          %v939 = vld [vmem:[%s3] sm:$0x3]
          %v941 = vperm.slane %v939, 0
          %v942 = vperm.slane %v939, 1
          %945 = vmatpush.msra.mxu0 %v937
          %946 = vmatpush.msra.mxu0 %v935
          %947 = vmatpush.msra.mxu0 %v933
          %948 = vmatpush.msra.mxu0 %v931
          %949 = vmatpush.msra.mxu0 %v929
          %950 = vmatpush.msra.mxu0 %v927
          %951 = vmatpush.msra.mxu0 %v925
          %952 = vmatpush.msra.mxu0 %v923
          %953 = vmatpush.msra.mxu0 %v921
          %954 = vmatpush.msra.mxu0 %v919
          %955 = vmatpush.msra.mxu0 %v917
          %956 = vmatpush.msra.mxu0 %v915
          %957 = vmatpush.msra.mxu0 %v913
          %958 = vmatpush.msra.mxu0 %v911
          %959 = vmatpush.msra.mxu0 %v909
          %960 = vmatpush.msra.mxu0 %v907
          %961 = vmatmul.f32.gmra.mxu0 %v903
          %v962 = vpop.f32.mrf.mxu0
          %v963 = vadd.f32 %v941, %v962
          %964 = vmatmul.f32.gmra.mxu0 %v904
          %v965 = vpop.f32.mrf.mxu0
          %v966 = vadd.f32 %v941, %v965
          %967 = vmatmul.f32.gmra.mxu0 %v905
          %v968 = vpop.f32.mrf.mxu0
          %v969 = vadd.f32 %v941, %v968
          %970 = vmatmul.f32.gmra.mxu0 %v906
          %v971 = vpop.f32.mrf.mxu0
          %v972 = vadd.f32 %v941, %v971
          %973 = vdwg.mxu0
          %974 = vmatpush.msra.mxu0 %v938
          %975 = vmatpush.msra.mxu0 %v936
          %976 = vmatpush.msra.mxu0 %v934
          %977 = vmatpush.msra.mxu0 %v932
          %978 = vmatpush.msra.mxu0 %v930
          %979 = vmatpush.msra.mxu0 %v928
          %980 = vmatpush.msra.mxu0 %v926
          %981 = vmatpush.msra.mxu0 %v924
          %982 = vmatpush.msra.mxu0 %v922
          %983 = vmatpush.msra.mxu0 %v920
          %984 = vmatpush.msra.mxu0 %v918
          %985 = vmatpush.msra.mxu0 %v916
          %986 = vmatpush.msra.mxu0 %v914
          %987 = vmatpush.msra.mxu0 %v912
          %988 = vmatpush.msra.mxu0 %v910
          %989 = vmatpush.msra.mxu0 %v908
          %990 = vmatmul.f32.gmra.mxu0 %v903
          %v991 = vpop.f32.mrf.mxu0
          %v992 = vadd.f32 %v942, %v991
          %993 = vmatmul.f32.gmra.mxu0 %v904
          %v994 = vpop.f32.mrf.mxu0
          %v995 = vadd.f32 %v942, %v994
          %996 = vmatmul.f32.gmra.mxu0 %v905
          %v997 = vpop.f32.mrf.mxu0
          %v998 = vadd.f32 %v942, %v997
          %999 = vmatmul.f32.gmra.mxu0 %v906
          %v1000 = vpop.f32.mrf.mxu0
          %v1001 = vadd.f32 %v942, %v1000
          %1002 = vdwg.mxu0
          %v1003 = vmul.f32 %v963, 0.5
          %v1004 = vmul.f32 %v992, 0.5
          %v1005 = vmul.f32 %v966, 0.5
          %v1006 = vmul.f32 %v995, 0.5
          %v1007 = vmul.f32 %v969, 0.5
          %v1008 = vmul.f32 %v998, 0.5
          %v1009 = vmul.f32 %v972, 0.5
          %v1010 = vmul.f32 %v1001, 0.5
          %v1011 = vmul.f32 %v963, 0.70710677
          %v1012 = vmul.f32 %v992, 0.70710677
          %v1013 = vmul.f32 %v966, 0.70710677
          %v1014 = vmul.f32 %v995, 0.70710677
          %v1015 = vmul.f32 %v969, 0.70710677
          %v1016 = vmul.f32 %v998, 0.70710677
          %v1017 = vmul.f32 %v972, 0.70710677
          %v1018 = vmul.f32 %v1001, 0.70710677
          %v1019 = vmul.f32 %v1011, %v1011
          %v1020 = vmin.f32 16.0, %v1019
          %v1021 = vmul.f32 %v1020, 2.1237322e-06
          %v1022 = vadd.f32 %v1021, 0.00028619796
          %v1023 = vmul.f32 %v1020, %v1022
          %v1024 = vadd.f32 %v1023, 0.0036580483
          %v1025 = vmul.f32 %v1020, %v1024
          %v1026 = vadd.f32 %v1025, 0.05243302
          %v1027 = vmul.f32 %v1020, %v1026
          %v1028 = vadd.f32 %v1027, 0.18741608
          %v1029 = vmul.f32 %v1020, %v1028
          %v1030 = vadd.f32 %v1029, 1.1283791
          %v1031 = vmul.f32 %v1011, %v1030
          %v1032 = vmul.f32 %v1020, 3.8918573e-05
          %v1033 = vadd.f32 %v1032, 0.001143296
          %v1034 = vmul.f32 %v1020, %v1033
          %v1035 = vadd.f32 %v1034, 0.014752088
          %v1036 = vmul.f32 %v1020, %v1035
          %v1037 = vadd.f32 %v1036, 0.112945676
          %v1038 = vmul.f32 %v1020, %v1037
          %v1039 = vadd.f32 %v1038, 0.4994258
          %v1040 = vmul.f32 %v1020, %v1039
          %v1041 = vadd.f32 %v1040, 1.0
          %v1042 = vrcp.pop %v1041
          %v1043 = vmul.f32 %v1041, %v1042
          %v1044 = vsub.f32 1.0, %v1043
          %v1045 = vmul.f32 %v1042, %v1044
          %v1046 = vadd.f32 %v1042, %v1045
          %vm1047 = vweird.f32 %v1041
          %vm1048 = vweird.f32 %v1042
          %vm1049 = vmor %vm1047, %vm1048
          %v1050 = vsel %vm1049, %v1042, %v1046
          %v1051 = vand.u32 2147483647, %v1041
          %vm1052 = vcmp.eq.f32.partialorder %v1051, 8.507059e+37
          %v1053 = vand.u32 %v1041, 2147483648
          %v1054 = vor.u32 1.1754944e-38, %v1053
          %v1055 = vsel %vm1052, %v1054, %v1050
          %v1056 = vmul.f32 %v1031, %v1055
          %v1057 = vmin.f32 %v1056, 1.0
          %v1058 = vmax.f32 %v1057, -1.0
          %v1059 = vmul.f32 %v1012, %v1012
          %v1060 = vmin.f32 16.0, %v1059
          %v1061 = vmul.f32 %v1060, 2.1237322e-06
          %v1062 = vadd.f32 %v1061, 0.00028619796
          %v1063 = vmul.f32 %v1060, %v1062
          %v1064 = vadd.f32 %v1063, 0.0036580483
          %v1065 = vmul.f32 %v1060, %v1064
          %v1066 = vadd.f32 %v1065, 0.05243302
          %v1067 = vmul.f32 %v1060, %v1066
          %v1068 = vadd.f32 %v1067, 0.18741608
          %v1069 = vmul.f32 %v1060, %v1068
          %v1070 = vadd.f32 %v1069, 1.1283791
          %v1071 = vmul.f32 %v1012, %v1070
          %v1072 = vmul.f32 %v1060, 3.8918573e-05
          %v1073 = vadd.f32 %v1072, 0.001143296
          %v1074 = vmul.f32 %v1060, %v1073
          %v1075 = vadd.f32 %v1074, 0.014752088
          %v1076 = vmul.f32 %v1060, %v1075
          %v1077 = vadd.f32 %v1076, 0.112945676
          %v1078 = vmul.f32 %v1060, %v1077
          %v1079 = vadd.f32 %v1078, 0.4994258
          %v1080 = vmul.f32 %v1060, %v1079
          %v1081 = vadd.f32 %v1080, 1.0
          %v1082 = vrcp.pop %v1081
          %v1083 = vmul.f32 %v1081, %v1082
          %v1084 = vsub.f32 1.0, %v1083
          %v1085 = vmul.f32 %v1082, %v1084
          %v1086 = vadd.f32 %v1082, %v1085
          %vm1087 = vweird.f32 %v1081
          %vm1088 = vweird.f32 %v1082
          %vm1089 = vmor %vm1087, %vm1088
          %v1090 = vsel %vm1089, %v1082, %v1086
          %v1091 = vand.u32 2147483647, %v1081
          %vm1092 = vcmp.eq.f32.partialorder %v1091, 8.507059e+37
          %v1093 = vand.u32 %v1081, 2147483648
          %v1094 = vor.u32 1.1754944e-38, %v1093
          %v1095 = vsel %vm1092, %v1094, %v1090
          %v1096 = vmul.f32 %v1071, %v1095
          %v1097 = vmin.f32 %v1096, 1.0
          %v1098 = vmax.f32 %v1097, -1.0
          %v1099 = vmul.f32 %v1013, %v1013
          %v1100 = vmin.f32 16.0, %v1099
          %v1101 = vmul.f32 %v1100, 2.1237322e-06
          %v1102 = vadd.f32 %v1101, 0.00028619796
          %v1103 = vmul.f32 %v1100, %v1102
          %v1104 = vadd.f32 %v1103, 0.0036580483
          %v1105 = vmul.f32 %v1100, %v1104
          %v1106 = vadd.f32 %v1105, 0.05243302
          %v1107 = vmul.f32 %v1100, %v1106
          %v1108 = vadd.f32 %v1107, 0.18741608
          %v1109 = vmul.f32 %v1100, %v1108
          %v1110 = vadd.f32 %v1109, 1.1283791
          %v1111 = vmul.f32 %v1013, %v1110
          %v1112 = vmul.f32 %v1100, 3.8918573e-05
          %v1113 = vadd.f32 %v1112, 0.001143296
          %v1114 = vmul.f32 %v1100, %v1113
          %v1115 = vadd.f32 %v1114, 0.014752088
          %v1116 = vmul.f32 %v1100, %v1115
          %v1117 = vadd.f32 %v1116, 0.112945676
          %v1118 = vmul.f32 %v1100, %v1117
          %v1119 = vadd.f32 %v1118, 0.4994258
          %v1120 = vmul.f32 %v1100, %v1119
          %v1121 = vadd.f32 %v1120, 1.0
          %v1122 = vrcp.pop %v1121
          %v1123 = vmul.f32 %v1121, %v1122
          %v1124 = vsub.f32 1.0, %v1123
          %v1125 = vmul.f32 %v1122, %v1124
          %v1126 = vadd.f32 %v1122, %v1125
          %vm1127 = vweird.f32 %v1121
          %vm1128 = vweird.f32 %v1122
          %vm1129 = vmor %vm1127, %vm1128
          %v1130 = vsel %vm1129, %v1122, %v1126
          %v1131 = vand.u32 2147483647, %v1121
          %vm1132 = vcmp.eq.f32.partialorder %v1131, 8.507059e+37
          %v1133 = vand.u32 %v1121, 2147483648
          %v1134 = vor.u32 1.1754944e-38, %v1133
          %v1135 = vsel %vm1132, %v1134, %v1130
          %v1136 = vmul.f32 %v1111, %v1135
          %v1137 = vmin.f32 %v1136, 1.0
          %v1138 = vmax.f32 %v1137, -1.0
          %v1139 = vmul.f32 %v1014, %v1014
          %v1140 = vmin.f32 16.0, %v1139
          %v1141 = vmul.f32 %v1140, 2.1237322e-06
          %v1142 = vadd.f32 %v1141, 0.00028619796
          %v1143 = vmul.f32 %v1140, %v1142
          %v1144 = vadd.f32 %v1143, 0.0036580483
          %v1145 = vmul.f32 %v1140, %v1144
          %v1146 = vadd.f32 %v1145, 0.05243302
          %v1147 = vmul.f32 %v1140, %v1146
          %v1148 = vadd.f32 %v1147, 0.18741608
          %v1149 = vmul.f32 %v1140, %v1148
          %v1150 = vadd.f32 %v1149, 1.1283791
          %v1151 = vmul.f32 %v1014, %v1150
          %v1152 = vmul.f32 %v1140, 3.8918573e-05
          %v1153 = vadd.f32 %v1152, 0.001143296
          %v1154 = vmul.f32 %v1140, %v1153
          %v1155 = vadd.f32 %v1154, 0.014752088
          %v1156 = vmul.f32 %v1140, %v1155
          %v1157 = vadd.f32 %v1156, 0.112945676
          %v1158 = vmul.f32 %v1140, %v1157
          %v1159 = vadd.f32 %v1158, 0.4994258
          %v1160 = vmul.f32 %v1140, %v1159
          %v1161 = vadd.f32 %v1160, 1.0
          %v1162 = vrcp.pop %v1161
          %v1163 = vmul.f32 %v1161, %v1162
          %v1164 = vsub.f32 1.0, %v1163
          %v1165 = vmul.f32 %v1162, %v1164
          %v1166 = vadd.f32 %v1162, %v1165
          %vm1167 = vweird.f32 %v1161
          %vm1168 = vweird.f32 %v1162
          %vm1169 = vmor %vm1167, %vm1168
          %v1170 = vsel %vm1169, %v1162, %v1166
          %v1171 = vand.u32 2147483647, %v1161
          %vm1172 = vcmp.eq.f32.partialorder %v1171, 8.507059e+37
          %v1173 = vand.u32 %v1161, 2147483648
          %v1174 = vor.u32 1.1754944e-38, %v1173
          %v1175 = vsel %vm1172, %v1174, %v1170
          %v1176 = vmul.f32 %v1151, %v1175
          %v1177 = vmin.f32 %v1176, 1.0
          %v1178 = vmax.f32 %v1177, -1.0
          %v1179 = vmul.f32 %v1015, %v1015
          %v1180 = vmin.f32 16.0, %v1179
          %v1181 = vmul.f32 %v1180, 2.1237322e-06
          %v1182 = vadd.f32 %v1181, 0.00028619796
          %v1183 = vmul.f32 %v1180, %v1182
          %v1184 = vadd.f32 %v1183, 0.0036580483
          %v1185 = vmul.f32 %v1180, %v1184
          %v1186 = vadd.f32 %v1185, 0.05243302
          %v1187 = vmul.f32 %v1180, %v1186
          %v1188 = vadd.f32 %v1187, 0.18741608
          %v1189 = vmul.f32 %v1180, %v1188
          %v1190 = vadd.f32 %v1189, 1.1283791
          %v1191 = vmul.f32 %v1015, %v1190
          %v1192 = vmul.f32 %v1180, 3.8918573e-05
          %v1193 = vadd.f32 %v1192, 0.001143296
          %v1194 = vmul.f32 %v1180, %v1193
          %v1195 = vadd.f32 %v1194, 0.014752088
          %v1196 = vmul.f32 %v1180, %v1195
          %v1197 = vadd.f32 %v1196, 0.112945676
          %v1198 = vmul.f32 %v1180, %v1197
          %v1199 = vadd.f32 %v1198, 0.4994258
          %v1200 = vmul.f32 %v1180, %v1199
          %v1201 = vadd.f32 %v1200, 1.0
          %v1202 = vrcp.pop %v1201
          %v1203 = vmul.f32 %v1201, %v1202
          %v1204 = vsub.f32 1.0, %v1203
          %v1205 = vmul.f32 %v1202, %v1204
          %v1206 = vadd.f32 %v1202, %v1205
          %vm1207 = vweird.f32 %v1201
          %vm1208 = vweird.f32 %v1202
          %vm1209 = vmor %vm1207, %vm1208
          %v1210 = vsel %vm1209, %v1202, %v1206
          %v1211 = vand.u32 2147483647, %v1201
          %vm1212 = vcmp.eq.f32.partialorder %v1211, 8.507059e+37
          %v1213 = vand.u32 %v1201, 2147483648
          %v1214 = vor.u32 1.1754944e-38, %v1213
          %v1215 = vsel %vm1212, %v1214, %v1210
          %v1216 = vmul.f32 %v1191, %v1215
          %v1217 = vmin.f32 %v1216, 1.0
          %v1218 = vmax.f32 %v1217, -1.0
          %v1219 = vmul.f32 %v1016, %v1016
          %v1220 = vmin.f32 16.0, %v1219
          %v1221 = vmul.f32 %v1220, 2.1237322e-06
          %v1222 = vadd.f32 %v1221, 0.00028619796
          %v1223 = vmul.f32 %v1220, %v1222
          %v1224 = vadd.f32 %v1223, 0.0036580483
          %v1225 = vmul.f32 %v1220, %v1224
          %v1226 = vadd.f32 %v1225, 0.05243302
          %v1227 = vmul.f32 %v1220, %v1226
          %v1228 = vadd.f32 %v1227, 0.18741608
          %v1229 = vmul.f32 %v1220, %v1228
          %v1230 = vadd.f32 %v1229, 1.1283791
          %v1231 = vmul.f32 %v1016, %v1230
          %v1232 = vmul.f32 %v1220, 3.8918573e-05
          %v1233 = vadd.f32 %v1232, 0.001143296
          %v1234 = vmul.f32 %v1220, %v1233
          %v1235 = vadd.f32 %v1234, 0.014752088
          %v1236 = vmul.f32 %v1220, %v1235
          %v1237 = vadd.f32 %v1236, 0.112945676
          %v1238 = vmul.f32 %v1220, %v1237
          %v1239 = vadd.f32 %v1238, 0.4994258
          %v1240 = vmul.f32 %v1220, %v1239
          %v1241 = vadd.f32 %v1240, 1.0
          %v1242 = vrcp.pop %v1241
          %v1243 = vmul.f32 %v1241, %v1242
          %v1244 = vsub.f32 1.0, %v1243
          %v1245 = vmul.f32 %v1242, %v1244
          %v1246 = vadd.f32 %v1242, %v1245
          %vm1247 = vweird.f32 %v1241
          %vm1248 = vweird.f32 %v1242
          %vm1249 = vmor %vm1247, %vm1248
          %v1250 = vsel %vm1249, %v1242, %v1246
          %v1251 = vand.u32 2147483647, %v1241
          %vm1252 = vcmp.eq.f32.partialorder %v1251, 8.507059e+37
          %v1253 = vand.u32 %v1241, 2147483648
          %v1254 = vor.u32 1.1754944e-38, %v1253
          %v1255 = vsel %vm1252, %v1254, %v1250
          %v1256 = vmul.f32 %v1231, %v1255
          %v1257 = vmin.f32 %v1256, 1.0
          %v1258 = vmax.f32 %v1257, -1.0
          %v1259 = vmul.f32 %v1017, %v1017
          %v1260 = vmin.f32 16.0, %v1259
          %v1261 = vmul.f32 %v1260, 2.1237322e-06
          %v1262 = vadd.f32 %v1261, 0.00028619796
          %v1263 = vmul.f32 %v1260, %v1262
          %v1264 = vadd.f32 %v1263, 0.0036580483
          %v1265 = vmul.f32 %v1260, %v1264
          %v1266 = vadd.f32 %v1265, 0.05243302
          %v1267 = vmul.f32 %v1260, %v1266
          %v1268 = vadd.f32 %v1267, 0.18741608
          %v1269 = vmul.f32 %v1260, %v1268
          %v1270 = vadd.f32 %v1269, 1.1283791
          %v1271 = vmul.f32 %v1017, %v1270
          %v1272 = vmul.f32 %v1260, 3.8918573e-05
          %v1273 = vadd.f32 %v1272, 0.001143296
          %v1274 = vmul.f32 %v1260, %v1273
          %v1275 = vadd.f32 %v1274, 0.014752088
          %v1276 = vmul.f32 %v1260, %v1275
          %v1277 = vadd.f32 %v1276, 0.112945676
          %v1278 = vmul.f32 %v1260, %v1277
          %v1279 = vadd.f32 %v1278, 0.4994258
          %v1280 = vmul.f32 %v1260, %v1279
          %v1281 = vadd.f32 %v1280, 1.0
          %v1282 = vrcp.pop %v1281
          %v1283 = vmul.f32 %v1281, %v1282
          %v1284 = vsub.f32 1.0, %v1283
          %v1285 = vmul.f32 %v1282, %v1284
          %v1286 = vadd.f32 %v1282, %v1285
          %vm1287 = vweird.f32 %v1281
          %vm1288 = vweird.f32 %v1282
          %vm1289 = vmor %vm1287, %vm1288
          %v1290 = vsel %vm1289, %v1282, %v1286
          %v1291 = vand.u32 2147483647, %v1281
          %vm1292 = vcmp.eq.f32.partialorder %v1291, 8.507059e+37
          %v1293 = vand.u32 %v1281, 2147483648
          %v1294 = vor.u32 1.1754944e-38, %v1293
          %v1295 = vsel %vm1292, %v1294, %v1290
          %v1296 = vmul.f32 %v1271, %v1295
          %v1297 = vmin.f32 %v1296, 1.0
          %v1298 = vmax.f32 %v1297, -1.0
          %v1299 = vmul.f32 %v1018, %v1018
          %v1300 = vmin.f32 16.0, %v1299
          %v1301 = vmul.f32 %v1300, 2.1237322e-06
          %v1302 = vadd.f32 %v1301, 0.00028619796
          %v1303 = vmul.f32 %v1300, %v1302
          %v1304 = vadd.f32 %v1303, 0.0036580483
          %v1305 = vmul.f32 %v1300, %v1304
          %v1306 = vadd.f32 %v1305, 0.05243302
          %v1307 = vmul.f32 %v1300, %v1306
          %v1308 = vadd.f32 %v1307, 0.18741608
          %v1309 = vmul.f32 %v1300, %v1308
          %v1310 = vadd.f32 %v1309, 1.1283791
          %v1311 = vmul.f32 %v1018, %v1310
          %v1312 = vmul.f32 %v1300, 3.8918573e-05
          %v1313 = vadd.f32 %v1312, 0.001143296
          %v1314 = vmul.f32 %v1300, %v1313
          %v1315 = vadd.f32 %v1314, 0.014752088
          %v1316 = vmul.f32 %v1300, %v1315
          %v1317 = vadd.f32 %v1316, 0.112945676
          %v1318 = vmul.f32 %v1300, %v1317
          %v1319 = vadd.f32 %v1318, 0.4994258
          %v1320 = vmul.f32 %v1300, %v1319
          %v1321 = vadd.f32 %v1320, 1.0
          %v1322 = vrcp.pop %v1321
          %v1323 = vmul.f32 %v1321, %v1322
          %v1324 = vsub.f32 1.0, %v1323
          %v1325 = vmul.f32 %v1322, %v1324
          %v1326 = vadd.f32 %v1322, %v1325
          %vm1327 = vweird.f32 %v1321
          %vm1328 = vweird.f32 %v1322
          %vm1329 = vmor %vm1327, %vm1328
          %v1330 = vsel %vm1329, %v1322, %v1326
          %v1331 = vand.u32 2147483647, %v1321
          %vm1332 = vcmp.eq.f32.partialorder %v1331, 8.507059e+37
          %v1333 = vand.u32 %v1321, 2147483648
          %v1334 = vor.u32 1.1754944e-38, %v1333
          %v1335 = vsel %vm1332, %v1334, %v1330
          %v1336 = vmul.f32 %v1311, %v1335
          %v1337 = vmin.f32 %v1336, 1.0
          %v1338 = vmax.f32 %v1337, -1.0
          %v1339 = vadd.f32 %v1058, 1.0
          %v1340 = vadd.f32 %v1098, 1.0
          %v1341 = vadd.f32 %v1138, 1.0
          %v1342 = vadd.f32 %v1178, 1.0
          %v1343 = vadd.f32 %v1218, 1.0
          %v1344 = vadd.f32 %v1258, 1.0
          %v1345 = vadd.f32 %v1298, 1.0
          %v1346 = vadd.f32 %v1338, 1.0
          %v1347 = vmul.f32 %v1003, %v1339
          %v1348 = vmul.f32 %v1004, %v1340
          %v1349 = vmul.f32 %v1005, %v1341
          %v1350 = vmul.f32 %v1006, %v1342
          %v1351 = vmul.f32 %v1007, %v1343
          %v1352 = vmul.f32 %v1008, %v1344
          %v1353 = vmul.f32 %v1009, %v1345
          %v1354 = vmul.f32 %v1010, %v1346
          %v1355 = vld [vmem:[%s1] sm:$0xff]
          %v1356 = vld [vmem:[%s1 + $0x8] sm:$0xff]
          %v1357 = vld [vmem:[%s1 + $0x10] sm:$0xff]
          %v1358 = vld [vmem:[%s1 + $0x18] sm:$0x3f]
          %v1359 = vld [vmem:[%s4] sm:$0xff]
          %v1360 = vld [vmem:[%s4 + $0x8] sm:$0xff]
          %v1361 = vld [vmem:[%s4 + $0x10] sm:$0xff]
          %v1362 = vld [vmem:[%s4 + $0x18] sm:$0xff]
          %v1363 = vld [vmem:[%s4 + $0x20] sm:$0xff]
          %v1364 = vld [vmem:[%s4 + $0x28] sm:$0xff]
          %v1365 = vld [vmem:[%s4 + $0x30] sm:$0xff]
          %v1366 = vld [vmem:[%s4 + $0x38] sm:$0xff]
          %v1367 = vld [vmem:[%s4 + $0x40] sm:$0xff]
          %v1368 = vld [vmem:[%s4 + $0x48] sm:$0xff]
          %v1369 = vld [vmem:[%s4 + $0x50] sm:$0xff]
          %v1370 = vld [vmem:[%s4 + $0x58] sm:$0xff]
          %v1371 = vld [vmem:[%s4 + $0x60] sm:$0xff]
          %v1372 = vld [vmem:[%s4 + $0x68] sm:$0xff]
          %v1373 = vld [vmem:[%s4 + $0x70] sm:$0xff]
          %v1374 = vld [vmem:[%s4 + $0x78] sm:$0xff]
          %v1375 = vld [vmem:[%s4 + $0x80] sm:$0xff]
          %v1376 = vld [vmem:[%s4 + $0x88] sm:$0xff]
          %v1377 = vld [vmem:[%s4 + $0x90] sm:$0xff]
          %v1378 = vld [vmem:[%s4 + $0x98] sm:$0xff]
          %v1379 = vld [vmem:[%s4 + $0xa0] sm:$0xff]
          %v1380 = vld [vmem:[%s4 + $0xa8] sm:$0xff]
          %v1381 = vld [vmem:[%s4 + $0xb0] sm:$0xff]
          %v1382 = vld [vmem:[%s4 + $0xb8] sm:$0xff]
          %v1383 = vld [vmem:[%s4 + $0xc0] sm:$0xff]
          %v1384 = vld [vmem:[%s4 + $0xc8] sm:$0xff]
          %v1385 = vld [vmem:[%s4 + $0xd0] sm:$0xff]
          %v1386 = vld [vmem:[%s4 + $0xd8] sm:$0xff]
          %v1387 = vld [vmem:[%s4 + $0xe0] sm:$0xff]
          %v1388 = vld [vmem:[%s4 + $0xe8] sm:$0xff]
          %v1389 = vld [vmem:[%s4 + $0xf0] sm:$0xff]
          %v1390 = vld [vmem:[%s4 + $0xf8] sm:$0xff]
          %v1391 = vld [vmem:[%s4 + $0x100] sm:$0xff]
          %v1392 = vld [vmem:[%s4 + $0x108] sm:$0xff]
          %v1393 = vld [vmem:[%s4 + $0x110] sm:$0xff]
          %v1394 = vld [vmem:[%s4 + $0x118] sm:$0xff]
          %v1395 = vld [vmem:[%s4 + $0x120] sm:$0xff]
          %v1396 = vld [vmem:[%s4 + $0x128] sm:$0xff]
          %v1397 = vld [vmem:[%s4 + $0x130] sm:$0xff]
          %v1398 = vld [vmem:[%s4 + $0x138] sm:$0xff]
          %v1399 = vld [vmem:[%s4 + $0x140] sm:$0xff]
          %v1400 = vld [vmem:[%s4 + $0x148] sm:$0xff]
          %v1401 = vld [vmem:[%s4 + $0x150] sm:$0xff]
          %v1402 = vld [vmem:[%s4 + $0x158] sm:$0xff]
          %v1403 = vld [vmem:[%s4 + $0x160] sm:$0xff]
          %v1404 = vld [vmem:[%s4 + $0x168] sm:$0xff]
          %v1405 = vld [vmem:[%s4 + $0x170] sm:$0xff]
          %v1406 = vld [vmem:[%s4 + $0x178] sm:$0xff]
          %v1407 = vld [vmem:[%s4 + $0x180] sm:$0xff]
          %v1408 = vld [vmem:[%s4 + $0x188] sm:$0xff]
          %v1409 = vld [vmem:[%s4 + $0x190] sm:$0xff]
          %v1410 = vld [vmem:[%s4 + $0x198] sm:$0xff]
          %v1411 = vld [vmem:[%s4 + $0x1a0] sm:$0xff]
          %v1412 = vld [vmem:[%s4 + $0x1a8] sm:$0xff]
          %v1413 = vld [vmem:[%s4 + $0x1b0] sm:$0xff]
          %v1414 = vld [vmem:[%s4 + $0x1b8] sm:$0xff]
          %v1415 = vld [vmem:[%s4 + $0x1c0] sm:$0xff]
          %v1416 = vld [vmem:[%s4 + $0x1c8] sm:$0xff]
          %v1417 = vld [vmem:[%s4 + $0x1d0] sm:$0xff]
          %v1418 = vld [vmem:[%s4 + $0x1d8] sm:$0xff]
          %v1419 = vld [vmem:[%s4 + $0x1e0] sm:$0xff]
          %v1420 = vld [vmem:[%s4 + $0x1e8] sm:$0xff]
          %v1421 = vld [vmem:[%s4 + $0x1f0] sm:$0xff]
          %v1422 = vld [vmem:[%s4 + $0x1f8] sm:$0xff]
          %v1423 = vld [vmem:[%s4 + $0x200] sm:$0xff]
          %v1424 = vld [vmem:[%s4 + $0x208] sm:$0xff]
          %v1425 = vld [vmem:[%s4 + $0x210] sm:$0xff]
          %v1426 = vld [vmem:[%s4 + $0x218] sm:$0xff]
          %v1427 = vld [vmem:[%s4 + $0x220] sm:$0xff]
          %v1428 = vld [vmem:[%s4 + $0x228] sm:$0xff]
          %v1429 = vld [vmem:[%s4 + $0x230] sm:$0xff]
          %v1430 = vld [vmem:[%s4 + $0x238] sm:$0xff]
          %v1431 = vld [vmem:[%s4 + $0x240] sm:$0xff]
          %v1432 = vld [vmem:[%s4 + $0x248] sm:$0xff]
          %v1433 = vld [vmem:[%s4 + $0x250] sm:$0xff]
          %v1434 = vld [vmem:[%s4 + $0x258] sm:$0xff]
          %v1435 = vld [vmem:[%s4 + $0x260] sm:$0xff]
          %v1436 = vld [vmem:[%s4 + $0x268] sm:$0xff]
          %v1437 = vld [vmem:[%s4 + $0x270] sm:$0xff]
          %v1438 = vld [vmem:[%s4 + $0x278] sm:$0xff]
          %v1439 = vld [vmem:[%s4 + $0x280] sm:$0xff]
          %v1440 = vld [vmem:[%s4 + $0x288] sm:$0xff]
          %v1441 = vld [vmem:[%s4 + $0x290] sm:$0xff]
          %v1442 = vld [vmem:[%s4 + $0x298] sm:$0xff]
          %v1443 = vld [vmem:[%s4 + $0x2a0] sm:$0xff]
          %v1444 = vld [vmem:[%s4 + $0x2a8] sm:$0xff]
          %v1445 = vld [vmem:[%s4 + $0x2b0] sm:$0xff]
          %v1446 = vld [vmem:[%s4 + $0x2b8] sm:$0xff]
          %v1447 = vld [vmem:[%s4 + $0x2c0] sm:$0xff]
          %v1448 = vld [vmem:[%s4 + $0x2c8] sm:$0xff]
          %v1449 = vld [vmem:[%s4 + $0x2d0] sm:$0xff]
          %v1450 = vld [vmem:[%s4 + $0x2d8] sm:$0xff]
          %v1451 = vld [vmem:[%s4 + $0x2e0] sm:$0xff]
          %v1452 = vld [vmem:[%s4 + $0x2e8] sm:$0xff]
          %v1453 = vld [vmem:[%s4 + $0x2f0] sm:$0xff]
          %v1454 = vld [vmem:[%s4 + $0x2f8] sm:$0xff]
          %v1455 = vld [vmem:[%s4 + $0x300] sm:$0xff]
          %v1456 = vld [vmem:[%s4 + $0x308] sm:$0xff]
          %v1457 = vld [vmem:[%s4 + $0x310] sm:$0xff]
          %v1458 = vld [vmem:[%s4 + $0x318] sm:$0xff]
          %v1459 = vld [vmem:[%s4 + $0x320] sm:$0xff]
          %v1460 = vld [vmem:[%s4 + $0x328] sm:$0xff]
          %v1461 = vld [vmem:[%s4 + $0x330] sm:$0xff]
          %v1462 = vld [vmem:[%s4 + $0x338] sm:$0xff]
          %v1463 = vld [vmem:[%s4 + $0x340] sm:$0xff]
          %v1464 = vld [vmem:[%s4 + $0x348] sm:$0xff]
          %v1465 = vld [vmem:[%s4 + $0x350] sm:$0xff]
          %v1466 = vld [vmem:[%s4 + $0x358] sm:$0xff]
          %v1467 = vld [vmem:[%s4 + $0x360] sm:$0xff]
          %v1468 = vld [vmem:[%s4 + $0x368] sm:$0xff]
          %v1469 = vld [vmem:[%s4 + $0x370] sm:$0xff]
          %v1470 = vld [vmem:[%s4 + $0x378] sm:$0xff]
          %v1471 = vld [vmem:[%s4 + $0x380] sm:$0xff]
          %v1472 = vld [vmem:[%s4 + $0x388] sm:$0xff]
          %v1473 = vld [vmem:[%s4 + $0x390] sm:$0xff]
          %v1474 = vld [vmem:[%s4 + $0x398] sm:$0xff]
          %v1475 = vld [vmem:[%s4 + $0x3a0] sm:$0xff]
          %v1476 = vld [vmem:[%s4 + $0x3a8] sm:$0xff]
          %v1477 = vld [vmem:[%s4 + $0x3b0] sm:$0xff]
          %v1478 = vld [vmem:[%s4 + $0x3b8] sm:$0xff]
          %v1479 = vld [vmem:[%s4 + $0x3c0] sm:$0xff]
          %v1480 = vld [vmem:[%s4 + $0x3c8] sm:$0xff]
          %v1481 = vld [vmem:[%s4 + $0x3d0] sm:$0xff]
          %v1482 = vld [vmem:[%s4 + $0x3d8] sm:$0xff]
          %v1483 = vld [vmem:[%s4 + $0x3e0] sm:$0xff]
          %v1484 = vld [vmem:[%s4 + $0x3e8] sm:$0xff]
          %v1485 = vld [vmem:[%s4 + $0x3f0] sm:$0xff]
          %v1486 = vld [vmem:[%s4 + $0x3f8] sm:$0xff]
          %v1487 = vld [vmem:[%s4 + $0x400] sm:$0xff]
          %v1488 = vld [vmem:[%s4 + $0x408] sm:$0xff]
          %v1489 = vld [vmem:[%s4 + $0x410] sm:$0xff]
          %v1490 = vld [vmem:[%s4 + $0x418] sm:$0xff]
          %v1491 = vld [vmem:[%s4 + $0x420] sm:$0xff]
          %v1492 = vld [vmem:[%s4 + $0x428] sm:$0xff]
          %v1493 = vld [vmem:[%s4 + $0x430] sm:$0xff]
          %v1494 = vld [vmem:[%s4 + $0x438] sm:$0xff]
          %v1495 = vld [vmem:[%s4 + $0x440] sm:$0xff]
          %v1496 = vld [vmem:[%s4 + $0x448] sm:$0xff]
          %v1497 = vld [vmem:[%s4 + $0x450] sm:$0xff]
          %v1498 = vld [vmem:[%s4 + $0x458] sm:$0xff]
          %v1499 = vld [vmem:[%s4 + $0x460] sm:$0xff]
          %v1500 = vld [vmem:[%s4 + $0x468] sm:$0xff]
          %v1501 = vld [vmem:[%s4 + $0x470] sm:$0xff]
          %v1502 = vld [vmem:[%s4 + $0x478] sm:$0xff]
          %v1503 = vld [vmem:[%s4 + $0x480] sm:$0xff]
          %v1504 = vld [vmem:[%s4 + $0x488] sm:$0xff]
          %v1505 = vld [vmem:[%s4 + $0x490] sm:$0xff]
          %v1506 = vld [vmem:[%s4 + $0x498] sm:$0xff]
          %v1507 = vld [vmem:[%s4 + $0x4a0] sm:$0xff]
          %v1508 = vld [vmem:[%s4 + $0x4a8] sm:$0xff]
          %v1509 = vld [vmem:[%s4 + $0x4b0] sm:$0xff]
          %v1510 = vld [vmem:[%s4 + $0x4b8] sm:$0xff]
          %v1511 = vld [vmem:[%s4 + $0x4c0] sm:$0xff]
          %v1512 = vld [vmem:[%s4 + $0x4c8] sm:$0xff]
          %v1513 = vld [vmem:[%s4 + $0x4d0] sm:$0xff]
          %v1514 = vld [vmem:[%s4 + $0x4d8] sm:$0xff]
          %v1515 = vld [vmem:[%s4 + $0x4e0] sm:$0xff]
          %v1516 = vld [vmem:[%s4 + $0x4e8] sm:$0xff]
          %v1517 = vld [vmem:[%s4 + $0x4f0] sm:$0xff]
          %v1518 = vld [vmem:[%s4 + $0x4f8] sm:$0xff]
          %v1519 = vld [vmem:[%s4 + $0x500] sm:$0xff]
          %v1520 = vld [vmem:[%s4 + $0x508] sm:$0xff]
          %v1521 = vld [vmem:[%s4 + $0x510] sm:$0xff]
          %v1522 = vld [vmem:[%s4 + $0x518] sm:$0xff]
          %v1523 = vld [vmem:[%s4 + $0x520] sm:$0xff]
          %v1524 = vld [vmem:[%s4 + $0x528] sm:$0xff]
          %v1525 = vld [vmem:[%s4 + $0x530] sm:$0xff]
          %v1526 = vld [vmem:[%s4 + $0x538] sm:$0xff]
          %v1527 = vld [vmem:[%s4 + $0x540] sm:$0xff]
          %v1528 = vld [vmem:[%s4 + $0x548] sm:$0xff]
          %v1529 = vld [vmem:[%s4 + $0x550] sm:$0xff]
          %v1530 = vld [vmem:[%s4 + $0x558] sm:$0xff]
          %v1531 = vld [vmem:[%s4 + $0x560] sm:$0xff]
          %v1532 = vld [vmem:[%s4 + $0x568] sm:$0xff]
          %v1533 = vld [vmem:[%s4 + $0x570] sm:$0xff]
          %v1534 = vld [vmem:[%s4 + $0x578] sm:$0xff]
          %v1535 = vld [vmem:[%s4 + $0x580] sm:$0xff]
          %v1536 = vld [vmem:[%s4 + $0x588] sm:$0xff]
          %v1537 = vld [vmem:[%s4 + $0x590] sm:$0xff]
          %v1538 = vld [vmem:[%s4 + $0x598] sm:$0xff]
          %v1539 = vld [vmem:[%s4 + $0x5a0] sm:$0xff]
          %v1540 = vld [vmem:[%s4 + $0x5a8] sm:$0xff]
          %v1541 = vld [vmem:[%s4 + $0x5b0] sm:$0xff]
          %v1542 = vld [vmem:[%s4 + $0x5b8] sm:$0xff]
          %v1543 = vld [vmem:[%s4 + $0x5c0] sm:$0xff]
          %v1544 = vld [vmem:[%s4 + $0x5c8] sm:$0xff]
          %v1545 = vld [vmem:[%s4 + $0x5d0] sm:$0xff]
          %v1546 = vld [vmem:[%s4 + $0x5d8] sm:$0xff]
          %v1547 = vld [vmem:[%s4 + $0x5e0] sm:$0xff]
          %v1548 = vld [vmem:[%s4 + $0x5e8] sm:$0xff]
          %v1549 = vld [vmem:[%s4 + $0x5f0] sm:$0xff]
          %v1550 = vld [vmem:[%s4 + $0x5f8] sm:$0xff]
          %v1551 = vld [vmem:[%s4 + $0x600] sm:$0xff]
          %v1552 = vld [vmem:[%s4 + $0x608] sm:$0xff]
          %v1553 = vld [vmem:[%s4 + $0x610] sm:$0xff]
          %v1554 = vld [vmem:[%s4 + $0x618] sm:$0xff]
          %v1555 = vld [vmem:[%s4 + $0x620] sm:$0xff]
          %v1556 = vld [vmem:[%s4 + $0x628] sm:$0xff]
          %v1557 = vld [vmem:[%s4 + $0x630] sm:$0xff]
          %v1558 = vld [vmem:[%s4 + $0x638] sm:$0xff]
          %v1559 = vld [vmem:[%s4 + $0x640] sm:$0xff]
          %v1560 = vld [vmem:[%s4 + $0x648] sm:$0xff]
          %v1561 = vld [vmem:[%s4 + $0x650] sm:$0xff]
          %v1562 = vld [vmem:[%s4 + $0x658] sm:$0xff]
          %v1563 = vld [vmem:[%s4 + $0x660] sm:$0xff]
          %v1564 = vld [vmem:[%s4 + $0x668] sm:$0xff]
          %v1565 = vld [vmem:[%s4 + $0x670] sm:$0xff]
          %v1566 = vld [vmem:[%s4 + $0x678] sm:$0xff]
          %v1567 = vld [vmem:[%s4 + $0x680] sm:$0xff]
          %v1568 = vld [vmem:[%s4 + $0x688] sm:$0xff]
          %v1569 = vld [vmem:[%s4 + $0x690] sm:$0xff]
          %v1570 = vld [vmem:[%s4 + $0x698] sm:$0xff]
          %v1571 = vld [vmem:[%s4 + $0x6a0] sm:$0xff]
          %v1572 = vld [vmem:[%s4 + $0x6a8] sm:$0xff]
          %v1573 = vld [vmem:[%s4 + $0x6b0] sm:$0xff]
          %v1574 = vld [vmem:[%s4 + $0x6b8] sm:$0xff]
          %v1575 = vld [vmem:[%s4 + $0x6c0] sm:$0xff]
          %v1576 = vld [vmem:[%s4 + $0x6c8] sm:$0xff]
          %v1577 = vld [vmem:[%s4 + $0x6d0] sm:$0xff]
          %v1578 = vld [vmem:[%s4 + $0x6d8] sm:$0xff]
          %v1579 = vld [vmem:[%s4 + $0x6e0] sm:$0xff]
          %v1580 = vld [vmem:[%s4 + $0x6e8] sm:$0xff]
          %v1581 = vld [vmem:[%s4 + $0x6f0] sm:$0xff]
          %v1582 = vld [vmem:[%s4 + $0x6f8] sm:$0xff]
          %v1583 = vld [vmem:[%s4 + $0x700] sm:$0xff]
          %v1584 = vld [vmem:[%s4 + $0x708] sm:$0xff]
          %v1585 = vld [vmem:[%s4 + $0x710] sm:$0xff]
          %v1586 = vld [vmem:[%s4 + $0x718] sm:$0xff]
          %v1587 = vld [vmem:[%s4 + $0x720] sm:$0xff]
          %v1588 = vld [vmem:[%s4 + $0x728] sm:$0xff]
          %v1589 = vld [vmem:[%s4 + $0x730] sm:$0xff]
          %v1590 = vld [vmem:[%s4 + $0x738] sm:$0xff]
          %v1591 = vld [vmem:[%s4 + $0x740] sm:$0xff]
          %v1592 = vld [vmem:[%s4 + $0x748] sm:$0xff]
          %v1593 = vld [vmem:[%s4 + $0x750] sm:$0xff]
          %v1594 = vld [vmem:[%s4 + $0x758] sm:$0xff]
          %v1595 = vld [vmem:[%s4 + $0x760] sm:$0xff]
          %v1596 = vld [vmem:[%s4 + $0x768] sm:$0xff]
          %v1597 = vld [vmem:[%s4 + $0x770] sm:$0xff]
          %v1598 = vld [vmem:[%s4 + $0x778] sm:$0xff]
          %v1599 = vld [vmem:[%s5] sm:$0x1]
          %v1601 = vperm.slane %v1599, 0
          %1607 = vst [vmem:[#allocation1] ss:$4 sm:$0xff] %v1355
          %s1608 = scalar_lea.vmem [#allocation1], 32
          %1609 = vst [vmem:[%s1608] ss:$4 sm:$0xff] %v1356
          %v1610 = vld.sshfl [vmem:[#allocation1] sm:$0xff pattern:$0x73625140]
          %v1611 = vld.sshfl [vmem:[#allocation1 + $0x8] sm:$0xff pattern:$0x73625140]
          %v1612 = vld.sshfl [vmem:[#allocation1 + $0x10] sm:$0xff pattern:$0x73625140]
          %v1613 = vld.sshfl [vmem:[#allocation1 + $0x18] sm:$0xff pattern:$0x73625140]
          %v1614 = vld.sshfl [vmem:[#allocation1 + $0x20] sm:$0xff pattern:$0x73625140]
          %v1615 = vld.sshfl [vmem:[#allocation1 + $0x28] sm:$0xff pattern:$0x73625140]
          %v1616 = vld.sshfl [vmem:[#allocation1 + $0x30] sm:$0xff pattern:$0x73625140]
          %v1617 = vld.sshfl [vmem:[#allocation1 + $0x38] sm:$0xff pattern:$0x73625140]
          %1618 = vst [vmem:[#allocation1] ss:$4 sm:$0xff] %v1357
          %1619 = vst [vmem:[%s1608] ss:$4 sm:$0xff] %v1358
          %v1620 = vld.sshfl [vmem:[#allocation1] sm:$0xff pattern:$0x73625140]
          %v1621 = vld.sshfl [vmem:[#allocation1 + $0x8] sm:$0xff pattern:$0x73625140]
          %v1622 = vld.sshfl [vmem:[#allocation1 + $0x10] sm:$0xff pattern:$0x73625140]
          %v1623 = vld.sshfl [vmem:[#allocation1 + $0x18] sm:$0xff pattern:$0x73625140]
          %v1624 = vld.sshfl [vmem:[#allocation1 + $0x20] sm:$0xff pattern:$0x73625140]
          %v1625 = vld.sshfl [vmem:[#allocation1 + $0x28] sm:$0xff pattern:$0x73625140]
          %v1626 = vld.sshfl [vmem:[#allocation1 + $0x30] sm:$0xff pattern:$0x73625140]
          %1642 = vmatpush.msra.mxu0 %v1374
          %1643 = vmatpush.msra.mxu0 %v1373
          %1644 = vmatpush.msra.mxu0 %v1372
          %1645 = vmatpush.msra.mxu0 %v1371
          %1646 = vmatpush.msra.mxu0 %v1370
          %1647 = vmatpush.msra.mxu0 %v1369
          %1648 = vmatpush.msra.mxu0 %v1368
          %1649 = vmatpush.msra.mxu0 %v1367
          %1650 = vmatpush.msra.mxu0 %v1366
          %1651 = vmatpush.msra.mxu0 %v1365
          %1652 = vmatpush.msra.mxu0 %v1364
          %1653 = vmatpush.msra.mxu0 %v1363
          %1654 = vmatpush.msra.mxu0 %v1362
          %1655 = vmatpush.msra.mxu0 %v1361
          %1656 = vmatpush.msra.mxu0 %v1360
          %1657 = vmatpush.msra.mxu0 %v1359
          %1658 = vmatmul.f32.gmra.mxu0 %v1610
          %v1659 = vpop.f32.mrf.mxu0
          %v1660 = vadd.f32 %v1601, %v1659
          %1661 = vdwg.mxu0
          %1662 = vmatpush.msra.mxu0 %v1390
          %1663 = vmatpush.msra.mxu0 %v1389
          %1664 = vmatpush.msra.mxu0 %v1388
          %1665 = vmatpush.msra.mxu0 %v1387
          %1666 = vmatpush.msra.mxu0 %v1386
          %1667 = vmatpush.msra.mxu0 %v1385
          %1668 = vmatpush.msra.mxu0 %v1384
          %1669 = vmatpush.msra.mxu0 %v1383
          %1670 = vmatpush.msra.mxu0 %v1382
          %1671 = vmatpush.msra.mxu0 %v1381
          %1672 = vmatpush.msra.mxu0 %v1380
          %1673 = vmatpush.msra.mxu0 %v1379
          %1674 = vmatpush.msra.mxu0 %v1378
          %1675 = vmatpush.msra.mxu0 %v1377
          %1676 = vmatpush.msra.mxu0 %v1376
          %1677 = vmatpush.msra.mxu0 %v1375
          %1678 = vmatmul.f32.gmra.mxu0 %v1611
          %v1679 = vpop.f32.mrf.mxu0
          %v1680 = vadd.f32 %v1660, %v1679
          %1681 = vdwg.mxu0
          %1682 = vmatpush.msra.mxu0 %v1406
          %1683 = vmatpush.msra.mxu0 %v1405
          %1684 = vmatpush.msra.mxu0 %v1404
          %1685 = vmatpush.msra.mxu0 %v1403
          %1686 = vmatpush.msra.mxu0 %v1402
          %1687 = vmatpush.msra.mxu0 %v1401
          %1688 = vmatpush.msra.mxu0 %v1400
          %1689 = vmatpush.msra.mxu0 %v1399
          %1690 = vmatpush.msra.mxu0 %v1398
          %1691 = vmatpush.msra.mxu0 %v1397
          %1692 = vmatpush.msra.mxu0 %v1396
          %1693 = vmatpush.msra.mxu0 %v1395
          %1694 = vmatpush.msra.mxu0 %v1394
          %1695 = vmatpush.msra.mxu0 %v1393
          %1696 = vmatpush.msra.mxu0 %v1392
          %1697 = vmatpush.msra.mxu0 %v1391
          %1698 = vmatmul.f32.gmra.mxu0 %v1612
          %v1699 = vpop.f32.mrf.mxu0
          %v1700 = vadd.f32 %v1680, %v1699
          %1701 = vdwg.mxu0
          %1702 = vmatpush.msra.mxu0 %v1422
          %1703 = vmatpush.msra.mxu0 %v1421
          %1704 = vmatpush.msra.mxu0 %v1420
          %1705 = vmatpush.msra.mxu0 %v1419
          %1706 = vmatpush.msra.mxu0 %v1418
          %1707 = vmatpush.msra.mxu0 %v1417
          %1708 = vmatpush.msra.mxu0 %v1416
          %1709 = vmatpush.msra.mxu0 %v1415
          %1710 = vmatpush.msra.mxu0 %v1414
          %1711 = vmatpush.msra.mxu0 %v1413
          %1712 = vmatpush.msra.mxu0 %v1412
          %1713 = vmatpush.msra.mxu0 %v1411
          %1714 = vmatpush.msra.mxu0 %v1410
          %1715 = vmatpush.msra.mxu0 %v1409
          %1716 = vmatpush.msra.mxu0 %v1408
          %1717 = vmatpush.msra.mxu0 %v1407
          %1718 = vmatmul.f32.gmra.mxu0 %v1613
          %v1719 = vpop.f32.mrf.mxu0
          %v1720 = vadd.f32 %v1700, %v1719
          %1721 = vdwg.mxu0
          %1722 = vmatpush.msra.mxu0 %v1438
          %1723 = vmatpush.msra.mxu0 %v1437
          %1724 = vmatpush.msra.mxu0 %v1436
          %1725 = vmatpush.msra.mxu0 %v1435
          %1726 = vmatpush.msra.mxu0 %v1434
          %1727 = vmatpush.msra.mxu0 %v1433
          %1728 = vmatpush.msra.mxu0 %v1432
          %1729 = vmatpush.msra.mxu0 %v1431
          %1730 = vmatpush.msra.mxu0 %v1430
          %1731 = vmatpush.msra.mxu0 %v1429
          %1732 = vmatpush.msra.mxu0 %v1428
          %1733 = vmatpush.msra.mxu0 %v1427
          %1734 = vmatpush.msra.mxu0 %v1426
          %1735 = vmatpush.msra.mxu0 %v1425
          %1736 = vmatpush.msra.mxu0 %v1424
          %1737 = vmatpush.msra.mxu0 %v1423
          %1738 = vmatmul.f32.gmra.mxu0 %v1614
          %v1739 = vpop.f32.mrf.mxu0
          %v1740 = vadd.f32 %v1720, %v1739
          %1741 = vdwg.mxu0
          %1742 = vmatpush.msra.mxu0 %v1454
          %1743 = vmatpush.msra.mxu0 %v1453
          %1744 = vmatpush.msra.mxu0 %v1452
          %1745 = vmatpush.msra.mxu0 %v1451
          %1746 = vmatpush.msra.mxu0 %v1450
          %1747 = vmatpush.msra.mxu0 %v1449
          %1748 = vmatpush.msra.mxu0 %v1448
          %1749 = vmatpush.msra.mxu0 %v1447
          %1750 = vmatpush.msra.mxu0 %v1446
          %1751 = vmatpush.msra.mxu0 %v1445
          %1752 = vmatpush.msra.mxu0 %v1444
          %1753 = vmatpush.msra.mxu0 %v1443
          %1754 = vmatpush.msra.mxu0 %v1442
          %1755 = vmatpush.msra.mxu0 %v1441
          %1756 = vmatpush.msra.mxu0 %v1440
          %1757 = vmatpush.msra.mxu0 %v1439
          %1758 = vmatmul.f32.gmra.mxu0 %v1615
          %v1759 = vpop.f32.mrf.mxu0
          %v1760 = vadd.f32 %v1740, %v1759
          %1761 = vdwg.mxu0
          %1762 = vmatpush.msra.mxu0 %v1470
          %1763 = vmatpush.msra.mxu0 %v1469
          %1764 = vmatpush.msra.mxu0 %v1468
          %1765 = vmatpush.msra.mxu0 %v1467
          %1766 = vmatpush.msra.mxu0 %v1466
          %1767 = vmatpush.msra.mxu0 %v1465
          %1768 = vmatpush.msra.mxu0 %v1464
          %1769 = vmatpush.msra.mxu0 %v1463
          %1770 = vmatpush.msra.mxu0 %v1462
          %1771 = vmatpush.msra.mxu0 %v1461
          %1772 = vmatpush.msra.mxu0 %v1460
          %1773 = vmatpush.msra.mxu0 %v1459
          %1774 = vmatpush.msra.mxu0 %v1458
          %1775 = vmatpush.msra.mxu0 %v1457
          %1776 = vmatpush.msra.mxu0 %v1456
          %1777 = vmatpush.msra.mxu0 %v1455
          %1778 = vmatmul.f32.gmra.mxu0 %v1616
          %v1779 = vpop.f32.mrf.mxu0
          %v1780 = vadd.f32 %v1760, %v1779
          %1781 = vdwg.mxu0
          %1782 = vmatpush.msra.mxu0 %v1486
          %1783 = vmatpush.msra.mxu0 %v1485
          %1784 = vmatpush.msra.mxu0 %v1484
          %1785 = vmatpush.msra.mxu0 %v1483
          %1786 = vmatpush.msra.mxu0 %v1482
          %1787 = vmatpush.msra.mxu0 %v1481
          %1788 = vmatpush.msra.mxu0 %v1480
          %1789 = vmatpush.msra.mxu0 %v1479
          %1790 = vmatpush.msra.mxu0 %v1478
          %1791 = vmatpush.msra.mxu0 %v1477
          %1792 = vmatpush.msra.mxu0 %v1476
          %1793 = vmatpush.msra.mxu0 %v1475
          %1794 = vmatpush.msra.mxu0 %v1474
          %1795 = vmatpush.msra.mxu0 %v1473
          %1796 = vmatpush.msra.mxu0 %v1472
          %1797 = vmatpush.msra.mxu0 %v1471
          %1798 = vmatmul.f32.gmra.mxu0 %v1617
          %v1799 = vpop.f32.mrf.mxu0
          %v1800 = vadd.f32 %v1780, %v1799
          %1801 = vdwg.mxu0
          %1802 = vmatpush.msra.mxu0 %v1502
          %1803 = vmatpush.msra.mxu0 %v1501
          %1804 = vmatpush.msra.mxu0 %v1500
          %1805 = vmatpush.msra.mxu0 %v1499
          %1806 = vmatpush.msra.mxu0 %v1498
          %1807 = vmatpush.msra.mxu0 %v1497
          %1808 = vmatpush.msra.mxu0 %v1496
          %1809 = vmatpush.msra.mxu0 %v1495
          %1810 = vmatpush.msra.mxu0 %v1494
          %1811 = vmatpush.msra.mxu0 %v1493
          %1812 = vmatpush.msra.mxu0 %v1492
          %1813 = vmatpush.msra.mxu0 %v1491
          %1814 = vmatpush.msra.mxu0 %v1490
          %1815 = vmatpush.msra.mxu0 %v1489
          %1816 = vmatpush.msra.mxu0 %v1488
          %1817 = vmatpush.msra.mxu0 %v1487
          %1818 = vmatmul.f32.gmra.mxu0 %v1620
          %v1819 = vpop.f32.mrf.mxu0
          %v1820 = vadd.f32 %v1800, %v1819
          %1821 = vdwg.mxu0
          %1822 = vmatpush.msra.mxu0 %v1518
          %1823 = vmatpush.msra.mxu0 %v1517
          %1824 = vmatpush.msra.mxu0 %v1516
          %1825 = vmatpush.msra.mxu0 %v1515
          %1826 = vmatpush.msra.mxu0 %v1514
          %1827 = vmatpush.msra.mxu0 %v1513
          %1828 = vmatpush.msra.mxu0 %v1512
          %1829 = vmatpush.msra.mxu0 %v1511
          %1830 = vmatpush.msra.mxu0 %v1510
          %1831 = vmatpush.msra.mxu0 %v1509
          %1832 = vmatpush.msra.mxu0 %v1508
          %1833 = vmatpush.msra.mxu0 %v1507
          %1834 = vmatpush.msra.mxu0 %v1506
          %1835 = vmatpush.msra.mxu0 %v1505
          %1836 = vmatpush.msra.mxu0 %v1504
          %1837 = vmatpush.msra.mxu0 %v1503
          %1838 = vmatmul.f32.gmra.mxu0 %v1621
          %v1839 = vpop.f32.mrf.mxu0
          %v1840 = vadd.f32 %v1820, %v1839
          %1841 = vdwg.mxu0
          %1842 = vmatpush.msra.mxu0 %v1534
          %1843 = vmatpush.msra.mxu0 %v1533
          %1844 = vmatpush.msra.mxu0 %v1532
          %1845 = vmatpush.msra.mxu0 %v1531
          %1846 = vmatpush.msra.mxu0 %v1530
          %1847 = vmatpush.msra.mxu0 %v1529
          %1848 = vmatpush.msra.mxu0 %v1528
          %1849 = vmatpush.msra.mxu0 %v1527
          %1850 = vmatpush.msra.mxu0 %v1526
          %1851 = vmatpush.msra.mxu0 %v1525
          %1852 = vmatpush.msra.mxu0 %v1524
          %1853 = vmatpush.msra.mxu0 %v1523
          %1854 = vmatpush.msra.mxu0 %v1522
          %1855 = vmatpush.msra.mxu0 %v1521
          %1856 = vmatpush.msra.mxu0 %v1520
          %1857 = vmatpush.msra.mxu0 %v1519
          %1858 = vmatmul.f32.gmra.mxu0 %v1622
          %v1859 = vpop.f32.mrf.mxu0
          %v1860 = vadd.f32 %v1840, %v1859
          %1861 = vdwg.mxu0
          %1862 = vmatpush.msra.mxu0 %v1550
          %1863 = vmatpush.msra.mxu0 %v1549
          %1864 = vmatpush.msra.mxu0 %v1548
          %1865 = vmatpush.msra.mxu0 %v1547
          %1866 = vmatpush.msra.mxu0 %v1546
          %1867 = vmatpush.msra.mxu0 %v1545
          %1868 = vmatpush.msra.mxu0 %v1544
          %1869 = vmatpush.msra.mxu0 %v1543
          %1870 = vmatpush.msra.mxu0 %v1542
          %1871 = vmatpush.msra.mxu0 %v1541
          %1872 = vmatpush.msra.mxu0 %v1540
          %1873 = vmatpush.msra.mxu0 %v1539
          %1874 = vmatpush.msra.mxu0 %v1538
          %1875 = vmatpush.msra.mxu0 %v1537
          %1876 = vmatpush.msra.mxu0 %v1536
          %1877 = vmatpush.msra.mxu0 %v1535
          %1878 = vmatmul.f32.gmra.mxu0 %v1623
          %v1879 = vpop.f32.mrf.mxu0
          %v1880 = vadd.f32 %v1860, %v1879
          %1881 = vdwg.mxu0
          %1882 = vmatpush.msra.mxu0 %v1566
          %1883 = vmatpush.msra.mxu0 %v1565
          %1884 = vmatpush.msra.mxu0 %v1564
          %1885 = vmatpush.msra.mxu0 %v1563
          %1886 = vmatpush.msra.mxu0 %v1562
          %1887 = vmatpush.msra.mxu0 %v1561
          %1888 = vmatpush.msra.mxu0 %v1560
          %1889 = vmatpush.msra.mxu0 %v1559
          %1890 = vmatpush.msra.mxu0 %v1558
          %1891 = vmatpush.msra.mxu0 %v1557
          %1892 = vmatpush.msra.mxu0 %v1556
          %1893 = vmatpush.msra.mxu0 %v1555
          %1894 = vmatpush.msra.mxu0 %v1554
          %1895 = vmatpush.msra.mxu0 %v1553
          %1896 = vmatpush.msra.mxu0 %v1552
          %1897 = vmatpush.msra.mxu0 %v1551
          %1898 = vmatmul.f32.gmra.mxu0 %v1624
          %v1899 = vpop.f32.mrf.mxu0
          %v1900 = vadd.f32 %v1880, %v1899
          %1901 = vdwg.mxu0
          %1902 = vmatpush.msra.mxu0 %v1582
          %1903 = vmatpush.msra.mxu0 %v1581
          %1904 = vmatpush.msra.mxu0 %v1580
          %1905 = vmatpush.msra.mxu0 %v1579
          %1906 = vmatpush.msra.mxu0 %v1578
          %1907 = vmatpush.msra.mxu0 %v1577
          %1908 = vmatpush.msra.mxu0 %v1576
          %1909 = vmatpush.msra.mxu0 %v1575
          %1910 = vmatpush.msra.mxu0 %v1574
          %1911 = vmatpush.msra.mxu0 %v1573
          %1912 = vmatpush.msra.mxu0 %v1572
          %1913 = vmatpush.msra.mxu0 %v1571
          %1914 = vmatpush.msra.mxu0 %v1570
          %1915 = vmatpush.msra.mxu0 %v1569
          %1916 = vmatpush.msra.mxu0 %v1568
          %1917 = vmatpush.msra.mxu0 %v1567
          %1918 = vmatmul.f32.gmra.mxu0 %v1625
          %v1919 = vpop.f32.mrf.mxu0
          %v1920 = vadd.f32 %v1900, %v1919
          %1921 = vdwg.mxu0
          %1922 = vmatpush.msra.mxu0 %v1598
          %1923 = vmatpush.msra.mxu0 %v1597
          %1924 = vmatpush.msra.mxu0 %v1596
          %1925 = vmatpush.msra.mxu0 %v1595
          %1926 = vmatpush.msra.mxu0 %v1594
          %1927 = vmatpush.msra.mxu0 %v1593
          %1928 = vmatpush.msra.mxu0 %v1592
          %1929 = vmatpush.msra.mxu0 %v1591
          %1930 = vmatpush.msra.mxu0 %v1590
          %1931 = vmatpush.msra.mxu0 %v1589
          %1932 = vmatpush.msra.mxu0 %v1588
          %1933 = vmatpush.msra.mxu0 %v1587
          %1934 = vmatpush.msra.mxu0 %v1586
          %1935 = vmatpush.msra.mxu0 %v1585
          %1936 = vmatpush.msra.mxu0 %v1584
          %1937 = vmatpush.msra.mxu0 %v1583
          %1938 = vmatmul.f32.gmra.mxu0 %v1626
          %v1939 = vpop.f32.mrf.mxu0
          %v1940 = vadd.f32 %v1920, %v1939
          %1941 = vdwg.mxu0
          %v1942 = vmul.f32 %v1940, 0.5
          %v1943 = vmul.f32 %v1940, 0.70710677
          %v1944 = vmul.f32 %v1943, %v1943
          %v1945 = vmin.f32 16.0, %v1944
          %v1946 = vmul.f32 %v1945, 2.1237322e-06
          %v1947 = vadd.f32 %v1946, 0.00028619796
          %v1948 = vmul.f32 %v1945, %v1947
          %v1949 = vadd.f32 %v1948, 0.0036580483
          %v1950 = vmul.f32 %v1945, %v1949
          %v1951 = vadd.f32 %v1950, 0.05243302
          %v1952 = vmul.f32 %v1945, %v1951
          %v1953 = vadd.f32 %v1952, 0.18741608
          %v1954 = vmul.f32 %v1945, %v1953
          %v1955 = vadd.f32 %v1954, 1.1283791
          %v1956 = vmul.f32 %v1943, %v1955
          %v1957 = vmul.f32 %v1945, 3.8918573e-05
          %v1958 = vadd.f32 %v1957, 0.001143296
          %v1959 = vmul.f32 %v1945, %v1958
          %v1960 = vadd.f32 %v1959, 0.014752088
          %v1961 = vmul.f32 %v1945, %v1960
          %v1962 = vadd.f32 %v1961, 0.112945676
          %v1963 = vmul.f32 %v1945, %v1962
          %v1964 = vadd.f32 %v1963, 0.4994258
          %v1965 = vmul.f32 %v1945, %v1964
          %v1966 = vadd.f32 %v1965, 1.0
          %v1967 = vrcp.pop %v1966
          %v1968 = vmul.f32 %v1966, %v1967
          %v1969 = vsub.f32 1.0, %v1968
          %v1970 = vmul.f32 %v1967, %v1969
          %v1971 = vadd.f32 %v1967, %v1970
          %vm1972 = vweird.f32 %v1966
          %vm1973 = vweird.f32 %v1967
          %vm1974 = vmor %vm1972, %vm1973
          %v1975 = vsel %vm1974, %v1967, %v1971
          %v1976 = vand.u32 2147483647, %v1966
          %vm1977 = vcmp.eq.f32.partialorder %v1976, 8.507059e+37
          %v1978 = vand.u32 %v1966, 2147483648
          %v1979 = vor.u32 1.1754944e-38, %v1978
          %v1980 = vsel %vm1977, %v1979, %v1975
          %v1981 = vmul.f32 %v1956, %v1980
          %v1982 = vmin.f32 %v1981, 1.0
          %v1983 = vmax.f32 %v1982, -1.0
          %v1984 = vadd.f32 %v1983, 1.0
          %v1985 = vmul.f32 %v1942, %v1984
          %v1986 = vld [vmem:[%s6] sm:$0xff]
          %v1987 = vld [vmem:[%s6 + $0x8] sm:$0xff]
          %v1988 = vld [vmem:[%s6 + $0x10] sm:$0xff]
          %v1989 = vld [vmem:[%s6 + $0x18] sm:$0xff]
          %v1990 = vld [vmem:[%s6 + $0x20] sm:$0xff]
          %v1991 = vld [vmem:[%s6 + $0x28] sm:$0xff]
          %v1992 = vld [vmem:[%s6 + $0x30] sm:$0xff]
          %v1993 = vld [vmem:[%s6 + $0x38] sm:$0xff]
          %v1994 = vld [vmem:[%s6 + $0x40] sm:$0xff]
          %v1995 = vld [vmem:[%s6 + $0x48] sm:$0xff]
          %v1996 = vld [vmem:[%s6 + $0x50] sm:$0xff]
          %v1997 = vld [vmem:[%s6 + $0x58] sm:$0xff]
          %v1998 = vld [vmem:[%s6 + $0x60] sm:$0xff]
          %v1999 = vld [vmem:[%s6 + $0x68] sm:$0xff]
          %v2000 = vld [vmem:[%s6 + $0x70] sm:$0xff]
          %v2001 = vld [vmem:[%s6 + $0x78] sm:$0xff]
          %v2002 = vld [vmem:[%s7] sm:$0x1]
          %v2004 = vperm.slane %v2002, 0
          %2006 = vmatpush.msra.mxu0 %v2001
          %2007 = vmatpush.msra.mxu0 %v2000
          %2008 = vmatpush.msra.mxu0 %v1999
          %2009 = vmatpush.msra.mxu0 %v1998
          %2010 = vmatpush.msra.mxu0 %v1997
          %2011 = vmatpush.msra.mxu0 %v1996
          %2012 = vmatpush.msra.mxu0 %v1995
          %2013 = vmatpush.msra.mxu0 %v1994
          %2014 = vmatpush.msra.mxu0 %v1993
          %2015 = vmatpush.msra.mxu0 %v1992
          %2016 = vmatpush.msra.mxu0 %v1991
          %2017 = vmatpush.msra.mxu0 %v1990
          %2018 = vmatpush.msra.mxu0 %v1989
          %2019 = vmatpush.msra.mxu0 %v1988
          %2020 = vmatpush.msra.mxu0 %v1987
          %2021 = vmatpush.msra.mxu0 %v1986
          %2022 = vmatmul.f32.gmra.mxu0 %v1985
          %v2023 = vpop.f32.mrf.mxu0
          %v2024 = vadd.f32 %v2004, %v2023
          %2025 = vdwg.mxu0
          %v2026 = vmul.f32 %v2024, 0.5
          %v2027 = vmul.f32 %v2024, 0.70710677
          %v2028 = vmul.f32 %v2027, %v2027
          %v2029 = vmin.f32 16.0, %v2028
          %v2030 = vmul.f32 %v2029, 2.1237322e-06
          %v2031 = vadd.f32 %v2030, 0.00028619796
          %v2032 = vmul.f32 %v2029, %v2031
          %v2033 = vadd.f32 %v2032, 0.0036580483
          %v2034 = vmul.f32 %v2029, %v2033
          %v2035 = vadd.f32 %v2034, 0.05243302
          %v2036 = vmul.f32 %v2029, %v2035
          %v2037 = vadd.f32 %v2036, 0.18741608
          %v2038 = vmul.f32 %v2029, %v2037
          %v2039 = vadd.f32 %v2038, 1.1283791
          %v2040 = vmul.f32 %v2027, %v2039
          %v2041 = vmul.f32 %v2029, 3.8918573e-05
          %v2042 = vadd.f32 %v2041, 0.001143296
          %v2043 = vmul.f32 %v2029, %v2042
          %v2044 = vadd.f32 %v2043, 0.014752088
          %v2045 = vmul.f32 %v2029, %v2044
          %v2046 = vadd.f32 %v2045, 0.112945676
          %v2047 = vmul.f32 %v2029, %v2046
          %v2048 = vadd.f32 %v2047, 0.4994258
          %v2049 = vmul.f32 %v2029, %v2048
          %v2050 = vadd.f32 %v2049, 1.0
          %v2051 = vrcp.pop %v2050
          %v2052 = vmul.f32 %v2050, %v2051
          %v2053 = vsub.f32 1.0, %v2052
          %v2054 = vmul.f32 %v2051, %v2053
          %v2055 = vadd.f32 %v2051, %v2054
          %vm2056 = vweird.f32 %v2050
          %vm2057 = vweird.f32 %v2051
          %vm2058 = vmor %vm2056, %vm2057
          %v2059 = vsel %vm2058, %v2051, %v2055
          %v2060 = vand.u32 2147483647, %v2050
          %vm2061 = vcmp.eq.f32.partialorder %v2060, 8.507059e+37
          %v2062 = vand.u32 %v2050, 2147483648
          %v2063 = vor.u32 1.1754944e-38, %v2062
          %v2064 = vsel %vm2061, %v2063, %v2059
          %v2065 = vmul.f32 %v2040, %v2064
          %v2066 = vmin.f32 %v2065, 1.0
          %v2067 = vmax.f32 %v2066, -1.0
          %v2068 = vadd.f32 %v2067, 1.0
          %v2069 = vmul.f32 %v2026, %v2068
          %2070 = vmatpush.xpose.msra.mxu0 0.0
          %2071 = vmatpush.xpose.msra.mxu0 0.0
          %2072 = vmatpush.xpose.msra.mxu0 0.0
          %2073 = vmatpush.xpose.msra.mxu0 0.0
          %2074 = vmatpush.xpose.msra.mxu0 0.0
          %2075 = vmatpush.xpose.msra.mxu0 0.0
          %2076 = vmatpush.xpose.msra.mxu0 0.0
          %2077 = vmatpush.xpose.msra.mxu0 0.0
          %2078 = vmatpush.xpose.msra.mxu0 0.0
          %2079 = vmatpush.xpose.msra.mxu0 0.0
          %2080 = vmatpush.xpose.msra.mxu0 0.0
          %2081 = vmatpush.xpose.msra.mxu0 0.0
          %2082 = vmatpush.xpose.msra.mxu0 %v1354
          %2083 = vmatpush.xpose.msra.mxu0 %v1352
          %2084 = vmatpush.xpose.msra.mxu0 %v1350
          %2085 = vmatpush.xpose.msra.mxu0 %v1348
          %2086 = vmatmul.f32.gmra.mxu0 %v2069
          %v2087 = vpop.f32.mrf.mxu0
          %v2088 = vadd.f32 0.0, %v2087
          %2089 = vdwg.mxu0
          %v2090 = vmul.f32 %v2088, 0.1
          %v2091 = vlaneseq
          %v2092 = vand.u32 %v2091, 127
          %v2093 = vlaneseq
          %v2094 = vshrl.u32 %v2093, 7
          %v2095 = vmul.u32 %v2094, 15
          %vm2096 = vcmp.ge.s32.totalorder %v2092, %v2095
          %v2097 = vadd.s32 %v2094, 1
          %v2098 = vmul.u32 %v2097, 15
          %vm2099 = vcmp.lt.s32.totalorder %v2092, %v2098
          %vm2100 = vmand %vm2096, %vm2099
          %v2101 = vsel %vm2100, %v2090, -1e+30
          %vm2102 = vcmask 254976
          %v2103 = vsel %vm2102, %v2101, -inf
          %2104 = vmax.xlane.f32.xlu0 %v2103
          %v2105 = vpop.xlane.xlu0 %2104
          %v2106 = vsub.f32 %v2101, %v2105
          %v2107 = vmul.f32 %v2106, 1.442695
          %v2108 = vpow.pop %v2107
          %v2109 = vsel %vm2102, %v2108, 0.0
          %2110 = vadd.xlane.f32.xlu0 %v2109
          %v2111 = vpop.xlane.xlu0 %2110
          %v2112 = vrcp.pop %v2111
          %v2113 = vmul.f32 %v2111, %v2112
          %v2114 = vsub.f32 1.0, %v2113
          %v2115 = vmul.f32 %v2112, %v2114
          %v2116 = vadd.f32 %v2112, %v2115
          %vm2117 = vweird.f32 %v2111
          %vm2118 = vweird.f32 %v2112
          %vm2119 = vmor %vm2117, %vm2118
          %v2120 = vsel %vm2119, %v2112, %v2116
          %v2121 = vand.u32 2147483647, %v2111
          %vm2122 = vcmp.eq.f32.partialorder %v2121, 8.507059e+37
          %v2123 = vand.u32 %v2111, 2147483648
          %v2124 = vor.u32 1.1754944e-38, %v2123
          %v2125 = vsel %vm2122, %v2124, %v2120
          %v2126 = vmul.f32 %v2108, %v2125
          %vm2127 = vcmask 261120
          %v2129 = vsel %vm2127, %v2126, 0
          %2131 = vmatpush.msra.mxu0 0.0
          %2132 = vmatpush.msra.mxu0 0.0
          %2133 = vmatpush.msra.mxu0 0.0
          %2134 = vmatpush.msra.mxu0 0.0
          %2135 = vmatpush.msra.mxu0 0.0
          %2136 = vmatpush.msra.mxu0 0.0
          %2137 = vmatpush.msra.mxu0 0.0
          %2138 = vmatpush.msra.mxu0 0.0
          %2139 = vmatpush.msra.mxu0 0.0
          %2140 = vmatpush.msra.mxu0 0.0
          %2141 = vmatpush.msra.mxu0 0.0
          %2142 = vmatpush.msra.mxu0 0.0
          %2143 = vmatpush.msra.mxu0 %v1353
          %2144 = vmatpush.msra.mxu0 %v1351
          %2145 = vmatpush.msra.mxu0 %v1349
          %2146 = vmatpush.msra.mxu0 %v1347
          %2147 = vmatmul.f32.gmra.mxu0 %v2129
          %v2148 = vpop.f32.mrf.mxu0
          %v2149 = vadd.f32 0.0, %v2148
          %2150 = vdwg.mxu0
          %v2151 = vld [vmem:[%s8] sm:$0xff]
          %v2152 = vld [vmem:[%s8 + $0x8] sm:$0xff]
          %v2153 = vld [vmem:[%s8 + $0x10] sm:$0xff]
          %v2154 = vld [vmem:[%s8 + $0x18] sm:$0xff]
          %v2155 = vld [vmem:[%s8 + $0x20] sm:$0xff]
          %v2156 = vld [vmem:[%s8 + $0x28] sm:$0xff]
          %v2157 = vld [vmem:[%s8 + $0x30] sm:$0xff]
          %v2158 = vld [vmem:[%s8 + $0x38] sm:$0xff]
          %v2159 = vld [vmem:[%s8 + $0x40] sm:$0xff]
          %v2160 = vld [vmem:[%s8 + $0x48] sm:$0xff]
          %v2161 = vld [vmem:[%s8 + $0x50] sm:$0xff]
          %v2162 = vld [vmem:[%s8 + $0x58] sm:$0xff]
          %v2163 = vld [vmem:[%s8 + $0x60] sm:$0xff]
          %v2164 = vld [vmem:[%s8 + $0x68] sm:$0xff]
          %v2165 = vld [vmem:[%s8 + $0x70] sm:$0xff]
          %v2166 = vld [vmem:[%s8 + $0x78] sm:$0xff]
          %v2167 = vld [vmem:[%s9] sm:$0x1]
          %v2169 = vperm.slane %v2167, 0
          %2171 = vmatpush.msra.mxu0 %v2166
          %2172 = vmatpush.msra.mxu0 %v2165
          %2173 = vmatpush.msra.mxu0 %v2164
          %2174 = vmatpush.msra.mxu0 %v2163
          %2175 = vmatpush.msra.mxu0 %v2162
          %2176 = vmatpush.msra.mxu0 %v2161
          %2177 = vmatpush.msra.mxu0 %v2160
          %2178 = vmatpush.msra.mxu0 %v2159
          %2179 = vmatpush.msra.mxu0 %v2158
          %2180 = vmatpush.msra.mxu0 %v2157
          %2181 = vmatpush.msra.mxu0 %v2156
          %2182 = vmatpush.msra.mxu0 %v2155
          %2183 = vmatpush.msra.mxu0 %v2154
          %2184 = vmatpush.msra.mxu0 %v2153
          %2185 = vmatpush.msra.mxu0 %v2152
          %2186 = vmatpush.msra.mxu0 %v2151
          %2187 = vmatmul.f32.gmra.mxu0 %v2149
          %v2188 = vpop.f32.mrf.mxu0
          %v2189 = vadd.f32 %v2169, %v2188
          %2190 = vdwg.mxu0
          %v2191 = vmul.f32 %v2189, 0.5
          %v2192 = vmul.f32 %v2189, 0.70710677
          %v2193 = vmul.f32 %v2192, %v2192
          %v2194 = vmin.f32 16.0, %v2193
          %v2195 = vmul.f32 %v2194, 2.1237322e-06
          %v2196 = vadd.f32 %v2195, 0.00028619796
          %v2197 = vmul.f32 %v2194, %v2196
          %v2198 = vadd.f32 %v2197, 0.0036580483
          %v2199 = vmul.f32 %v2194, %v2198
          %v2200 = vadd.f32 %v2199, 0.05243302
          %v2201 = vmul.f32 %v2194, %v2200
          %v2202 = vadd.f32 %v2201, 0.18741608
          %v2203 = vmul.f32 %v2194, %v2202
          %v2204 = vadd.f32 %v2203, 1.1283791
          %v2205 = vmul.f32 %v2192, %v2204
          %v2206 = vmul.f32 %v2194, 3.8918573e-05
          %v2207 = vadd.f32 %v2206, 0.001143296
          %v2208 = vmul.f32 %v2194, %v2207
          %v2209 = vadd.f32 %v2208, 0.014752088
          %v2210 = vmul.f32 %v2194, %v2209
          %v2211 = vadd.f32 %v2210, 0.112945676
          %v2212 = vmul.f32 %v2194, %v2211
          %v2213 = vadd.f32 %v2212, 0.4994258
          %v2214 = vmul.f32 %v2194, %v2213
          %v2215 = vadd.f32 %v2214, 1.0
          %v2216 = vrcp.pop %v2215
          %v2217 = vmul.f32 %v2215, %v2216
          %v2218 = vsub.f32 1.0, %v2217
          %v2219 = vmul.f32 %v2216, %v2218
          %v2220 = vadd.f32 %v2216, %v2219
          %vm2221 = vweird.f32 %v2215
          %vm2222 = vweird.f32 %v2216
          %vm2223 = vmor %vm2221, %vm2222
          %v2224 = vsel %vm2223, %v2216, %v2220
          %v2225 = vand.u32 2147483647, %v2215
          %vm2226 = vcmp.eq.f32.partialorder %v2225, 8.507059e+37
          %v2227 = vand.u32 %v2215, 2147483648
          %v2228 = vor.u32 1.1754944e-38, %v2227
          %v2229 = vsel %vm2226, %v2228, %v2224
          %v2230 = vmul.f32 %v2205, %v2229
          %v2231 = vmin.f32 %v2230, 1.0
          %v2232 = vmax.f32 %v2231, -1.0
          %v2233 = vadd.f32 %v2232, 1.0
          %v2234 = vmul.f32 %v2191, %v2233
          %v2235 = vld [vmem:[%s10] sm:$0xff]
          %v2236 = vld [vmem:[%s10 + $0x8] sm:$0xff]
          %v2237 = vld [vmem:[%s10 + $0x10] sm:$0xff]
          %v2238 = vld [vmem:[%s10 + $0x18] sm:$0xff]
          %v2239 = vld [vmem:[%s10 + $0x20] sm:$0xff]
          %v2240 = vld [vmem:[%s10 + $0x28] sm:$0xff]
          %v2241 = vld [vmem:[%s10 + $0x30] sm:$0xff]
          %v2242 = vld [vmem:[%s10 + $0x38] sm:$0xff]
          %v2243 = vld [vmem:[%s10 + $0x40] sm:$0xff]
          %v2244 = vld [vmem:[%s10 + $0x48] sm:$0xff]
          %v2245 = vld [vmem:[%s10 + $0x50] sm:$0xff]
          %v2246 = vld [vmem:[%s10 + $0x58] sm:$0xff]
          %v2247 = vld [vmem:[%s10 + $0x60] sm:$0xff]
          %v2248 = vld [vmem:[%s10 + $0x68] sm:$0xff]
          %v2249 = vld [vmem:[%s10 + $0x70] sm:$0xff]
          %v2250 = vld [vmem:[%s10 + $0x78] sm:$0xff]
          %v2251 = vld [vmem:[%s10 + $0x80] sm:$0xff]
          %v2252 = vld [vmem:[%s10 + $0x88] sm:$0xff]
          %v2253 = vld [vmem:[%s10 + $0x90] sm:$0xff]
          %v2254 = vld [vmem:[%s10 + $0x98] sm:$0xff]
          %v2255 = vld [vmem:[%s10 + $0xa0] sm:$0xff]
          %v2256 = vld [vmem:[%s10 + $0xa8] sm:$0xff]
          %v2257 = vld [vmem:[%s10 + $0xb0] sm:$0xff]
          %v2258 = vld [vmem:[%s10 + $0xb8] sm:$0xff]
          %v2259 = vld [vmem:[%s10 + $0xc0] sm:$0xff]
          %v2260 = vld [vmem:[%s10 + $0xc8] sm:$0xff]
          %v2261 = vld [vmem:[%s10 + $0xd0] sm:$0xff]
          %v2262 = vld [vmem:[%s10 + $0xd8] sm:$0xff]
          %v2263 = vld [vmem:[%s10 + $0xe0] sm:$0xff]
          %v2264 = vld [vmem:[%s10 + $0xe8] sm:$0xff]
          %v2265 = vld [vmem:[%s10 + $0xf0] sm:$0xff]
          %v2266 = vld [vmem:[%s10 + $0xf8] sm:$0xff]
          %v2267 = vld [vmem:[%s11] sm:$0x3]
          %v2269 = vperm.slane %v2267, 0
          %v2270 = vperm.slane %v2267, 1
          %2273 = vmatpush.msra.mxu0 %v2265
          %2274 = vmatpush.msra.mxu0 %v2263
          %2275 = vmatpush.msra.mxu0 %v2261
          %2276 = vmatpush.msra.mxu0 %v2259
          %2277 = vmatpush.msra.mxu0 %v2257
          %2278 = vmatpush.msra.mxu0 %v2255
          %2279 = vmatpush.msra.mxu0 %v2253
          %2280 = vmatpush.msra.mxu0 %v2251
          %2281 = vmatpush.msra.mxu0 %v2249
          %2282 = vmatpush.msra.mxu0 %v2247
          %2283 = vmatpush.msra.mxu0 %v2245
          %2284 = vmatpush.msra.mxu0 %v2243
          %2285 = vmatpush.msra.mxu0 %v2241
          %2286 = vmatpush.msra.mxu0 %v2239
          %2287 = vmatpush.msra.mxu0 %v2237
          %2288 = vmatpush.msra.mxu0 %v2235
          %2289 = vmatmul.f32.gmra.mxu0 %v2234
          %v2290 = vpop.f32.mrf.mxu0
          %v2291 = vadd.f32 %v2269, %v2290
          %2292 = vdwg.mxu0
          %2293 = vmatpush.msra.mxu0 %v2266
          %2294 = vmatpush.msra.mxu0 %v2264
          %2295 = vmatpush.msra.mxu0 %v2262
          %2296 = vmatpush.msra.mxu0 %v2260
          %2297 = vmatpush.msra.mxu0 %v2258
          %2298 = vmatpush.msra.mxu0 %v2256
          %2299 = vmatpush.msra.mxu0 %v2254
          %2300 = vmatpush.msra.mxu0 %v2252
          %2301 = vmatpush.msra.mxu0 %v2250
          %2302 = vmatpush.msra.mxu0 %v2248
          %2303 = vmatpush.msra.mxu0 %v2246
          %2304 = vmatpush.msra.mxu0 %v2244
          %2305 = vmatpush.msra.mxu0 %v2242
          %2306 = vmatpush.msra.mxu0 %v2240
          %2307 = vmatpush.msra.mxu0 %v2238
          %2308 = vmatpush.msra.mxu0 %v2236
          %2309 = vmatmul.f32.gmra.mxu0 %v2234
          %v2310 = vpop.f32.mrf.mxu0
          %v2311 = vadd.f32 %v2270, %v2310
          %2312 = vdwg.mxu0
          %v2313 = vmul.f32 %v2291, 0.5
          %v2314 = vmul.f32 %v2311, 0.5
          %v2315 = vmul.f32 %v2291, 0.70710677
          %v2316 = vmul.f32 %v2311, 0.70710677
          %v2317 = vmul.f32 %v2315, %v2315
          %v2318 = vmin.f32 16.0, %v2317
          %v2319 = vmul.f32 %v2318, 2.1237322e-06
          %v2320 = vadd.f32 %v2319, 0.00028619796
          %v2321 = vmul.f32 %v2318, %v2320
          %v2322 = vadd.f32 %v2321, 0.0036580483
          %v2323 = vmul.f32 %v2318, %v2322
          %v2324 = vadd.f32 %v2323, 0.05243302
          %v2325 = vmul.f32 %v2318, %v2324
          %v2326 = vadd.f32 %v2325, 0.18741608
          %v2327 = vmul.f32 %v2318, %v2326
          %v2328 = vadd.f32 %v2327, 1.1283791
          %v2329 = vmul.f32 %v2315, %v2328
          %v2330 = vmul.f32 %v2318, 3.8918573e-05
          %v2331 = vadd.f32 %v2330, 0.001143296
          %v2332 = vmul.f32 %v2318, %v2331
          %v2333 = vadd.f32 %v2332, 0.014752088
          %v2334 = vmul.f32 %v2318, %v2333
          %v2335 = vadd.f32 %v2334, 0.112945676
          %v2336 = vmul.f32 %v2318, %v2335
          %v2337 = vadd.f32 %v2336, 0.4994258
          %v2338 = vmul.f32 %v2318, %v2337
          %v2339 = vadd.f32 %v2338, 1.0
          %v2340 = vrcp.pop %v2339
          %v2341 = vmul.f32 %v2339, %v2340
          %v2342 = vsub.f32 1.0, %v2341
          %v2343 = vmul.f32 %v2340, %v2342
          %v2344 = vadd.f32 %v2340, %v2343
          %vm2345 = vweird.f32 %v2339
          %vm2346 = vweird.f32 %v2340
          %vm2347 = vmor %vm2345, %vm2346
          %v2348 = vsel %vm2347, %v2340, %v2344
          %v2349 = vand.u32 2147483647, %v2339
          %vm2350 = vcmp.eq.f32.partialorder %v2349, 8.507059e+37
          %v2351 = vand.u32 %v2339, 2147483648
          %v2352 = vor.u32 1.1754944e-38, %v2351
          %v2353 = vsel %vm2350, %v2352, %v2348
          %v2354 = vmul.f32 %v2329, %v2353
          %v2355 = vmin.f32 %v2354, 1.0
          %v2356 = vmax.f32 %v2355, -1.0
          %v2357 = vmul.f32 %v2316, %v2316
          %v2358 = vmin.f32 16.0, %v2357
          %v2359 = vmul.f32 %v2358, 2.1237322e-06
          %v2360 = vadd.f32 %v2359, 0.00028619796
          %v2361 = vmul.f32 %v2358, %v2360
          %v2362 = vadd.f32 %v2361, 0.0036580483
          %v2363 = vmul.f32 %v2358, %v2362
          %v2364 = vadd.f32 %v2363, 0.05243302
          %v2365 = vmul.f32 %v2358, %v2364
          %v2366 = vadd.f32 %v2365, 0.18741608
          %v2367 = vmul.f32 %v2358, %v2366
          %v2368 = vadd.f32 %v2367, 1.1283791
          %v2369 = vmul.f32 %v2316, %v2368
          %v2370 = vmul.f32 %v2358, 3.8918573e-05
          %v2371 = vadd.f32 %v2370, 0.001143296
          %v2372 = vmul.f32 %v2358, %v2371
          %v2373 = vadd.f32 %v2372, 0.014752088
          %v2374 = vmul.f32 %v2358, %v2373
          %v2375 = vadd.f32 %v2374, 0.112945676
          %v2376 = vmul.f32 %v2358, %v2375
          %v2377 = vadd.f32 %v2376, 0.4994258
          %v2378 = vmul.f32 %v2358, %v2377
          %v2379 = vadd.f32 %v2378, 1.0
          %v2380 = vrcp.pop %v2379
          %v2381 = vmul.f32 %v2379, %v2380
          %v2382 = vsub.f32 1.0, %v2381
          %v2383 = vmul.f32 %v2380, %v2382
          %v2384 = vadd.f32 %v2380, %v2383
          %vm2385 = vweird.f32 %v2379
          %vm2386 = vweird.f32 %v2380
          %vm2387 = vmor %vm2385, %vm2386
          %v2388 = vsel %vm2387, %v2380, %v2384
          %v2389 = vand.u32 2147483647, %v2379
          %vm2390 = vcmp.eq.f32.partialorder %v2389, 8.507059e+37
          %v2391 = vand.u32 %v2379, 2147483648
          %v2392 = vor.u32 1.1754944e-38, %v2391
          %v2393 = vsel %vm2390, %v2392, %v2388
          %v2394 = vmul.f32 %v2369, %v2393
          %v2395 = vmin.f32 %v2394, 1.0
          %v2396 = vmax.f32 %v2395, -1.0
          %v2397 = vadd.f32 %v2356, 1.0
          %v2398 = vadd.f32 %v2396, 1.0
          %v2399 = vmul.f32 %v2313, %v2397
          %v2400 = vmul.f32 %v2314, %v2398
          %v2403 = vrot.slane %v2400, 6
          %vm2404 = vcmask 1041408
          %v2405 = vsel %vm2404, %v2399, %v2403
          %2407 = vst [vmem:[#allocation2] sm:$0xf] %v2405
        $region106: #{net_forward.1} parent=97 // pred_fallthru
          _
        %v2408 = vld [vmem:[#allocation2] sm:$0xf]
        %2410 = vst [vmem:[#allocation1] ss:$4 sm:$0xff] %v2408
        %v2411 = vld.sshfl [vmem:[#allocation1] sm:$0xff pattern:$0x73625140]
        %v2412 = vld.sshfl [vmem:[#allocation1 + $0x8] sm:$0xff pattern:$0x73625140]
        %v2415 = vpack.c.bf16 %v2411, %v2411
        %v2416 = vpack.c.bf16 %v2412, %v2412
        %v2417 = vld [vmem:[%s845] sm:$0xff]
        %v2418 = vld [vmem:[%s845 + $0x8] sm:$0xff]
        %v2419 = vld [vmem:[%s845 + $0x10] sm:$0xff]
        %v2420 = vld [vmem:[%s845 + $0x18] sm:$0xff]
        %v2421 = vld [vmem:[%s845 + $0x20] sm:$0xff]
        %v2422 = vld [vmem:[%s845 + $0x28] sm:$0xf]
        %v2423 = vld [vmem:[%s845 + $0x2c] sm:$0xff]
        %v2424 = vld [vmem:[%s845 + $0x34] sm:$0xff]
        %v2425 = vld [vmem:[%s845 + $0x3c] sm:$0xff]
        %v2426 = vld [vmem:[%s845 + $0x44] sm:$0xff]
        %v2427 = vld [vmem:[%s845 + $0x4c] sm:$0xff]
        %v2428 = vld [vmem:[%s845 + $0x54] sm:$0xf]
        %v2429 = vld [vmem:[%s845 + $0x58] sm:$0xff]
        %v2430 = vld [vmem:[%s845 + $0x60] sm:$0xff]
        %v2431 = vld [vmem:[%s845 + $0x68] sm:$0xff]
        %v2432 = vld [vmem:[%s845 + $0x70] sm:$0xff]
        %v2433 = vld [vmem:[%s845 + $0x78] sm:$0xff]
        %v2434 = vld [vmem:[%s845 + $0x80] sm:$0xf]
        %v2435 = vld [vmem:[%s845 + $0x84] sm:$0xff]
        %v2436 = vld [vmem:[%s845 + $0x8c] sm:$0xff]
        %v2437 = vld [vmem:[%s845 + $0x94] sm:$0xff]
        %v2438 = vld [vmem:[%s845 + $0x9c] sm:$0xff]
        %v2439 = vld [vmem:[%s845 + $0xa4] sm:$0xff]
        %v2440 = vld [vmem:[%s845 + $0xac] sm:$0xf]
        %v2441 = vld [vmem:[%s845 + $0xb0] sm:$0xff]
        %v2442 = vld [vmem:[%s845 + $0xb8] sm:$0xff]
        %v2443 = vld [vmem:[%s845 + $0xc0] sm:$0xff]
        %v2444 = vld [vmem:[%s845 + $0xc8] sm:$0xff]
        %v2445 = vld [vmem:[%s845 + $0xd0] sm:$0xff]
        %v2446 = vld [vmem:[%s845 + $0xd8] sm:$0xf]
        %v2447 = vld [vmem:[%s845 + $0xdc] sm:$0xff]
        %v2448 = vld [vmem:[%s845 + $0xe4] sm:$0xff]
        %v2449 = vld [vmem:[%s845 + $0xec] sm:$0xff]
        %v2450 = vld [vmem:[%s845 + $0xf4] sm:$0xff]
        %v2451 = vld [vmem:[%s845 + $0xfc] sm:$0xff]
        %v2452 = vld [vmem:[%s845 + $0x104] sm:$0xf]
        %v2453 = vld [vmem:[%s845 + $0x108] sm:$0xff]
        %v2454 = vld [vmem:[%s845 + $0x110] sm:$0xff]
        %v2455 = vld [vmem:[%s845 + $0x118] sm:$0xff]
        %v2456 = vld [vmem:[%s845 + $0x120] sm:$0xff]
        %v2457 = vld [vmem:[%s845 + $0x128] sm:$0xff]
        %v2458 = vld [vmem:[%s845 + $0x130] sm:$0xf]
        %v2459 = vld [vmem:[%s845 + $0x134] sm:$0xff]
        %v2460 = vld [vmem:[%s845 + $0x13c] sm:$0xff]
        %v2461 = vld [vmem:[%s845 + $0x144] sm:$0xff]
        %v2462 = vld [vmem:[%s845 + $0x14c] sm:$0xff]
        %v2463 = vld [vmem:[%s845 + $0x154] sm:$0xff]
        %v2464 = vld [vmem:[%s845 + $0x15c] sm:$0xf]
        %v2465 = vld [vmem:[%s845 + $0x160] sm:$0xff]
        %v2466 = vld [vmem:[%s845 + $0x168] sm:$0xff]
        %v2467 = vld [vmem:[%s845 + $0x170] sm:$0xff]
        %v2468 = vld [vmem:[%s845 + $0x178] sm:$0xff]
        %v2469 = vld [vmem:[%s845 + $0x180] sm:$0xff]
        %v2470 = vld [vmem:[%s845 + $0x188] sm:$0xf]
        %v2471 = vld [vmem:[%s845 + $0x18c] sm:$0xff]
        %v2472 = vld [vmem:[%s845 + $0x194] sm:$0xff]
        %v2473 = vld [vmem:[%s845 + $0x19c] sm:$0xff]
        %v2474 = vld [vmem:[%s845 + $0x1a4] sm:$0xff]
        %v2475 = vld [vmem:[%s845 + $0x1ac] sm:$0xff]
        %v2476 = vld [vmem:[%s845 + $0x1b4] sm:$0xf]
        %v2477 = vld [vmem:[%s845 + $0x1b8] sm:$0xff]
        %v2478 = vld [vmem:[%s845 + $0x1c0] sm:$0xff]
        %v2479 = vld [vmem:[%s845 + $0x1c8] sm:$0xff]
        %v2480 = vld [vmem:[%s845 + $0x1d0] sm:$0xff]
        %v2481 = vld [vmem:[%s845 + $0x1d8] sm:$0xff]
        %v2482 = vld [vmem:[%s845 + $0x1e0] sm:$0xf]
        %v2483 = vld [vmem:[%s845 + $0x1e4] sm:$0xff]
        %v2484 = vld [vmem:[%s845 + $0x1ec] sm:$0xff]
        %v2485 = vld [vmem:[%s845 + $0x1f4] sm:$0xff]
        %v2486 = vld [vmem:[%s845 + $0x1fc] sm:$0xff]
        %v2487 = vld [vmem:[%s845 + $0x204] sm:$0xff]
        %v2488 = vld [vmem:[%s845 + $0x20c] sm:$0xf]
        %v2489 = vld [vmem:[%s845 + $0x210] sm:$0xff]
        %v2490 = vld [vmem:[%s845 + $0x218] sm:$0xff]
        %v2491 = vld [vmem:[%s845 + $0x220] sm:$0xff]
        %v2492 = vld [vmem:[%s845 + $0x228] sm:$0xff]
        %v2493 = vld [vmem:[%s845 + $0x230] sm:$0xff]
        %v2494 = vld [vmem:[%s845 + $0x238] sm:$0xf]
        %v2495 = vld [vmem:[%s845 + $0x23c] sm:$0xff]
        %v2496 = vld [vmem:[%s845 + $0x244] sm:$0xff]
        %v2497 = vld [vmem:[%s845 + $0x24c] sm:$0xff]
        %v2498 = vld [vmem:[%s845 + $0x254] sm:$0xff]
        %v2499 = vld [vmem:[%s845 + $0x25c] sm:$0xff]
        %v2500 = vld [vmem:[%s845 + $0x264] sm:$0xf]
        %v2501 = vld [vmem:[%s845 + $0x268] sm:$0xff]
        %v2502 = vld [vmem:[%s845 + $0x270] sm:$0xff]
        %v2503 = vld [vmem:[%s845 + $0x278] sm:$0xff]
        %v2504 = vld [vmem:[%s845 + $0x280] sm:$0xff]
        %v2505 = vld [vmem:[%s845 + $0x288] sm:$0xff]
        %v2506 = vld [vmem:[%s845 + $0x290] sm:$0xf]
        %v2507 = vld [vmem:[%s845 + $0x294] sm:$0xff]
        %v2508 = vld [vmem:[%s845 + $0x29c] sm:$0xff]
        %v2509 = vld [vmem:[%s845 + $0x2a4] sm:$0xff]
        %v2510 = vld [vmem:[%s845 + $0x2ac] sm:$0xff]
        %v2511 = vld [vmem:[%s845 + $0x2b4] sm:$0xff]
        %v2512 = vld [vmem:[%s845 + $0x2bc] sm:$0xf]
        %v2513 = vld [vmem:[%s845 + $0x2c0] sm:$0xff]
        %v2514 = vld [vmem:[%s845 + $0x2c8] sm:$0xff]
        %v2515 = vld [vmem:[%s845 + $0x2d0] sm:$0xff]
        %v2516 = vld [vmem:[%s845 + $0x2d8] sm:$0xff]
        %v2517 = vld [vmem:[%s845 + $0x2e0] sm:$0xff]
        %v2518 = vld [vmem:[%s845 + $0x2e8] sm:$0xf]
        %v2519 = vld [vmem:[%s845 + $0x2ec] sm:$0xff]
        %v2520 = vld [vmem:[%s845 + $0x2f4] sm:$0xff]
        %v2521 = vld [vmem:[%s845 + $0x2fc] sm:$0xff]
        %v2522 = vld [vmem:[%s845 + $0x304] sm:$0xff]
        %v2523 = vld [vmem:[%s845 + $0x30c] sm:$0xff]
        %v2524 = vld [vmem:[%s845 + $0x314] sm:$0xf]
        %v2525 = vld [vmem:[%s845 + $0x318] sm:$0xff]
        %v2526 = vld [vmem:[%s845 + $0x320] sm:$0xff]
        %v2527 = vld [vmem:[%s845 + $0x328] sm:$0xff]
        %v2528 = vld [vmem:[%s845 + $0x330] sm:$0xff]
        %v2529 = vld [vmem:[%s845 + $0x338] sm:$0xff]
        %v2530 = vld [vmem:[%s845 + $0x340] sm:$0xf]
        %v2531 = vld [vmem:[%s845 + $0x344] sm:$0xff]
        %v2532 = vld [vmem:[%s845 + $0x34c] sm:$0xff]
        %v2533 = vld [vmem:[%s845 + $0x354] sm:$0xff]
        %v2534 = vld [vmem:[%s845 + $0x35c] sm:$0xff]
        %v2535 = vld [vmem:[%s845 + $0x364] sm:$0xff]
        %v2536 = vld [vmem:[%s845 + $0x36c] sm:$0xf]
        %v2537 = vld [vmem:[%s845 + $0x370] sm:$0xff]
        %v2538 = vld [vmem:[%s845 + $0x378] sm:$0xff]
        %v2539 = vld [vmem:[%s845 + $0x380] sm:$0xff]
        %v2540 = vld [vmem:[%s845 + $0x388] sm:$0xff]
        %v2541 = vld [vmem:[%s845 + $0x390] sm:$0xff]
        %v2542 = vld [vmem:[%s845 + $0x398] sm:$0xf]
        %v2543 = vld [vmem:[%s845 + $0x39c] sm:$0xff]
        %v2544 = vld [vmem:[%s845 + $0x3a4] sm:$0xff]
        %v2545 = vld [vmem:[%s845 + $0x3ac] sm:$0xff]
        %v2546 = vld [vmem:[%s845 + $0x3b4] sm:$0xff]
        %v2547 = vld [vmem:[%s845 + $0x3bc] sm:$0xff]
        %v2548 = vld [vmem:[%s845 + $0x3c4] sm:$0xf]
        %v2549 = vld [vmem:[%s845 + $0x3c8] sm:$0xff]
        %v2550 = vld [vmem:[%s845 + $0x3d0] sm:$0xff]
        %v2551 = vld [vmem:[%s845 + $0x3d8] sm:$0xff]
        %v2552 = vld [vmem:[%s845 + $0x3e0] sm:$0xff]
        %v2553 = vld [vmem:[%s845 + $0x3e8] sm:$0xff]
        %v2554 = vld [vmem:[%s845 + $0x3f0] sm:$0xf]
        %v2555 = vld [vmem:[%s845 + $0x3f4] sm:$0xff]
        %v2556 = vld [vmem:[%s845 + $0x3fc] sm:$0xff]
        %v2557 = vld [vmem:[%s845 + $0x404] sm:$0xff]
        %v2558 = vld [vmem:[%s845 + $0x40c] sm:$0xff]
        %v2559 = vld [vmem:[%s845 + $0x414] sm:$0xff]
        %v2560 = vld [vmem:[%s845 + $0x41c] sm:$0xf]
        %v2561 = vld [vmem:[%s845 + $0x420] sm:$0xff]
        %v2562 = vld [vmem:[%s845 + $0x428] sm:$0xff]
        %v2563 = vld [vmem:[%s845 + $0x430] sm:$0xff]
        %v2564 = vld [vmem:[%s845 + $0x438] sm:$0xff]
        %v2565 = vld [vmem:[%s845 + $0x440] sm:$0xff]
        %v2566 = vld [vmem:[%s845 + $0x448] sm:$0xf]
        %v2567 = vld [vmem:[%s845 + $0x44c] sm:$0xff]
        %v2568 = vld [vmem:[%s845 + $0x454] sm:$0xff]
        %v2569 = vld [vmem:[%s845 + $0x45c] sm:$0xff]
        %v2570 = vld [vmem:[%s845 + $0x464] sm:$0xff]
        %v2571 = vld [vmem:[%s845 + $0x46c] sm:$0xff]
        %v2572 = vld [vmem:[%s845 + $0x474] sm:$0xf]
        %v2573 = vld [vmem:[%s845 + $0x478] sm:$0xff]
        %v2574 = vld [vmem:[%s845 + $0x480] sm:$0xff]
        %v2575 = vld [vmem:[%s845 + $0x488] sm:$0xff]
        %v2576 = vld [vmem:[%s845 + $0x490] sm:$0xff]
        %v2577 = vld [vmem:[%s845 + $0x498] sm:$0xff]
        %v2578 = vld [vmem:[%s845 + $0x4a0] sm:$0xf]
        %v2579 = vld [vmem:[%s845 + $0x4a4] sm:$0xff]
        %v2580 = vld [vmem:[%s845 + $0x4ac] sm:$0xff]
        %v2581 = vld [vmem:[%s845 + $0x4b4] sm:$0xff]
        %v2582 = vld [vmem:[%s845 + $0x4bc] sm:$0xff]
        %v2583 = vld [vmem:[%s845 + $0x4c4] sm:$0xff]
        %v2584 = vld [vmem:[%s845 + $0x4cc] sm:$0xf]
        %v2585 = vld [vmem:[%s845 + $0x4d0] sm:$0xff]
        %v2586 = vld [vmem:[%s845 + $0x4d8] sm:$0xff]
        %v2587 = vld [vmem:[%s845 + $0x4e0] sm:$0xff]
        %v2588 = vld [vmem:[%s845 + $0x4e8] sm:$0xff]
        %v2589 = vld [vmem:[%s845 + $0x4f0] sm:$0xff]
        %v2590 = vld [vmem:[%s845 + $0x4f8] sm:$0xf]
        %v2591 = vld [vmem:[%s845 + $0x4fc] sm:$0xff]
        %v2592 = vld [vmem:[%s845 + $0x504] sm:$0xff]
        %v2593 = vld [vmem:[%s845 + $0x50c] sm:$0xff]
        %v2594 = vld [vmem:[%s845 + $0x514] sm:$0xff]
        %v2595 = vld [vmem:[%s845 + $0x51c] sm:$0xff]
        %v2596 = vld [vmem:[%s845 + $0x524] sm:$0xf]
        %v2597 = vld [vmem:[%s845 + $0x528] sm:$0xff]
        %v2598 = vld [vmem:[%s845 + $0x530] sm:$0xff]
        %v2599 = vld [vmem:[%s845 + $0x538] sm:$0xff]
        %v2600 = vld [vmem:[%s845 + $0x540] sm:$0xff]
        %v2601 = vld [vmem:[%s845 + $0x548] sm:$0xff]
        %v2602 = vld [vmem:[%s845 + $0x550] sm:$0xf]
        %v2603 = vld [vmem:[%s845 + $0x554] sm:$0xff]
        %v2604 = vld [vmem:[%s845 + $0x55c] sm:$0xff]
        %v2605 = vld [vmem:[%s845 + $0x564] sm:$0xff]
        %v2606 = vld [vmem:[%s845 + $0x56c] sm:$0xff]
        %v2607 = vld [vmem:[%s845 + $0x574] sm:$0xff]
        %v2608 = vld [vmem:[%s845 + $0x57c] sm:$0xf]
        %v2609 = vld [vmem:[%s896] sm:$0xff]
        %v2610 = vld [vmem:[%s896 + $0x8] sm:$0x7]
        %v2613 = vperm.slane %v2609, 0
        %v2614 = vperm.slane %v2609, 1
        %v2615 = vperm.slane %v2609, 2
        %v2616 = vperm.slane %v2609, 3
        %v2617 = vperm.slane %v2609, 4
        %v2618 = vperm.slane %v2609, 5
        %v2619 = vperm.slane %v2609, 6
        %v2620 = vperm.slane %v2609, 7
        %v2621 = vperm.slane %v2610, 0
        %v2622 = vperm.slane %v2610, 1
        %v2623 = vperm.slane %v2610, 2
        %v2827 = vunpack.c.l.b16 %v2417
        %v2828 = vunpack.c.h.b16 %v2417
        %v2829 = vunpack.c.l.b16 %v2418
        %v2830 = vunpack.c.h.b16 %v2418
        %v2831 = vunpack.c.l.b16 %v2419
        %v2832 = vunpack.c.h.b16 %v2419
        %v2833 = vunpack.c.l.b16 %v2420
        %v2834 = vunpack.c.h.b16 %v2420
        %v2835 = vunpack.c.l.b16 %v2421
        %v2836 = vunpack.c.h.b16 %v2421
        %v2837 = vunpack.c.l.b16 %v2422
        %v2838 = vunpack.c.l.b16 %v2423
        %v2839 = vunpack.c.h.b16 %v2423
        %v2840 = vunpack.c.l.b16 %v2424
        %v2841 = vunpack.c.h.b16 %v2424
        %v2842 = vunpack.c.l.b16 %v2425
        %v2843 = vunpack.c.h.b16 %v2425
        %v2844 = vunpack.c.l.b16 %v2426
        %v2845 = vunpack.c.h.b16 %v2426
        %v2846 = vunpack.c.l.b16 %v2427
        %v2847 = vunpack.c.h.b16 %v2427
        %v2848 = vunpack.c.l.b16 %v2428
        %v2849 = vunpack.c.l.b16 %v2429
        %v2850 = vunpack.c.h.b16 %v2429
        %v2851 = vunpack.c.l.b16 %v2430
        %v2852 = vunpack.c.h.b16 %v2430
        %v2853 = vunpack.c.l.b16 %v2431
        %v2854 = vunpack.c.h.b16 %v2431
        %v2855 = vunpack.c.l.b16 %v2432
        %v2856 = vunpack.c.h.b16 %v2432
        %v2857 = vunpack.c.l.b16 %v2433
        %v2858 = vunpack.c.h.b16 %v2433
        %v2859 = vunpack.c.l.b16 %v2434
        %v2860 = vunpack.c.l.b16 %v2435
        %v2861 = vunpack.c.h.b16 %v2435
        %v2862 = vunpack.c.l.b16 %v2436
        %v2863 = vunpack.c.h.b16 %v2436
        %v2864 = vunpack.c.l.b16 %v2437
        %v2865 = vunpack.c.h.b16 %v2437
        %v2866 = vunpack.c.l.b16 %v2438
        %v2867 = vunpack.c.h.b16 %v2438
        %v2868 = vunpack.c.l.b16 %v2439
        %v2869 = vunpack.c.h.b16 %v2439
        %v2870 = vunpack.c.l.b16 %v2440
        %v2871 = vunpack.c.l.b16 %v2441
        %v2872 = vunpack.c.h.b16 %v2441
        %v2873 = vunpack.c.l.b16 %v2442
        %v2874 = vunpack.c.h.b16 %v2442
        %v2875 = vunpack.c.l.b16 %v2443
        %v2876 = vunpack.c.h.b16 %v2443
        %v2877 = vunpack.c.l.b16 %v2444
        %v2878 = vunpack.c.h.b16 %v2444
        %v2879 = vunpack.c.l.b16 %v2445
        %v2880 = vunpack.c.h.b16 %v2445
        %v2881 = vunpack.c.l.b16 %v2446
        %v2882 = vunpack.c.l.b16 %v2447
        %v2883 = vunpack.c.h.b16 %v2447
        %v2884 = vunpack.c.l.b16 %v2448
        %v2885 = vunpack.c.h.b16 %v2448
        %v2886 = vunpack.c.l.b16 %v2449
        %v2887 = vunpack.c.h.b16 %v2449
        %v2888 = vunpack.c.l.b16 %v2450
        %v2889 = vunpack.c.h.b16 %v2450
        %v2890 = vunpack.c.l.b16 %v2451
        %v2891 = vunpack.c.h.b16 %v2451
        %v2892 = vunpack.c.l.b16 %v2452
        %v2893 = vunpack.c.l.b16 %v2453
        %v2894 = vunpack.c.h.b16 %v2453
        %v2895 = vunpack.c.l.b16 %v2454
        %v2896 = vunpack.c.h.b16 %v2454
        %v2897 = vunpack.c.l.b16 %v2455
        %v2898 = vunpack.c.h.b16 %v2455
        %v2899 = vunpack.c.l.b16 %v2456
        %v2900 = vunpack.c.h.b16 %v2456
        %v2901 = vunpack.c.l.b16 %v2457
        %v2902 = vunpack.c.h.b16 %v2457
        %v2903 = vunpack.c.l.b16 %v2458
        %v2904 = vunpack.c.l.b16 %v2459
        %v2905 = vunpack.c.h.b16 %v2459
        %v2906 = vunpack.c.l.b16 %v2460
        %v2907 = vunpack.c.h.b16 %v2460
        %v2908 = vunpack.c.l.b16 %v2461
        %v2909 = vunpack.c.h.b16 %v2461
        %v2910 = vunpack.c.l.b16 %v2462
        %v2911 = vunpack.c.h.b16 %v2462
        %v2912 = vunpack.c.l.b16 %v2463
        %v2913 = vunpack.c.h.b16 %v2463
        %v2914 = vunpack.c.l.b16 %v2464
        %v2915 = vunpack.c.l.b16 %v2465
        %v2916 = vunpack.c.h.b16 %v2465
        %v2917 = vunpack.c.l.b16 %v2466
        %v2918 = vunpack.c.h.b16 %v2466
        %v2919 = vunpack.c.l.b16 %v2467
        %v2920 = vunpack.c.h.b16 %v2467
        %v2921 = vunpack.c.l.b16 %v2468
        %v2922 = vunpack.c.h.b16 %v2468
        %v2923 = vunpack.c.l.b16 %v2469
        %v2924 = vunpack.c.h.b16 %v2469
        %v2925 = vunpack.c.l.b16 %v2470
        %v2926 = vunpack.c.l.b16 %v2471
        %v2927 = vunpack.c.h.b16 %v2471
        %v2928 = vunpack.c.l.b16 %v2472
        %v2929 = vunpack.c.h.b16 %v2472
        %v2930 = vunpack.c.l.b16 %v2473
        %v2931 = vunpack.c.h.b16 %v2473
        %v2932 = vunpack.c.l.b16 %v2474
        %v2933 = vunpack.c.h.b16 %v2474
        %v2934 = vunpack.c.l.b16 %v2475
        %v2935 = vunpack.c.h.b16 %v2475
        %v2936 = vunpack.c.l.b16 %v2476
        %v2937 = vunpack.c.l.b16 %v2477
        %v2938 = vunpack.c.h.b16 %v2477
        %v2939 = vunpack.c.l.b16 %v2478
        %v2940 = vunpack.c.h.b16 %v2478
        %v2941 = vunpack.c.l.b16 %v2479
        %v2942 = vunpack.c.h.b16 %v2479
        %v2943 = vunpack.c.l.b16 %v2480
        %v2944 = vunpack.c.h.b16 %v2480
        %v2945 = vunpack.c.l.b16 %v2481
        %v2946 = vunpack.c.h.b16 %v2481
        %v2947 = vunpack.c.l.b16 %v2482
        %v2948 = vunpack.c.l.b16 %v2483
        %v2949 = vunpack.c.h.b16 %v2483
        %v2950 = vunpack.c.l.b16 %v2484
        %v2951 = vunpack.c.h.b16 %v2484
        %v2952 = vunpack.c.l.b16 %v2485
        %v2953 = vunpack.c.h.b16 %v2485
        %v2954 = vunpack.c.l.b16 %v2486
        %v2955 = vunpack.c.h.b16 %v2486
        %v2956 = vunpack.c.l.b16 %v2487
        %v2957 = vunpack.c.h.b16 %v2487
        %v2958 = vunpack.c.l.b16 %v2488
        %v2959 = vunpack.c.l.b16 %v2489
        %v2960 = vunpack.c.h.b16 %v2489
        %v2961 = vunpack.c.l.b16 %v2490
        %v2962 = vunpack.c.h.b16 %v2490
        %v2963 = vunpack.c.l.b16 %v2491
        %v2964 = vunpack.c.h.b16 %v2491
        %v2965 = vunpack.c.l.b16 %v2492
        %v2966 = vunpack.c.h.b16 %v2492
        %v2967 = vunpack.c.l.b16 %v2493
        %v2968 = vunpack.c.h.b16 %v2493
        %v2969 = vunpack.c.l.b16 %v2494
        %v2970 = vunpack.c.l.b16 %v2495
        %v2971 = vunpack.c.h.b16 %v2495
        %v2972 = vunpack.c.l.b16 %v2496
        %v2973 = vunpack.c.h.b16 %v2496
        %v2974 = vunpack.c.l.b16 %v2497
        %v2975 = vunpack.c.h.b16 %v2497
        %v2976 = vunpack.c.l.b16 %v2498
        %v2977 = vunpack.c.h.b16 %v2498
        %v2978 = vunpack.c.l.b16 %v2499
        %v2979 = vunpack.c.h.b16 %v2499
        %v2980 = vunpack.c.l.b16 %v2500
        %v2981 = vunpack.c.l.b16 %v2501
        %v2982 = vunpack.c.h.b16 %v2501
        %v2983 = vunpack.c.l.b16 %v2502
        %v2984 = vunpack.c.h.b16 %v2502
        %v2985 = vunpack.c.l.b16 %v2503
        %v2986 = vunpack.c.h.b16 %v2503
        %v2987 = vunpack.c.l.b16 %v2504
        %v2988 = vunpack.c.h.b16 %v2504
        %v2989 = vunpack.c.l.b16 %v2505
        %v2990 = vunpack.c.h.b16 %v2505
        %v2991 = vunpack.c.l.b16 %v2506
        %v2992 = vunpack.c.l.b16 %v2507
        %v2993 = vunpack.c.h.b16 %v2507
        %v2994 = vunpack.c.l.b16 %v2508
        %v2995 = vunpack.c.h.b16 %v2508
        %v2996 = vunpack.c.l.b16 %v2509
        %v2997 = vunpack.c.h.b16 %v2509
        %v2998 = vunpack.c.l.b16 %v2510
        %v2999 = vunpack.c.h.b16 %v2510
        %v3000 = vunpack.c.l.b16 %v2511
        %v3001 = vunpack.c.h.b16 %v2511
        %v3002 = vunpack.c.l.b16 %v2512
        %v3003 = vunpack.c.l.b16 %v2513
        %v3004 = vunpack.c.h.b16 %v2513
        %v3005 = vunpack.c.l.b16 %v2514
        %v3006 = vunpack.c.h.b16 %v2514
        %v3007 = vunpack.c.l.b16 %v2515
        %v3008 = vunpack.c.h.b16 %v2515
        %v3009 = vunpack.c.l.b16 %v2516
        %v3010 = vunpack.c.h.b16 %v2516
        %v3011 = vunpack.c.l.b16 %v2517
        %v3012 = vunpack.c.h.b16 %v2517
        %v3013 = vunpack.c.l.b16 %v2518
        %v3014 = vunpack.c.l.b16 %v2519
        %v3015 = vunpack.c.h.b16 %v2519
        %v3016 = vunpack.c.l.b16 %v2520
        %v3017 = vunpack.c.h.b16 %v2520
        %v3018 = vunpack.c.l.b16 %v2521
        %v3019 = vunpack.c.h.b16 %v2521
        %v3020 = vunpack.c.l.b16 %v2522
        %v3021 = vunpack.c.h.b16 %v2522
        %v3022 = vunpack.c.l.b16 %v2523
        %v3023 = vunpack.c.h.b16 %v2523
        %v3024 = vunpack.c.l.b16 %v2524
        %v3025 = vunpack.c.l.b16 %v2525
        %v3026 = vunpack.c.h.b16 %v2525
        %v3027 = vunpack.c.l.b16 %v2526
        %v3028 = vunpack.c.h.b16 %v2526
        %v3029 = vunpack.c.l.b16 %v2527
        %v3030 = vunpack.c.h.b16 %v2527
        %v3031 = vunpack.c.l.b16 %v2528
        %v3032 = vunpack.c.h.b16 %v2528
        %v3033 = vunpack.c.l.b16 %v2529
        %v3034 = vunpack.c.h.b16 %v2529
        %v3035 = vunpack.c.l.b16 %v2530
        %v3036 = vunpack.c.l.b16 %v2531
        %v3037 = vunpack.c.h.b16 %v2531
        %v3038 = vunpack.c.l.b16 %v2532
        %v3039 = vunpack.c.h.b16 %v2532
        %v3040 = vunpack.c.l.b16 %v2533
        %v3041 = vunpack.c.h.b16 %v2533
        %v3042 = vunpack.c.l.b16 %v2534
        %v3043 = vunpack.c.h.b16 %v2534
        %v3044 = vunpack.c.l.b16 %v2535
        %v3045 = vunpack.c.h.b16 %v2535
        %v3046 = vunpack.c.l.b16 %v2536
        %v3047 = vunpack.c.l.b16 %v2537
        %v3048 = vunpack.c.h.b16 %v2537
        %v3049 = vunpack.c.l.b16 %v2538
        %v3050 = vunpack.c.h.b16 %v2538
        %v3051 = vunpack.c.l.b16 %v2539
        %v3052 = vunpack.c.h.b16 %v2539
        %v3053 = vunpack.c.l.b16 %v2540
        %v3054 = vunpack.c.h.b16 %v2540
        %v3055 = vunpack.c.l.b16 %v2541
        %v3056 = vunpack.c.h.b16 %v2541
        %v3057 = vunpack.c.l.b16 %v2542
        %v3058 = vunpack.c.l.b16 %v2543
        %v3059 = vunpack.c.h.b16 %v2543
        %v3060 = vunpack.c.l.b16 %v2544
        %v3061 = vunpack.c.h.b16 %v2544
        %v3062 = vunpack.c.l.b16 %v2545
        %v3063 = vunpack.c.h.b16 %v2545
        %v3064 = vunpack.c.l.b16 %v2546
        %v3065 = vunpack.c.h.b16 %v2546
        %v3066 = vunpack.c.l.b16 %v2547
        %v3067 = vunpack.c.h.b16 %v2547
        %v3068 = vunpack.c.l.b16 %v2548
        %v3069 = vunpack.c.l.b16 %v2549
        %v3070 = vunpack.c.h.b16 %v2549
        %v3071 = vunpack.c.l.b16 %v2550
        %v3072 = vunpack.c.h.b16 %v2550
        %v3073 = vunpack.c.l.b16 %v2551
        %v3074 = vunpack.c.h.b16 %v2551
        %v3075 = vunpack.c.l.b16 %v2552
        %v3076 = vunpack.c.h.b16 %v2552
        %v3077 = vunpack.c.l.b16 %v2553
        %v3078 = vunpack.c.h.b16 %v2553
        %v3079 = vunpack.c.l.b16 %v2554
        %v3080 = vunpack.c.l.b16 %v2555
        %v3081 = vunpack.c.h.b16 %v2555
        %v3082 = vunpack.c.l.b16 %v2556
        %v3083 = vunpack.c.h.b16 %v2556
        %v3084 = vunpack.c.l.b16 %v2557
        %v3085 = vunpack.c.h.b16 %v2557
        %v3086 = vunpack.c.l.b16 %v2558
        %v3087 = vunpack.c.h.b16 %v2558
        %v3088 = vunpack.c.l.b16 %v2559
        %v3089 = vunpack.c.h.b16 %v2559
        %v3090 = vunpack.c.l.b16 %v2560
        %v3091 = vunpack.c.l.b16 %v2561
        %v3092 = vunpack.c.h.b16 %v2561
        %v3093 = vunpack.c.l.b16 %v2562
        %v3094 = vunpack.c.h.b16 %v2562
        %v3095 = vunpack.c.l.b16 %v2563
        %v3096 = vunpack.c.h.b16 %v2563
        %v3097 = vunpack.c.l.b16 %v2564
        %v3098 = vunpack.c.h.b16 %v2564
        %v3099 = vunpack.c.l.b16 %v2565
        %v3100 = vunpack.c.h.b16 %v2565
        %v3101 = vunpack.c.l.b16 %v2566
        %v3102 = vunpack.c.l.b16 %v2567
        %v3103 = vunpack.c.h.b16 %v2567
        %v3104 = vunpack.c.l.b16 %v2568
        %v3105 = vunpack.c.h.b16 %v2568
        %v3106 = vunpack.c.l.b16 %v2569
        %v3107 = vunpack.c.h.b16 %v2569
        %v3108 = vunpack.c.l.b16 %v2570
        %v3109 = vunpack.c.h.b16 %v2570
        %v3110 = vunpack.c.l.b16 %v2571
        %v3111 = vunpack.c.h.b16 %v2571
        %v3112 = vunpack.c.l.b16 %v2572
        %v3113 = vunpack.c.l.b16 %v2573
        %v3114 = vunpack.c.h.b16 %v2573
        %v3115 = vunpack.c.l.b16 %v2574
        %v3116 = vunpack.c.h.b16 %v2574
        %v3117 = vunpack.c.l.b16 %v2575
        %v3118 = vunpack.c.h.b16 %v2575
        %v3119 = vunpack.c.l.b16 %v2576
        %v3120 = vunpack.c.h.b16 %v2576
        %v3121 = vunpack.c.l.b16 %v2577
        %v3122 = vunpack.c.h.b16 %v2577
        %v3123 = vunpack.c.l.b16 %v2578
        %v3124 = vunpack.c.l.b16 %v2579
        %v3125 = vunpack.c.h.b16 %v2579
        %v3126 = vunpack.c.l.b16 %v2580
        %v3127 = vunpack.c.h.b16 %v2580
        %v3128 = vunpack.c.l.b16 %v2581
        %v3129 = vunpack.c.h.b16 %v2581
        %v3130 = vunpack.c.l.b16 %v2582
        %v3131 = vunpack.c.h.b16 %v2582
        %v3132 = vunpack.c.l.b16 %v2583
        %v3133 = vunpack.c.h.b16 %v2583
        %v3134 = vunpack.c.l.b16 %v2584
        %v3135 = vunpack.c.l.b16 %v2585
        %v3136 = vunpack.c.h.b16 %v2585
        %v3137 = vunpack.c.l.b16 %v2586
        %v3138 = vunpack.c.h.b16 %v2586
        %v3139 = vunpack.c.l.b16 %v2587
        %v3140 = vunpack.c.h.b16 %v2587
        %v3141 = vunpack.c.l.b16 %v2588
        %v3142 = vunpack.c.h.b16 %v2588
        %v3143 = vunpack.c.l.b16 %v2589
        %v3144 = vunpack.c.h.b16 %v2589
        %v3145 = vunpack.c.l.b16 %v2590
        %v3146 = vunpack.c.l.b16 %v2591
        %v3147 = vunpack.c.h.b16 %v2591
        %v3148 = vunpack.c.l.b16 %v2592
        %v3149 = vunpack.c.h.b16 %v2592
        %v3150 = vunpack.c.l.b16 %v2593
        %v3151 = vunpack.c.h.b16 %v2593
        %v3152 = vunpack.c.l.b16 %v2594
        %v3153 = vunpack.c.h.b16 %v2594
        %v3154 = vunpack.c.l.b16 %v2595
        %v3155 = vunpack.c.h.b16 %v2595
        %v3156 = vunpack.c.l.b16 %v2596
        %v3157 = vunpack.c.l.b16 %v2597
        %v3158 = vunpack.c.h.b16 %v2597
        %v3159 = vunpack.c.l.b16 %v2598
        %v3160 = vunpack.c.h.b16 %v2598
        %v3161 = vunpack.c.l.b16 %v2599
        %v3162 = vunpack.c.h.b16 %v2599
        %v3163 = vunpack.c.l.b16 %v2600
        %v3164 = vunpack.c.h.b16 %v2600
        %v3165 = vunpack.c.l.b16 %v2601
        %v3166 = vunpack.c.h.b16 %v2601
        %v3167 = vunpack.c.l.b16 %v2602
        %v3168 = vunpack.c.l.b16 %v2603
        %v3169 = vunpack.c.h.b16 %v2603
        %v3170 = vunpack.c.l.b16 %v2604
        %v3171 = vunpack.c.h.b16 %v2604
        %v3172 = vunpack.c.l.b16 %v2605
        %v3173 = vunpack.c.h.b16 %v2605
        %v3174 = vunpack.c.l.b16 %v2606
        %v3175 = vunpack.c.h.b16 %v2606
        %v3176 = vunpack.c.l.b16 %v2607
        %v3177 = vunpack.c.h.b16 %v2607
        %v3178 = vunpack.c.l.b16 %v2608
        %v3179 = vpack.c.b16 %v2838, %v2827
        %v3180 = vpack.c.b16 %v2839, %v2828
        %v3181 = vpack.c.b16 %v2840, %v2829
        %v3182 = vpack.c.b16 %v2841, %v2830
        %v3183 = vpack.c.b16 %v2842, %v2831
        %v3184 = vpack.c.b16 %v2843, %v2832
        %v3185 = vpack.c.b16 %v2844, %v2833
        %v3186 = vpack.c.b16 %v2845, %v2834
        %v3187 = vpack.c.b16 %v2846, %v2835
        %v3188 = vpack.c.b16 %v2847, %v2836
        %v3189 = vpack.c.b16 %v2848, %v2837
        %v3190 = vpack.c.b16 %v2860, %v2849
        %v3191 = vpack.c.b16 %v2861, %v2850
        %v3192 = vpack.c.b16 %v2862, %v2851
        %v3193 = vpack.c.b16 %v2863, %v2852
        %v3194 = vpack.c.b16 %v2864, %v2853
        %v3195 = vpack.c.b16 %v2865, %v2854
        %v3196 = vpack.c.b16 %v2866, %v2855
        %v3197 = vpack.c.b16 %v2867, %v2856
        %v3198 = vpack.c.b16 %v2868, %v2857
        %v3199 = vpack.c.b16 %v2869, %v2858
        %v3200 = vpack.c.b16 %v2870, %v2859
        %v3201 = vpack.c.b16 %v2882, %v2871
        %v3202 = vpack.c.b16 %v2883, %v2872
        %v3203 = vpack.c.b16 %v2884, %v2873
        %v3204 = vpack.c.b16 %v2885, %v2874
        %v3205 = vpack.c.b16 %v2886, %v2875
        %v3206 = vpack.c.b16 %v2887, %v2876
        %v3207 = vpack.c.b16 %v2888, %v2877
        %v3208 = vpack.c.b16 %v2889, %v2878
        %v3209 = vpack.c.b16 %v2890, %v2879
        %v3210 = vpack.c.b16 %v2891, %v2880
        %v3211 = vpack.c.b16 %v2892, %v2881
        %v3212 = vpack.c.b16 %v2904, %v2893
        %v3213 = vpack.c.b16 %v2905, %v2894
        %v3214 = vpack.c.b16 %v2906, %v2895
        %v3215 = vpack.c.b16 %v2907, %v2896
        %v3216 = vpack.c.b16 %v2908, %v2897
        %v3217 = vpack.c.b16 %v2909, %v2898
        %v3218 = vpack.c.b16 %v2910, %v2899
        %v3219 = vpack.c.b16 %v2911, %v2900
        %v3220 = vpack.c.b16 %v2912, %v2901
        %v3221 = vpack.c.b16 %v2913, %v2902
        %v3222 = vpack.c.b16 %v2914, %v2903
        %v3223 = vpack.c.b16 %v2926, %v2915
        %v3224 = vpack.c.b16 %v2927, %v2916
        %v3225 = vpack.c.b16 %v2928, %v2917
        %v3226 = vpack.c.b16 %v2929, %v2918
        %v3227 = vpack.c.b16 %v2930, %v2919
        %v3228 = vpack.c.b16 %v2931, %v2920
        %v3229 = vpack.c.b16 %v2932, %v2921
        %v3230 = vpack.c.b16 %v2933, %v2922
        %v3231 = vpack.c.b16 %v2934, %v2923
        %v3232 = vpack.c.b16 %v2935, %v2924
        %v3233 = vpack.c.b16 %v2936, %v2925
        %v3234 = vpack.c.b16 %v2948, %v2937
        %v3235 = vpack.c.b16 %v2949, %v2938
        %v3236 = vpack.c.b16 %v2950, %v2939
        %v3237 = vpack.c.b16 %v2951, %v2940
        %v3238 = vpack.c.b16 %v2952, %v2941
        %v3239 = vpack.c.b16 %v2953, %v2942
        %v3240 = vpack.c.b16 %v2954, %v2943
        %v3241 = vpack.c.b16 %v2955, %v2944
        %v3242 = vpack.c.b16 %v2956, %v2945
        %v3243 = vpack.c.b16 %v2957, %v2946
        %v3244 = vpack.c.b16 %v2958, %v2947
        %v3245 = vpack.c.b16 %v2970, %v2959
        %v3246 = vpack.c.b16 %v2971, %v2960
        %v3247 = vpack.c.b16 %v2972, %v2961
        %v3248 = vpack.c.b16 %v2973, %v2962
        %v3249 = vpack.c.b16 %v2974, %v2963
        %v3250 = vpack.c.b16 %v2975, %v2964
        %v3251 = vpack.c.b16 %v2976, %v2965
        %v3252 = vpack.c.b16 %v2977, %v2966
        %v3253 = vpack.c.b16 %v2978, %v2967
        %v3254 = vpack.c.b16 %v2979, %v2968
        %v3255 = vpack.c.b16 %v2980, %v2969
        %v3256 = vpack.c.b16 %v2992, %v2981
        %v3257 = vpack.c.b16 %v2993, %v2982
        %v3258 = vpack.c.b16 %v2994, %v2983
        %v3259 = vpack.c.b16 %v2995, %v2984
        %v3260 = vpack.c.b16 %v2996, %v2985
        %v3261 = vpack.c.b16 %v2997, %v2986
        %v3262 = vpack.c.b16 %v2998, %v2987
        %v3263 = vpack.c.b16 %v2999, %v2988
        %v3264 = vpack.c.b16 %v3000, %v2989
        %v3265 = vpack.c.b16 %v3001, %v2990
        %v3266 = vpack.c.b16 %v3002, %v2991
        %v3267 = vpack.c.b16 %v3014, %v3003
        %v3268 = vpack.c.b16 %v3015, %v3004
        %v3269 = vpack.c.b16 %v3016, %v3005
        %v3270 = vpack.c.b16 %v3017, %v3006
        %v3271 = vpack.c.b16 %v3018, %v3007
        %v3272 = vpack.c.b16 %v3019, %v3008
        %v3273 = vpack.c.b16 %v3020, %v3009
        %v3274 = vpack.c.b16 %v3021, %v3010
        %v3275 = vpack.c.b16 %v3022, %v3011
        %v3276 = vpack.c.b16 %v3023, %v3012
        %v3277 = vpack.c.b16 %v3024, %v3013
        %v3278 = vpack.c.b16 %v3036, %v3025
        %v3279 = vpack.c.b16 %v3037, %v3026
        %v3280 = vpack.c.b16 %v3038, %v3027
        %v3281 = vpack.c.b16 %v3039, %v3028
        %v3282 = vpack.c.b16 %v3040, %v3029
        %v3283 = vpack.c.b16 %v3041, %v3030
        %v3284 = vpack.c.b16 %v3042, %v3031
        %v3285 = vpack.c.b16 %v3043, %v3032
        %v3286 = vpack.c.b16 %v3044, %v3033
        %v3287 = vpack.c.b16 %v3045, %v3034
        %v3288 = vpack.c.b16 %v3046, %v3035
        %v3289 = vpack.c.b16 %v3058, %v3047
        %v3290 = vpack.c.b16 %v3059, %v3048
        %v3291 = vpack.c.b16 %v3060, %v3049
        %v3292 = vpack.c.b16 %v3061, %v3050
        %v3293 = vpack.c.b16 %v3062, %v3051
        %v3294 = vpack.c.b16 %v3063, %v3052
        %v3295 = vpack.c.b16 %v3064, %v3053
        %v3296 = vpack.c.b16 %v3065, %v3054
        %v3297 = vpack.c.b16 %v3066, %v3055
        %v3298 = vpack.c.b16 %v3067, %v3056
        %v3299 = vpack.c.b16 %v3068, %v3057
        %v3300 = vpack.c.b16 %v3080, %v3069
        %v3301 = vpack.c.b16 %v3081, %v3070
        %v3302 = vpack.c.b16 %v3082, %v3071
        %v3303 = vpack.c.b16 %v3083, %v3072
        %v3304 = vpack.c.b16 %v3084, %v3073
        %v3305 = vpack.c.b16 %v3085, %v3074
        %v3306 = vpack.c.b16 %v3086, %v3075
        %v3307 = vpack.c.b16 %v3087, %v3076
        %v3308 = vpack.c.b16 %v3088, %v3077
        %v3309 = vpack.c.b16 %v3089, %v3078
        %v3310 = vpack.c.b16 %v3090, %v3079
        %v3311 = vpack.c.b16 %v3102, %v3091
        %v3312 = vpack.c.b16 %v3103, %v3092
        %v3313 = vpack.c.b16 %v3104, %v3093
        %v3314 = vpack.c.b16 %v3105, %v3094
        %v3315 = vpack.c.b16 %v3106, %v3095
        %v3316 = vpack.c.b16 %v3107, %v3096
        %v3317 = vpack.c.b16 %v3108, %v3097
        %v3318 = vpack.c.b16 %v3109, %v3098
        %v3319 = vpack.c.b16 %v3110, %v3099
        %v3320 = vpack.c.b16 %v3111, %v3100
        %v3321 = vpack.c.b16 %v3112, %v3101
        %v3322 = vpack.c.b16 %v3124, %v3113
        %v3323 = vpack.c.b16 %v3125, %v3114
        %v3324 = vpack.c.b16 %v3126, %v3115
        %v3325 = vpack.c.b16 %v3127, %v3116
        %v3326 = vpack.c.b16 %v3128, %v3117
        %v3327 = vpack.c.b16 %v3129, %v3118
        %v3328 = vpack.c.b16 %v3130, %v3119
        %v3329 = vpack.c.b16 %v3131, %v3120
        %v3330 = vpack.c.b16 %v3132, %v3121
        %v3331 = vpack.c.b16 %v3133, %v3122
        %v3332 = vpack.c.b16 %v3134, %v3123
        %v3333 = vpack.c.b16 %v3146, %v3135
        %v3334 = vpack.c.b16 %v3147, %v3136
        %v3335 = vpack.c.b16 %v3148, %v3137
        %v3336 = vpack.c.b16 %v3149, %v3138
        %v3337 = vpack.c.b16 %v3150, %v3139
        %v3338 = vpack.c.b16 %v3151, %v3140
        %v3339 = vpack.c.b16 %v3152, %v3141
        %v3340 = vpack.c.b16 %v3153, %v3142
        %v3341 = vpack.c.b16 %v3154, %v3143
        %v3342 = vpack.c.b16 %v3155, %v3144
        %v3343 = vpack.c.b16 %v3156, %v3145
        %v3344 = vpack.c.b16 %v3168, %v3157
        %v3345 = vpack.c.b16 %v3169, %v3158
        %v3346 = vpack.c.b16 %v3170, %v3159
        %v3347 = vpack.c.b16 %v3171, %v3160
        %v3348 = vpack.c.b16 %v3172, %v3161
        %v3349 = vpack.c.b16 %v3173, %v3162
        %v3350 = vpack.c.b16 %v3174, %v3163
        %v3351 = vpack.c.b16 %v3175, %v3164
        %v3352 = vpack.c.b16 %v3176, %v3165
        %v3353 = vpack.c.b16 %v3177, %v3166
        %v3354 = vpack.c.b16 %v3178, %v3167
        %3531 = vmatpush.bf16.msra.mxu0 %v3256
        %3532 = vmatpush.bf16.msra.mxu0 %v3245
        %3533 = vmatpush.bf16.msra.mxu0 %v3234
        %3534 = vmatpush.bf16.msra.mxu0 %v3223
        %3535 = vmatpush.bf16.msra.mxu0 %v3212
        %3536 = vmatpush.bf16.msra.mxu0 %v3201
        %3537 = vmatpush.bf16.msra.mxu0 %v3190
        %3538 = vmatpush.bf16.msra.mxu0 %v3179
        %3539 = vmatmul.bf16.gmra.mxu0 %v2415
        %v3540 = vpop.f32.mrf.mxu0
        %v3541 = vadd.f32 %v2613, %v3540
        %v3542 = vpop.f32.mrf.mxu0
        %3543 = vdwg.mxu0
        %3544 = vmatpush.bf16.msra.mxu0 %v3344
        %3545 = vmatpush.bf16.msra.mxu0 %v3333
        %3546 = vmatpush.bf16.msra.mxu0 %v3322
        %3547 = vmatpush.bf16.msra.mxu0 %v3311
        %3548 = vmatpush.bf16.msra.mxu0 %v3300
        %3549 = vmatpush.bf16.msra.mxu0 %v3289
        %3550 = vmatpush.bf16.msra.mxu0 %v3278
        %3551 = vmatpush.bf16.msra.mxu0 %v3267
        %3552 = vmatmul.bf16.gmra.mxu0 %v2416
        %v3553 = vpop.f32.mrf.mxu0
        %v3554 = vadd.f32 %v3541, %v3553
        %v3555 = vpop.f32.mrf.mxu0
        %3556 = vdwg.mxu0
        %3557 = vmatpush.bf16.msra.mxu0 %v3257
        %3558 = vmatpush.bf16.msra.mxu0 %v3246
        %3559 = vmatpush.bf16.msra.mxu0 %v3235
        %3560 = vmatpush.bf16.msra.mxu0 %v3224
        %3561 = vmatpush.bf16.msra.mxu0 %v3213
        %3562 = vmatpush.bf16.msra.mxu0 %v3202
        %3563 = vmatpush.bf16.msra.mxu0 %v3191
        %3564 = vmatpush.bf16.msra.mxu0 %v3180
        %3565 = vmatmul.bf16.gmra.mxu0 %v2415
        %v3566 = vpop.f32.mrf.mxu0
        %v3567 = vadd.f32 %v2614, %v3566
        %v3568 = vpop.f32.mrf.mxu0
        %3569 = vdwg.mxu0
        %3570 = vmatpush.bf16.msra.mxu0 %v3345
        %3571 = vmatpush.bf16.msra.mxu0 %v3334
        %3572 = vmatpush.bf16.msra.mxu0 %v3323
        %3573 = vmatpush.bf16.msra.mxu0 %v3312
        %3574 = vmatpush.bf16.msra.mxu0 %v3301
        %3575 = vmatpush.bf16.msra.mxu0 %v3290
        %3576 = vmatpush.bf16.msra.mxu0 %v3279
        %3577 = vmatpush.bf16.msra.mxu0 %v3268
        %3578 = vmatmul.bf16.gmra.mxu0 %v2416
        %v3579 = vpop.f32.mrf.mxu0
        %v3580 = vadd.f32 %v3567, %v3579
        %v3581 = vpop.f32.mrf.mxu0
        %3582 = vdwg.mxu0
        %3583 = vmatpush.bf16.msra.mxu0 %v3258
        %3584 = vmatpush.bf16.msra.mxu0 %v3247
        %3585 = vmatpush.bf16.msra.mxu0 %v3236
        %3586 = vmatpush.bf16.msra.mxu0 %v3225
        %3587 = vmatpush.bf16.msra.mxu0 %v3214
        %3588 = vmatpush.bf16.msra.mxu0 %v3203
        %3589 = vmatpush.bf16.msra.mxu0 %v3192
        %3590 = vmatpush.bf16.msra.mxu0 %v3181
        %3591 = vmatmul.bf16.gmra.mxu0 %v2415
        %v3592 = vpop.f32.mrf.mxu0
        %v3593 = vadd.f32 %v2615, %v3592
        %v3594 = vpop.f32.mrf.mxu0
        %3595 = vdwg.mxu0
        %3596 = vmatpush.bf16.msra.mxu0 %v3346
        %3597 = vmatpush.bf16.msra.mxu0 %v3335
        %3598 = vmatpush.bf16.msra.mxu0 %v3324
        %3599 = vmatpush.bf16.msra.mxu0 %v3313
        %3600 = vmatpush.bf16.msra.mxu0 %v3302
        %3601 = vmatpush.bf16.msra.mxu0 %v3291
        %3602 = vmatpush.bf16.msra.mxu0 %v3280
        %3603 = vmatpush.bf16.msra.mxu0 %v3269
        %3604 = vmatmul.bf16.gmra.mxu0 %v2416
        %v3605 = vpop.f32.mrf.mxu0
        %v3606 = vadd.f32 %v3593, %v3605
        %v3607 = vpop.f32.mrf.mxu0
        %3608 = vdwg.mxu0
        %3609 = vmatpush.bf16.msra.mxu0 %v3259
        %3610 = vmatpush.bf16.msra.mxu0 %v3248
        %3611 = vmatpush.bf16.msra.mxu0 %v3237
        %3612 = vmatpush.bf16.msra.mxu0 %v3226
        %3613 = vmatpush.bf16.msra.mxu0 %v3215
        %3614 = vmatpush.bf16.msra.mxu0 %v3204
        %3615 = vmatpush.bf16.msra.mxu0 %v3193
        %3616 = vmatpush.bf16.msra.mxu0 %v3182
        %3617 = vmatmul.bf16.gmra.mxu0 %v2415
        %v3618 = vpop.f32.mrf.mxu0
        %v3619 = vadd.f32 %v2616, %v3618
        %v3620 = vpop.f32.mrf.mxu0
        %3621 = vdwg.mxu0
        %3622 = vmatpush.bf16.msra.mxu0 %v3347
        %3623 = vmatpush.bf16.msra.mxu0 %v3336
        %3624 = vmatpush.bf16.msra.mxu0 %v3325
        %3625 = vmatpush.bf16.msra.mxu0 %v3314
        %3626 = vmatpush.bf16.msra.mxu0 %v3303
        %3627 = vmatpush.bf16.msra.mxu0 %v3292
        %3628 = vmatpush.bf16.msra.mxu0 %v3281
        %3629 = vmatpush.bf16.msra.mxu0 %v3270
        %3630 = vmatmul.bf16.gmra.mxu0 %v2416
        %v3631 = vpop.f32.mrf.mxu0
        %v3632 = vadd.f32 %v3619, %v3631
        %v3633 = vpop.f32.mrf.mxu0
        %3634 = vdwg.mxu0
        %3635 = vmatpush.bf16.msra.mxu0 %v3260
        %3636 = vmatpush.bf16.msra.mxu0 %v3249
        %3637 = vmatpush.bf16.msra.mxu0 %v3238
        %3638 = vmatpush.bf16.msra.mxu0 %v3227
        %3639 = vmatpush.bf16.msra.mxu0 %v3216
        %3640 = vmatpush.bf16.msra.mxu0 %v3205
        %3641 = vmatpush.bf16.msra.mxu0 %v3194
        %3642 = vmatpush.bf16.msra.mxu0 %v3183
        %3643 = vmatmul.bf16.gmra.mxu0 %v2415
        %v3644 = vpop.f32.mrf.mxu0
        %v3645 = vadd.f32 %v2617, %v3644
        %v3646 = vpop.f32.mrf.mxu0
        %3647 = vdwg.mxu0
        %3648 = vmatpush.bf16.msra.mxu0 %v3348
        %3649 = vmatpush.bf16.msra.mxu0 %v3337
        %3650 = vmatpush.bf16.msra.mxu0 %v3326
        %3651 = vmatpush.bf16.msra.mxu0 %v3315
        %3652 = vmatpush.bf16.msra.mxu0 %v3304
        %3653 = vmatpush.bf16.msra.mxu0 %v3293
        %3654 = vmatpush.bf16.msra.mxu0 %v3282
        %3655 = vmatpush.bf16.msra.mxu0 %v3271
        %3656 = vmatmul.bf16.gmra.mxu0 %v2416
        %v3657 = vpop.f32.mrf.mxu0
        %v3658 = vadd.f32 %v3645, %v3657
        %v3659 = vpop.f32.mrf.mxu0
        %3660 = vdwg.mxu0
        %3661 = vmatpush.bf16.msra.mxu0 %v3261
        %3662 = vmatpush.bf16.msra.mxu0 %v3250
        %3663 = vmatpush.bf16.msra.mxu0 %v3239
        %3664 = vmatpush.bf16.msra.mxu0 %v3228
        %3665 = vmatpush.bf16.msra.mxu0 %v3217
        %3666 = vmatpush.bf16.msra.mxu0 %v3206
        %3667 = vmatpush.bf16.msra.mxu0 %v3195
        %3668 = vmatpush.bf16.msra.mxu0 %v3184
        %3669 = vmatmul.bf16.gmra.mxu0 %v2415
        %v3670 = vpop.f32.mrf.mxu0
        %v3671 = vadd.f32 %v2618, %v3670
        %v3672 = vpop.f32.mrf.mxu0
        %3673 = vdwg.mxu0
        %3674 = vmatpush.bf16.msra.mxu0 %v3349
        %3675 = vmatpush.bf16.msra.mxu0 %v3338
        %3676 = vmatpush.bf16.msra.mxu0 %v3327
        %3677 = vmatpush.bf16.msra.mxu0 %v3316
        %3678 = vmatpush.bf16.msra.mxu0 %v3305
        %3679 = vmatpush.bf16.msra.mxu0 %v3294
        %3680 = vmatpush.bf16.msra.mxu0 %v3283
        %3681 = vmatpush.bf16.msra.mxu0 %v3272
        %3682 = vmatmul.bf16.gmra.mxu0 %v2416
        %v3683 = vpop.f32.mrf.mxu0
        %v3684 = vadd.f32 %v3671, %v3683
        %v3685 = vpop.f32.mrf.mxu0
        %3686 = vdwg.mxu0
        %3687 = vmatpush.bf16.msra.mxu0 %v3262
        %3688 = vmatpush.bf16.msra.mxu0 %v3251
        %3689 = vmatpush.bf16.msra.mxu0 %v3240
        %3690 = vmatpush.bf16.msra.mxu0 %v3229
        %3691 = vmatpush.bf16.msra.mxu0 %v3218
        %3692 = vmatpush.bf16.msra.mxu0 %v3207
        %3693 = vmatpush.bf16.msra.mxu0 %v3196
        %3694 = vmatpush.bf16.msra.mxu0 %v3185
        %3695 = vmatmul.bf16.gmra.mxu0 %v2415
        %v3696 = vpop.f32.mrf.mxu0
        %v3697 = vadd.f32 %v2619, %v3696
        %v3698 = vpop.f32.mrf.mxu0
        %3699 = vdwg.mxu0
        %3700 = vmatpush.bf16.msra.mxu0 %v3350
        %3701 = vmatpush.bf16.msra.mxu0 %v3339
        %3702 = vmatpush.bf16.msra.mxu0 %v3328
        %3703 = vmatpush.bf16.msra.mxu0 %v3317
        %3704 = vmatpush.bf16.msra.mxu0 %v3306
        %3705 = vmatpush.bf16.msra.mxu0 %v3295
        %3706 = vmatpush.bf16.msra.mxu0 %v3284
        %3707 = vmatpush.bf16.msra.mxu0 %v3273
        %3708 = vmatmul.bf16.gmra.mxu0 %v2416
        %v3709 = vpop.f32.mrf.mxu0
        %v3710 = vadd.f32 %v3697, %v3709
        %v3711 = vpop.f32.mrf.mxu0
        %3712 = vdwg.mxu0
        %3713 = vmatpush.bf16.msra.mxu0 %v3263
        %3714 = vmatpush.bf16.msra.mxu0 %v3252
        %3715 = vmatpush.bf16.msra.mxu0 %v3241
        %3716 = vmatpush.bf16.msra.mxu0 %v3230
        %3717 = vmatpush.bf16.msra.mxu0 %v3219
        %3718 = vmatpush.bf16.msra.mxu0 %v3208
        %3719 = vmatpush.bf16.msra.mxu0 %v3197
        %3720 = vmatpush.bf16.msra.mxu0 %v3186
        %3721 = vmatmul.bf16.gmra.mxu0 %v2415
        %v3722 = vpop.f32.mrf.mxu0
        %v3723 = vadd.f32 %v2620, %v3722
        %v3724 = vpop.f32.mrf.mxu0
        %3725 = vdwg.mxu0
        %3726 = vmatpush.bf16.msra.mxu0 %v3351
        %3727 = vmatpush.bf16.msra.mxu0 %v3340
        %3728 = vmatpush.bf16.msra.mxu0 %v3329
        %3729 = vmatpush.bf16.msra.mxu0 %v3318
        %3730 = vmatpush.bf16.msra.mxu0 %v3307
        %3731 = vmatpush.bf16.msra.mxu0 %v3296
        %3732 = vmatpush.bf16.msra.mxu0 %v3285
        %3733 = vmatpush.bf16.msra.mxu0 %v3274
        %3734 = vmatmul.bf16.gmra.mxu0 %v2416
        %v3735 = vpop.f32.mrf.mxu0
        %v3736 = vadd.f32 %v3723, %v3735
        %v3737 = vpop.f32.mrf.mxu0
        %3738 = vdwg.mxu0
        %3739 = vmatpush.bf16.msra.mxu0 %v3264
        %3740 = vmatpush.bf16.msra.mxu0 %v3253
        %3741 = vmatpush.bf16.msra.mxu0 %v3242
        %3742 = vmatpush.bf16.msra.mxu0 %v3231
        %3743 = vmatpush.bf16.msra.mxu0 %v3220
        %3744 = vmatpush.bf16.msra.mxu0 %v3209
        %3745 = vmatpush.bf16.msra.mxu0 %v3198
        %3746 = vmatpush.bf16.msra.mxu0 %v3187
        %3747 = vmatmul.bf16.gmra.mxu0 %v2415
        %v3748 = vpop.f32.mrf.mxu0
        %v3749 = vadd.f32 %v2621, %v3748
        %v3750 = vpop.f32.mrf.mxu0
        %3751 = vdwg.mxu0
        %3752 = vmatpush.bf16.msra.mxu0 %v3352
        %3753 = vmatpush.bf16.msra.mxu0 %v3341
        %3754 = vmatpush.bf16.msra.mxu0 %v3330
        %3755 = vmatpush.bf16.msra.mxu0 %v3319
        %3756 = vmatpush.bf16.msra.mxu0 %v3308
        %3757 = vmatpush.bf16.msra.mxu0 %v3297
        %3758 = vmatpush.bf16.msra.mxu0 %v3286
        %3759 = vmatpush.bf16.msra.mxu0 %v3275
        %3760 = vmatmul.bf16.gmra.mxu0 %v2416
        %v3761 = vpop.f32.mrf.mxu0
        %v3762 = vadd.f32 %v3749, %v3761
        %v3763 = vpop.f32.mrf.mxu0
        %3764 = vdwg.mxu0
        %3765 = vmatpush.bf16.msra.mxu0 %v3265
        %3766 = vmatpush.bf16.msra.mxu0 %v3254
        %3767 = vmatpush.bf16.msra.mxu0 %v3243
        %3768 = vmatpush.bf16.msra.mxu0 %v3232
        %3769 = vmatpush.bf16.msra.mxu0 %v3221
        %3770 = vmatpush.bf16.msra.mxu0 %v3210
        %3771 = vmatpush.bf16.msra.mxu0 %v3199
        %3772 = vmatpush.bf16.msra.mxu0 %v3188
        %3773 = vmatmul.bf16.gmra.mxu0 %v2415
        %v3774 = vpop.f32.mrf.mxu0
        %v3775 = vadd.f32 %v2622, %v3774
        %v3776 = vpop.f32.mrf.mxu0
        %3777 = vdwg.mxu0
        %3778 = vmatpush.bf16.msra.mxu0 %v3353
        %3779 = vmatpush.bf16.msra.mxu0 %v3342
        %3780 = vmatpush.bf16.msra.mxu0 %v3331
        %3781 = vmatpush.bf16.msra.mxu0 %v3320
        %3782 = vmatpush.bf16.msra.mxu0 %v3309
        %3783 = vmatpush.bf16.msra.mxu0 %v3298
        %3784 = vmatpush.bf16.msra.mxu0 %v3287
        %3785 = vmatpush.bf16.msra.mxu0 %v3276
        %3786 = vmatmul.bf16.gmra.mxu0 %v2416
        %v3787 = vpop.f32.mrf.mxu0
        %v3788 = vadd.f32 %v3775, %v3787
        %v3789 = vpop.f32.mrf.mxu0
        %3790 = vdwg.mxu0
        %3791 = vmatpush.bf16.msra.mxu0 %v3266
        %3792 = vmatpush.bf16.msra.mxu0 %v3255
        %3793 = vmatpush.bf16.msra.mxu0 %v3244
        %3794 = vmatpush.bf16.msra.mxu0 %v3233
        %3795 = vmatpush.bf16.msra.mxu0 %v3222
        %3796 = vmatpush.bf16.msra.mxu0 %v3211
        %3797 = vmatpush.bf16.msra.mxu0 %v3200
        %3798 = vmatpush.bf16.msra.mxu0 %v3189
        %3799 = vmatmul.bf16.gmra.mxu0 %v2415
        %v3800 = vpop.f32.mrf.mxu0
        %v3801 = vadd.f32 %v2623, %v3800
        %v3802 = vpop.f32.mrf.mxu0
        %3803 = vdwg.mxu0
        %3804 = vmatpush.bf16.msra.mxu0 %v3354
        %3805 = vmatpush.bf16.msra.mxu0 %v3343
        %3806 = vmatpush.bf16.msra.mxu0 %v3332
        %3807 = vmatpush.bf16.msra.mxu0 %v3321
        %3808 = vmatpush.bf16.msra.mxu0 %v3310
        %3809 = vmatpush.bf16.msra.mxu0 %v3299
        %3810 = vmatpush.bf16.msra.mxu0 %v3288
        %3811 = vmatpush.bf16.msra.mxu0 %v3277
        %3812 = vmatmul.bf16.gmra.mxu0 %v2416
        %v3813 = vpop.f32.mrf.mxu0
        %v3814 = vadd.f32 %v3801, %v3813
        %v3815 = vpop.f32.mrf.mxu0
        %3816 = vdwg.mxu0
        %v3828 = vrot.slane %v3580, 6
        %v3829 = vrot.slane %v3606, 4
        %v3830 = vrot.slane %v3632, 2
        %v3831 = vrot.slane %v3684, 6
        %v3832 = vrot.slane %v3710, 4
        %v3833 = vrot.slane %v3736, 2
        %v3834 = vrot.slane %v3788, 6
        %v3835 = vrot.slane %v3814, 4
        %vm3836 = vcmask 1041408
        %v3837 = vsel %vm3836, %v3554, %v3828
        %vm3838 = vcmask 1045508
        %v3839 = vsel %vm3838, %v3829, %v3830
        %vm3840 = vcmask 1043456
        %v3841 = vsel %vm3840, %v3837, %v3839
        %v3842 = vsel %vm3836, %v3658, %v3831
        %v3843 = vsel %vm3838, %v3832, %v3833
        %v3844 = vsel %vm3840, %v3842, %v3843
        %v3845 = vsel %vm3836, %v3762, %v3834
        %v3846 = vsel %vm3840, %v3845, %v3835
        %3850 = vst [vmem:[%s891] sm:$0xff] %v3841
        %3851 = vst [vmem:[%s891 + $0x8] sm:$0xff] %v3844
        %3852 = vst [vmem:[%s891 + $0x10] sm:$0x3f] %v3846
        %s3853 = sand.u32 %s340, 1
        %s3854 = scalar_lea.sflag [#allocation5], %s3853
        %s3855 = sand.u32 %s340, 1
        %s3856 = smul.addr %s3855, 22
        %s3857 = scalar_lea.vmem [#allocation4], %s3856
        // Predicated region
        $region107: #{net_forward.1} parent=97 // pred_check
          %p3858 = pneg %p350
        $region108: #{net_forward.1} parent=97 // pred_check_branch
          %3860 = sbr.rel (%p3858) target = $region110
        $region109: #{net_forward.1} parent=97 // pred_region
          %s3861 = smul.u32 11, %s28
          %3863 = vsyncadd %s3854, 0
          %s3864 = smul.addr %s3861, 2
          %s3865 = scalar_lea.hbm %s14, %s3864
          %s3867 = sshll.u32 %s3857, 4
          %s3868 = int_to_ptr.vmem [resolvable:$true] %s3867
          %s3869 = sshll.u32 %s3865, 4
          %s3870 = int_to_ptr.hbm [resolvable:$true] %s3869
          %3872 = dma.vmem_to_hbm [thread:$0]  %s3868, 352, %s3870, %s3854
        $region110: #{net_forward.1} parent=97 // pred_fallthru
          _
      $region98: #{net_forward.1} parent=5 // pred_fallthru
        _
      %p3873 = scmp.le.s32.totalorder 2, %s23
      // Predicated region
      $region111: #{net_forward.1} parent=5 // pred_check
        %p3874 = pneg %p3873
      $region112: #{net_forward.1} parent=5 // pred_check_branch
        %3876 = sbr.rel (%p3874) target = $region114
      $region113: #{net_forward.1} parent=5 // pred_region
        %s3877 = ssub.s32 %s23, 2
        // Predicated region
        $region115: #{net_forward.1} parent=113 // pred_check
          %p3878 = pneg %p356
        $region116: #{net_forward.1} parent=113 // pred_check_branch
          %3880 = sbr.rel (%p3878) target = $region118
        $region117: #{net_forward.1} parent=113 // pred_region
          %s3881 = sand.u32 %s341, 1
          %s3882 = scalar_lea.sflag [#allocation5], %s3881
          %s3883 = sand.u32 %s341, 1
          %s3884 = smul.addr %s3883, 22
          %s3885 = scalar_lea.vmem [#allocation4], %s3884
          %3887 = dma.done %s3882, 352
        $region118: #{net_forward.1} parent=113 // pred_fallthru
          _
      $region114: #{net_forward.1} parent=5 // pred_fallthru
        _
    $region6: #{net_forward.1} parent=1 // loop_footer
      %s27 = sadd.s32 1, %s23
    $region7: #{net_forward.1} parent=1 // loop_footer_branch
      %22 = sbr.rel target = $region3
    $region8: #{net_forward.1} parent=1 // loop_exit
      _
    %3888 = vsyncpa [#allocation5], 1
    %s3889 = scalar_lea.sflag [#allocation5], 1
    %3890 = vsyncpa %s3889, 1

</llo_original>
